<compile_context>
chip_gen: v7x
topology: tpu7x:2x2x1
jax: 0.10.0
libtpu: 0.0.40
codegen_flags: <defaults>
</compile_context>

<pallas_src>
import jax
import jax.numpy as jnp
from jax.experimental import pallas as pl
from jax.experimental.pallas import tpu as pltpu

# Model hyperparameters (from the PyTorch script)
INPUT_SIZE = 28
HIDDEN_SIZE = 64
NUM_LAYERS = 2
NUM_CLASSES = 10

HIDDEN_PAD = 128     # hidden padded to one full lane group per gate
OUT_PAD = 128        # lane-dense logits slab
IN_PAD = 32          # input feature dim padded (bf16-friendly K)
MAX_BATCH_TILE = 128 # per-grid-step batch rows (MXU cost ~flat up to 128)


# --------------------------------------------------------------------------
# Weight packing helpers (PyTorch layout -> padded, gate-blocked, transposed)
# --------------------------------------------------------------------------
def _pack_gate_weight(w, in_dim, in_pad):
    """w: (3H, in_dim) PyTorch GRU weight -> (in_pad, 3*Hp) bf16, gate blocks
    at lane offsets 0 / Hp / 2*Hp (r, z, n), zero-padded."""
    H, Hp = HIDDEN_SIZE, HIDDEN_PAD
    blocks = []
    for g in range(3):
        wg = w[g * H:(g + 1) * H, :].T                       # (in_dim, H)
        wg = jnp.pad(wg, ((0, in_pad - in_dim), (0, Hp - H)))
        blocks.append(wg)
    return jnp.concatenate(blocks, axis=1).astype(jnp.bfloat16)   # (in_pad, 3Hp)


def _pack_gi_bias(b_ih, b_hh):
    """Combined bias for the batched input projection.  The r/z parts of the
    hidden bias are folded in (they are never scaled by r), so the per-step
    recurrence only adds the n-gate hidden bias.  Returns (1, 3*Hp) f32."""
    H, Hp = HIDDEN_SIZE, HIDDEN_PAD
    parts = [b_ih[0:H] + b_hh[0:H],              # r
             b_ih[H:2 * H] + b_hh[H:2 * H],      # z
             b_ih[2 * H:3 * H]]                  # n (input part only)
    parts = [jnp.pad(p, (0, Hp - H)) for p in parts]
    return jnp.concatenate(parts).reshape(1, 3 * Hp).astype(jnp.float32)


def _pack_hn_bias(b_hh):
    """n-gate hidden bias (multiplied by r inside the cell).  (1, Hp) f32."""
    H, Hp = HIDDEN_SIZE, HIDDEN_PAD
    return jnp.pad(b_hh[2 * H:3 * H], (0, Hp - H)).reshape(1, Hp).astype(jnp.float32)


# --------------------------------------------------------------------------
# Pallas kernel
# --------------------------------------------------------------------------
def _gru_kernel(x_ref,
                w_ih0_ref, w_hh0_ref, b_gi0_ref, b_hn0_ref,
                w_ih1_ref, w_hh1_ref, b_gi1_ref, b_hn1_ref,
                w_fc_ref, b_fc_ref,
                out_ref,
                gi0_scr, h0_scr, gi1_scr):
    T, TB, D = x_ref.shape
    Hp = HIDDEN_PAD

    # ---- Pass A: layer-0 input projection for ALL timesteps (one big matmul).
    x_all = x_ref[...].reshape(T * TB, D).astype(jnp.bfloat16)
    gi0_scr[...] = (jnp.dot(x_all, w_ih0_ref[...],
                            preferred_element_type=jnp.float32)
                    + b_gi0_ref[...]).reshape(T, TB, 3 * Hp)

    b_hn0 = b_hn0_ref[...]        # (1, Hp) — tiny, safe to hoist
    b_hn1 = b_hn1_ref[...]

    def gru_step(gi, gh, b_hn, h_prev):
        # gi already carries b_ih + (r,z parts of) b_hh; gh is raw h @ W_hh.
        # Gates live at 128-lane-aligned offsets -> whole-vreg slices.
        rz = jax.nn.sigmoid(gi[:, :2 * Hp] + gh[:, :2 * Hp])   # fused r,z
        r = rz[:, :Hp]
        z = rz[:, Hp:]
        n = jnp.tanh(gi[:, 2 * Hp:] + r * (gh[:, 2 * Hp:] + b_hn))
        # (1-z)*n + z*h == n + z*(h-n): one fewer multiply on the crit. path.
        return n + z * (h_prev - n)

    # ---- Pass B: layer-0 recurrence; one small matmul / step; store h0_t.
    # Fully unrolled (T static & small).  TODO(synk): for T >~ 32 switch to
    # lax.fori_loop(..., unroll=2..4) to bound compile time / live ranges.
    h0 = jnp.zeros((TB, Hp), jnp.float32)
    for t in range(T):
        gh0 = jnp.dot(h0.astype(jnp.bfloat16), w_hh0_ref[...],
                      preferred_element_type=jnp.float32)
        h0 = gru_step(gi0_scr[t], gh0, b_hn0, h0)
        h0_scr[t] = h0

    # ---- Pass C: layer-1 input projection for ALL timesteps (one big matmul;
    # amortizes the W_ih1 weight push over T*TB rows instead of T small dots).
    h0_all = h0_scr[...].reshape(T * TB, Hp).astype(jnp.bfloat16)
    gi1_scr[...] = (jnp.dot(h0_all, w_ih1_ref[...],
                            preferred_element_type=jnp.float32)
                    + b_gi1_ref[...]).reshape(T, TB, 3 * Hp)

    # ---- Pass D: layer-1 recurrence (single small matmul per step).
    h1 = jnp.zeros((TB, Hp), jnp.float32)
    for t in range(T):
        gh1 = jnp.dot(h1.astype(jnp.bfloat16), w_hh1_ref[...],
                      preferred_element_type=jnp.float32)
        h1 = gru_step(gi1_scr[t], gh1, b_hn1, h1)

    # ---- Final FC on the last hidden state into a lane-dense (TB, 128) slab.
    out_ref[...] = (jnp.dot(h1.astype(jnp.bfloat16), w_fc_ref[...],
                            preferred_element_type=jnp.float32)
                    + b_fc_ref[...]).astype(out_ref.dtype)


# --------------------------------------------------------------------------
# Wrapper
# --------------------------------------------------------------------------
def rnn_forward(x, params):
    """x: (B, T, INPUT_SIZE) float32, batch_first like the PyTorch module.
    Returns (B, NUM_CLASSES) float32 logits."""
    B, T, D = x.shape
    assert D == INPUT_SIZE
    (w_ih0, w_hh0, b_ih0, b_hh0,
     w_ih1, w_hh1, b_ih1, b_hh1,
     w_fc, b_fc) = params

    Hp = HIDDEN_PAD

    # Batch tiling: one TB-row tile per grid step.  With >1 tile, the
    # "parallel" grid axis lets v7x's two TensorCores split the batch; on
    # v5e/v6e the grid simply iterates.  Bigger caller-side batches (up to
    # TB=128 rows per step) are nearly free throughput.
    if B <= MAX_BATCH_TILE:
        TB = ((B + 7) // 8) * 8
    else:
        TB = MAX_BATCH_TILE
    Bp = pl.cdiv(B, TB) * TB
    n_btiles = Bp // TB

    # Time-major input (T, Bp, IN_PAD).  Padded batch rows compute nonzero
    # garbage (biases propagate through the gates) — harmless, sliced off at
    # [:B] below; padded feature lanes are zero and hit zero weight rows.
    x_tm = jnp.transpose(x, (1, 0, 2)).astype(jnp.float32)       # (T, B, D)
    x_tm = jnp.pad(x_tm, ((0, 0), (0, Bp - B), (0, IN_PAD - D)))

    # Gate-blocked, 128-lane-padded bf16 weights; f32 biases.  Padded hidden
    # lanes provably stay exactly 0 through the recurrence.
    w_ih0_p = _pack_gate_weight(w_ih0, INPUT_SIZE, IN_PAD)       # (32, 3Hp)
    w_hh0_p = _pack_gate_weight(w_hh0, HIDDEN_SIZE, Hp)          # (Hp, 3Hp)
    w_ih1_p = _pack_gate_weight(w_ih1, HIDDEN_SIZE, Hp)          # (Hp, 3Hp)
    w_hh1_p = _pack_gate_weight(w_hh1, HIDDEN_SIZE, Hp)          # (Hp, 3Hp)
    b_gi0_p = _pack_gi_bias(b_ih0, b_hh0)
    b_hn0_p = _pack_hn_bias(b_hh0)
    b_gi1_p = _pack_gi_bias(b_ih1, b_hh1)
    b_hn1_p = _pack_hn_bias(b_hh1)
    w_fc_p = jnp.pad(w_fc.T,
                     ((0, Hp - HIDDEN_SIZE),
                      (0, OUT_PAD - NUM_CLASSES))).astype(jnp.bfloat16)
    b_fc_p = jnp.pad(b_fc.astype(jnp.float32),
                     (0, OUT_PAD - NUM_CLASSES)).reshape(1, OUT_PAD)

    args = (x_tm,
            w_ih0_p, w_hh0_p, b_gi0_p, b_hn0_p,
            w_ih1_p, w_hh1_p, b_gi1_p, b_hn1_p,
            w_fc_p, b_fc_p)

    vmem_whole = pl.BlockSpec(memory_space=pltpu.MemorySpace.VMEM)
    in_specs = ([pl.BlockSpec((T, TB, IN_PAD), lambda b: (0, b, 0))]
                + [vmem_whole] * (len(args) - 1))

    out = pl.pallas_call(
        _gru_kernel,
        out_shape=jax.ShapeDtypeStruct((Bp, OUT_PAD), jnp.float32),
        grid=(n_btiles,),
        in_specs=in_specs,
        out_specs=pl.BlockSpec((TB, OUT_PAD), lambda b: (b, 0)),
        scratch_shapes=[pltpu.VMEM((T, TB, 3 * Hp), jnp.float32),   # gi0
                        pltpu.VMEM((T, TB, Hp), jnp.float32),       # h0_t
                        pltpu.VMEM((T, TB, 3 * Hp), jnp.float32)],  # gi1
        compiler_params=pltpu.CompilerParams(
            dimension_semantics=("parallel",),
            vmem_limit_bytes=32 * 1024 * 1024),
    )(*args)

    return out[:B, :NUM_CLASSES]


# --------------------------------------------------------------------------
# Params + pure-JAX reference
# --------------------------------------------------------------------------
def init_params(key):
    """Deterministic init matching PyTorch shapes: U(-1/sqrt(H), 1/sqrt(H))."""
    k = 1.0 / jnp.sqrt(jnp.float32(HIDDEN_SIZE))
    keys = jax.random.split(key, 10)

    def u(kk, shape):
        return jax.random.uniform(kk, shape, jnp.float32, -k, k)

    w_ih0 = u(keys[0], (3 * HIDDEN_SIZE, INPUT_SIZE))
    w_hh0 = u(keys[1], (3 * HIDDEN_SIZE, HIDDEN_SIZE))
    b_ih0 = u(keys[2], (3 * HIDDEN_SIZE,))
    b_hh0 = u(keys[3], (3 * HIDDEN_SIZE,))
    w_ih1 = u(keys[4], (3 * HIDDEN_SIZE, HIDDEN_SIZE))
    w_hh1 = u(keys[5], (3 * HIDDEN_SIZE, HIDDEN_SIZE))
    b_ih1 = u(keys[6], (3 * HIDDEN_SIZE,))
    b_hh1 = u(keys[7], (3 * HIDDEN_SIZE,))
    w_fc = u(keys[8], (NUM_CLASSES, HIDDEN_SIZE))
    b_fc = u(keys[9], (NUM_CLASSES,))
    return (w_ih0, w_hh0, b_ih0, b_hh0,
            w_ih1, w_hh1, b_ih1, b_hh1,
            w_fc, b_fc)


def rnn_forward_ref(x, params):
    """Pure-JAX f32 reference of the same forward pass (sanity check)."""
    (w_ih0, w_hh0, b_ih0, b_hh0,
     w_ih1, w_hh1, b_ih1, b_hh1,
     w_fc, b_fc) = params
    B, T, _ = x.shape
    H = HIDDEN_SIZE
    h0 = jnp.zeros((B, H), jnp.float32)
    h1 = jnp.zeros((B, H), jnp.float32)

    def cell(x_t, h, w_ih, w_hh, b_ih, b_hh):
        gi = x_t @ w_ih.T + b_ih
        gh = h @ w_hh.T + b_hh
        r = jax.nn.sigmoid(gi[:, :H] + gh[:, :H])
        z = jax.nn.sigmoid(gi[:, H:2 * H] + gh[:, H:2 * H])
        n = jnp.tanh(gi[:, 2 * H:] + r * gh[:, 2 * H:])
        return (1.0 - z) * n + z * h

    for t in range(T):
        h0 = cell(x[:, t, :], h0, w_ih0, w_hh0, b_ih0, b_hh0)
        h1 = cell(h0, h1, w_ih1, w_hh1, b_ih1, b_hh1)
    return h1 @ w_fc.T + b_fc


if __name__ == "__main__":
    key = jax.random.PRNGKey(0)
    k_params, k_x = jax.random.split(key)

    B, T = 8, 8  # small, sublane-aligned batch; feature dim = 28 as in MNIST rows
    x = jax.random.normal(k_x, (B, T, INPUT_SIZE), jnp.float32)
    params = init_params(k_params)

    out = rnn_forward(x, params)
    out = jax.block_until_ready(out)
    assert out.shape == (B, NUM_CLASSES)

    ref = jax.block_until_ready(rnn_forward_ref(x, params))
    # bf16 matmul operands (f32 accumulation / gate math) vs. the pure-f32
    # reference: the T-step recurrence amplifies bf16 rounding slightly, so a
    # looser tolerance than the previous all-f32 kernel is expected.
    assert jnp.allclose(out, ref, rtol=3e-2, atol=3e-2), "mismatch vs reference"

    print("KERNEL_OK")
</pallas_src>

<mosaic_0001>
module attributes {stable_mosaic.version = 11 : i64} {
  func.func @_gru_kernel(%arg0: i32, %arg1: memref<8x8x32xf32, #tpu.memory_space<vmem>>, %arg2: memref<32x384xbf16, #tpu.memory_space<vmem>>, %arg3: memref<128x384xbf16, #tpu.memory_space<vmem>>, %arg4: memref<1x384xf32, #tpu.memory_space<vmem>>, %arg5: memref<1x128xf32, #tpu.memory_space<vmem>>, %arg6: memref<128x384xbf16, #tpu.memory_space<vmem>>, %arg7: memref<128x384xbf16, #tpu.memory_space<vmem>>, %arg8: memref<1x384xf32, #tpu.memory_space<vmem>>, %arg9: memref<1x128xf32, #tpu.memory_space<vmem>>, %arg10: memref<128x128xbf16, #tpu.memory_space<vmem>>, %arg11: memref<1x128xf32, #tpu.memory_space<vmem>>, %arg12: memref<8x128xf32, #tpu.memory_space<vmem>>, %arg13: memref<8x8x384xf32, #tpu.memory_space<vmem>>, %arg14: memref<8x8x128xf32, #tpu.memory_space<vmem>>, %arg15: memref<8x8x384xf32, #tpu.memory_space<vmem>>) attributes {dimension_semantics = [#tpu.dimension_semantics<parallel>], iteration_bounds = array<i64: 1>, scalar_prefetch = 0 : i64, scratch_operands = 3 : i64, tpu.core_type = #tpu.core_type<tc>, window_params = [{transform_indices = @transform_0, window_bounds = array<i64: 8, 8, 32>}, {pipeline_mode = #tpu.pipeline_mode<synchronous>, transform_indices = @transform_1, window_bounds = array<i64: 32, 384>}, {pipeline_mode = #tpu.pipeline_mode<synchronous>, transform_indices = @transform_2, window_bounds = array<i64: 128, 384>}, {pipeline_mode = #tpu.pipeline_mode<synchronous>, transform_indices = @transform_3, window_bounds = array<i64: 1, 384>}, {pipeline_mode = #tpu.pipeline_mode<synchronous>, transform_indices = @transform_4, window_bounds = array<i64: 1, 128>}, {pipeline_mode = #tpu.pipeline_mode<synchronous>, transform_indices = @transform_5, window_bounds = array<i64: 128, 384>}, {pipeline_mode = #tpu.pipeline_mode<synchronous>, transform_indices = @transform_6, window_bounds = array<i64: 128, 384>}, {pipeline_mode = #tpu.pipeline_mode<synchronous>, transform_indices = @transform_7, window_bounds = array<i64: 1, 384>}, {pipeline_mode = #tpu.pipeline_mode<synchronous>, transform_indices = @transform_8, window_bounds = array<i64: 1, 128>}, {pipeline_mode = #tpu.pipeline_mode<synchronous>, transform_indices = @transform_9, window_bounds = array<i64: 128, 128>}, {pipeline_mode = #tpu.pipeline_mode<synchronous>, transform_indices = @transform_10, window_bounds = array<i64: 1, 128>}, {transform_indices = @transform_11, window_bounds = array<i64: 8, 128>}]} {
    %c0 = arith.constant 0 : index
    %c0_0 = arith.constant 0 : index
    %c0_1 = arith.constant 0 : index
    %0 = vector.load %arg1[%c0, %c0_0, %c0_1] : memref<8x8x32xf32, #tpu.memory_space<vmem>>, vector<8x8x32xf32>
    %1 = vector.shape_cast %0 : vector<8x8x32xf32> to vector<64x32xf32>
    %2 = arith.truncf %1 : vector<64x32xf32> to vector<64x32xbf16>
    %c0_2 = arith.constant 0 : index
    %c0_3 = arith.constant 0 : index
    %3 = vector.load %arg2[%c0_2, %c0_3] : memref<32x384xbf16, #tpu.memory_space<vmem>>, vector<32x384xbf16>
    %cst = arith.constant dense<0.000000e+00> : vector<64x384xf32>
    %4 = tpu.matmul %2, %3, %cst {dimension_numbers = #tpu.dot_dimension_numbers<[1], [0], [0], [1], [0, 0, 1, 1], [], []>} : vector<64x32xbf16>, vector<32x384xbf16>, vector<64x384xf32> -> vector<64x384xf32>
    %c0_4 = arith.constant 0 : index
    %c0_5 = arith.constant 0 : index
    %5 = vector.load %arg4[%c0_4, %c0_5] : memref<1x384xf32, #tpu.memory_space<vmem>>, vector<1x384xf32>
    %6 = vector.broadcast %5 : vector<1x384xf32> to vector<64x384xf32>
    %7 = arith.addf %4, %6 : vector<64x384xf32>
    %8 = vector.shape_cast %7 : vector<64x384xf32> to vector<8x8x384xf32>
    %c0_6 = arith.constant 0 : index
    %c0_7 = arith.constant 0 : index
    %c0_8 = arith.constant 0 : index
    %9 = vector.load %arg13[%c0_6, %c0_7, %c0_8] : memref<8x8x384xf32, #tpu.memory_space<vmem>>, vector<8x8x384xf32>
    tpu.vector_store %arg13[%c0_6, %c0_7, %c0_8], %8 {strides = array<i32>} : memref<8x8x384xf32, #tpu.memory_space<vmem>>, vector<8x8x384xf32>,
    %c0_9 = arith.constant 0 : index
    %c0_10 = arith.constant 0 : index
    %10 = vector.load %arg5[%c0_9, %c0_10] : memref<1x128xf32, #tpu.memory_space<vmem>>, vector<1x128xf32>
    %c0_11 = arith.constant 0 : index
    %c0_12 = arith.constant 0 : index
    %11 = vector.load %arg9[%c0_11, %c0_12] : memref<1x128xf32, #tpu.memory_space<vmem>>, vector<1x128xf32>
    %cst_13 = arith.constant 0.000000e+00 : f32
    %12 = vector.broadcast %cst_13 : f32 to vector<8x128xf32>
    %13 = arith.truncf %12 : vector<8x128xf32> to vector<8x128xbf16>
    %c0_14 = arith.constant 0 : index
    %c0_15 = arith.constant 0 : index
    %14 = vector.load %arg3[%c0_14, %c0_15] : memref<128x384xbf16, #tpu.memory_space<vmem>>, vector<128x384xbf16>
    %cst_16 = arith.constant dense<0.000000e+00> : vector<8x384xf32>
    %15 = tpu.matmul %13, %14, %cst_16 {dimension_numbers = #tpu.dot_dimension_numbers<[1], [0], [0], [1], [0, 0, 1, 1], [], []>} : vector<8x128xbf16>, vector<128x384xbf16>, vector<8x384xf32> -> vector<8x384xf32>
    %c0_17 = arith.constant 0 : index
    %c0_18 = arith.constant 0 : index
    %c0_19 = arith.constant 0 : index
    %16 = vector.load %arg13[%c0_17, %c0_18, %c0_19] : memref<8x8x384xf32, #tpu.memory_space<vmem>>, vector<1x8x384xf32>
    %17 = vector.shape_cast %16 : vector<1x8x384xf32> to vector<8x384xf32>
    %18 = vector.extract_strided_slice %17 {offsets = [0, 0], sizes = [8, 256], strides = [1, 1]} : vector<8x384xf32> to vector<8x256xf32>
    %19 = vector.extract_strided_slice %15 {offsets = [0, 0], sizes = [8, 256], strides = [1, 1]} : vector<8x384xf32> to vector<8x256xf32>
    %20 = arith.addf %18, %19 : vector<8x256xf32>
    %21 = arith.negf %20 : vector<8x256xf32>
    %22 = math.exp %21 : vector<8x256xf32>
    %cst_20 = arith.constant 1.000000e+00 : f32
    %23 = vector.broadcast %cst_20 : f32 to vector<8x256xf32>
    %24 = arith.addf %23, %22 : vector<8x256xf32>
    %25 = arith.divf %23, %24 : vector<8x256xf32>
    %26 = vector.extract_strided_slice %25 {offsets = [0, 0], sizes = [8, 128], strides = [1, 1]} : vector<8x256xf32> to vector<8x128xf32>
    %27 = vector.extract_strided_slice %25 {offsets = [0, 128], sizes = [8, 128], strides = [1, 1]} : vector<8x256xf32> to vector<8x128xf32>
    %28 = vector.extract_strided_slice %17 {offsets = [0, 256], sizes = [8, 128], strides = [1, 1]} : vector<8x384xf32> to vector<8x128xf32>
    %29 = vector.extract_strided_slice %15 {offsets = [0, 256], sizes = [8, 128], strides = [1, 1]} : vector<8x384xf32> to vector<8x128xf32>
    %30 = vector.broadcast %10 : vector<1x128xf32> to vector<8x128xf32>
    %31 = arith.addf %29, %30 : vector<8x128xf32>
    %32 = arith.mulf %26, %31 : vector<8x128xf32>
    %33 = arith.addf %28, %32 : vector<8x128xf32>
    %34 = math.tanh %33 : vector<8x128xf32>
    %35 = arith.subf %12, %34 : vector<8x128xf32>
    %36 = arith.mulf %27, %35 : vector<8x128xf32>
    %37 = arith.addf %34, %36 : vector<8x128xf32>
    %c0_21 = arith.constant 0 : index
    %c0_22 = arith.constant 0 : index
    %c0_23 = arith.constant 0 : index
    %38 = vector.load %arg14[%c0_21, %c0_22, %c0_23] : memref<8x8x128xf32, #tpu.memory_space<vmem>>, vector<1x8x128xf32>
    %39 = vector.shape_cast %38 : vector<1x8x128xf32> to vector<8x128xf32>
    %40 = vector.shape_cast %37 : vector<8x128xf32> to vector<1x8x128xf32>
    tpu.vector_store %arg14[%c0_21, %c0_22, %c0_23], %40 {strides = array<i32>} : memref<8x8x128xf32, #tpu.memory_space<vmem>>, vector<1x8x128xf32>,
    %41 = arith.truncf %37 : vector<8x128xf32> to vector<8x128xbf16>
    %c0_24 = arith.constant 0 : index
    %c0_25 = arith.constant 0 : index
    %42 = vector.load %arg3[%c0_24, %c0_25] : memref<128x384xbf16, #tpu.memory_space<vmem>>, vector<128x384xbf16>
    %cst_26 = arith.constant dense<0.000000e+00> : vector<8x384xf32>
    %43 = tpu.matmul %41, %42, %cst_26 {dimension_numbers = #tpu.dot_dimension_numbers<[1], [0], [0], [1], [0, 0, 1, 1], [], []>} : vector<8x128xbf16>, vector<128x384xbf16>, vector<8x384xf32> -> vector<8x384xf32>
    %c1 = arith.constant 1 : index
    %c0_27 = arith.constant 0 : index
    %c0_28 = arith.constant 0 : index
    %44 = vector.load %arg13[%c1, %c0_27, %c0_28] : memref<8x8x384xf32, #tpu.memory_space<vmem>>, vector<1x8x384xf32>
    %45 = vector.shape_cast %44 : vector<1x8x384xf32> to vector<8x384xf32>
    %46 = vector.extract_strided_slice %45 {offsets = [0, 0], sizes = [8, 256], strides = [1, 1]} : vector<8x384xf32> to vector<8x256xf32>
    %47 = vector.extract_strided_slice %43 {offsets = [0, 0], sizes = [8, 256], strides = [1, 1]} : vector<8x384xf32> to vector<8x256xf32>
    %48 = arith.addf %46, %47 : vector<8x256xf32>
    %49 = arith.negf %48 : vector<8x256xf32>
    %50 = math.exp %49 : vector<8x256xf32>
    %cst_29 = arith.constant 1.000000e+00 : f32
    %51 = vector.broadcast %cst_29 : f32 to vector<8x256xf32>
    %52 = arith.addf %51, %50 : vector<8x256xf32>
    %53 = arith.divf %51, %52 : vector<8x256xf32>
    %54 = vector.extract_strided_slice %53 {offsets = [0, 0], sizes = [8, 128], strides = [1, 1]} : vector<8x256xf32> to vector<8x128xf32>
    %55 = vector.extract_strided_slice %53 {offsets = [0, 128], sizes = [8, 128], strides = [1, 1]} : vector<8x256xf32> to vector<8x128xf32>
    %56 = vector.extract_strided_slice %45 {offsets = [0, 256], sizes = [8, 128], strides = [1, 1]} : vector<8x384xf32> to vector<8x128xf32>
    %57 = vector.extract_strided_slice %43 {offsets = [0, 256], sizes = [8, 128], strides = [1, 1]} : vector<8x384xf32> to vector<8x128xf32>
    %58 = vector.broadcast %10 : vector<1x128xf32> to vector<8x128xf32>
    %59 = arith.addf %57, %58 : vector<8x128xf32>
    %60 = arith.mulf %54, %59 : vector<8x128xf32>
    %61 = arith.addf %56, %60 : vector<8x128xf32>
    %62 = math.tanh %61 : vector<8x128xf32>
    %63 = arith.subf %37, %62 : vector<8x128xf32>
    %64 = arith.mulf %55, %63 : vector<8x128xf32>
    %65 = arith.addf %62, %64 : vector<8x128xf32>
    %c1_30 = arith.constant 1 : index
    %c0_31 = arith.constant 0 : index
    %c0_32 = arith.constant 0 : index
    %66 = vector.load %arg14[%c1_30, %c0_31, %c0_32] : memref<8x8x128xf32, #tpu.memory_space<vmem>>, vector<1x8x128xf32>
    %67 = vector.shape_cast %66 : vector<1x8x128xf32> to vector<8x128xf32>
    %68 = vector.shape_cast %65 : vector<8x128xf32> to vector<1x8x128xf32>
    tpu.vector_store %arg14[%c1_30, %c0_31, %c0_32], %68 {strides = array<i32>} : memref<8x8x128xf32, #tpu.memory_space<vmem>>, vector<1x8x128xf32>,
    %69 = arith.truncf %65 : vector<8x128xf32> to vector<8x128xbf16>
    %c0_33 = arith.constant 0 : index
    %c0_34 = arith.constant 0 : index
    %70 = vector.load %arg3[%c0_33, %c0_34] : memref<128x384xbf16, #tpu.memory_space<vmem>>, vector<128x384xbf16>
    %cst_35 = arith.constant dense<0.000000e+00> : vector<8x384xf32>
    %71 = tpu.matmul %69, %70, %cst_35 {dimension_numbers = #tpu.dot_dimension_numbers<[1], [0], [0], [1], [0, 0, 1, 1], [], []>} : vector<8x128xbf16>, vector<128x384xbf16>, vector<8x384xf32> -> vector<8x384xf32>
    %c2 = arith.constant 2 : index
    %c0_36 = arith.constant 0 : index
    %c0_37 = arith.constant 0 : index
    %72 = vector.load %arg13[%c2, %c0_36, %c0_37] : memref<8x8x384xf32, #tpu.memory_space<vmem>>, vector<1x8x384xf32>
    %73 = vector.shape_cast %72 : vector<1x8x384xf32> to vector<8x384xf32>
    %74 = vector.extract_strided_slice %73 {offsets = [0, 0], sizes = [8, 256], strides = [1, 1]} : vector<8x384xf32> to vector<8x256xf32>
    %75 = vector.extract_strided_slice %71 {offsets = [0, 0], sizes = [8, 256], strides = [1, 1]} : vector<8x384xf32> to vector<8x256xf32>
    %76 = arith.addf %74, %75 : vector<8x256xf32>
    %77 = arith.negf %76 : vector<8x256xf32>
    %78 = math.exp %77 : vector<8x256xf32>
    %cst_38 = arith.constant 1.000000e+00 : f32
    %79 = vector.broadcast %cst_38 : f32 to vector<8x256xf32>
    %80 = arith.addf %79, %78 : vector<8x256xf32>
    %81 = arith.divf %79, %80 : vector<8x256xf32>
    %82 = vector.extract_strided_slice %81 {offsets = [0, 0], sizes = [8, 128], strides = [1, 1]} : vector<8x256xf32> to vector<8x128xf32>
    %83 = vector.extract_strided_slice %81 {offsets = [0, 128], sizes = [8, 128], strides = [1, 1]} : vector<8x256xf32> to vector<8x128xf32>
    %84 = vector.extract_strided_slice %73 {offsets = [0, 256], sizes = [8, 128], strides = [1, 1]} : vector<8x384xf32> to vector<8x128xf32>
    %85 = vector.extract_strided_slice %71 {offsets = [0, 256], sizes = [8, 128], strides = [1, 1]} : vector<8x384xf32> to vector<8x128xf32>
    %86 = vector.broadcast %10 : vector<1x128xf32> to vector<8x128xf32>
    %87 = arith.addf %85, %86 : vector<8x128xf32>
    %88 = arith.mulf %82, %87 : vector<8x128xf32>
    %89 = arith.addf %84, %88 : vector<8x128xf32>
    %90 = math.tanh %89 : vector<8x128xf32>
    %91 = arith.subf %65, %90 : vector<8x128xf32>
    %92 = arith.mulf %83, %91 : vector<8x128xf32>
    %93 = arith.addf %90, %92 : vector<8x128xf32>
    %c2_39 = arith.constant 2 : index
    %c0_40 = arith.constant 0 : index
    %c0_41 = arith.constant 0 : index
    %94 = vector.load %arg14[%c2_39, %c0_40, %c0_41] : memref<8x8x128xf32, #tpu.memory_space<vmem>>, vector<1x8x128xf32>
    %95 = vector.shape_cast %94 : vector<1x8x128xf32> to vector<8x128xf32>
    %96 = vector.shape_cast %93 : vector<8x128xf32> to vector<1x8x128xf32>
    tpu.vector_store %arg14[%c2_39, %c0_40, %c0_41], %96 {strides = array<i32>} : memref<8x8x128xf32, #tpu.memory_space<vmem>>, vector<1x8x128xf32>,
    %97 = arith.truncf %93 : vector<8x128xf32> to vector<8x128xbf16>
    %c0_42 = arith.constant 0 : index
    %c0_43 = arith.constant 0 : index
    %98 = vector.load %arg3[%c0_42, %c0_43] : memref<128x384xbf16, #tpu.memory_space<vmem>>, vector<128x384xbf16>
    %cst_44 = arith.constant dense<0.000000e+00> : vector<8x384xf32>
    %99 = tpu.matmul %97, %98, %cst_44 {dimension_numbers = #tpu.dot_dimension_numbers<[1], [0], [0], [1], [0, 0, 1, 1], [], []>} : vector<8x128xbf16>, vector<128x384xbf16>, vector<8x384xf32> -> vector<8x384xf32>
    %c3 = arith.constant 3 : index
    %c0_45 = arith.constant 0 : index
    %c0_46 = arith.constant 0 : index
    %100 = vector.load %arg13[%c3, %c0_45, %c0_46] : memref<8x8x384xf32, #tpu.memory_space<vmem>>, vector<1x8x384xf32>
    %101 = vector.shape_cast %100 : vector<1x8x384xf32> to vector<8x384xf32>
    %102 = vector.extract_strided_slice %101 {offsets = [0, 0], sizes = [8, 256], strides = [1, 1]} : vector<8x384xf32> to vector<8x256xf32>
    %103 = vector.extract_strided_slice %99 {offsets = [0, 0], sizes = [8, 256], strides = [1, 1]} : vector<8x384xf32> to vector<8x256xf32>
    %104 = arith.addf %102, %103 : vector<8x256xf32>
    %105 = arith.negf %104 : vector<8x256xf32>
    %106 = math.exp %105 : vector<8x256xf32>
    %cst_47 = arith.constant 1.000000e+00 : f32
    %107 = vector.broadcast %cst_47 : f32 to vector<8x256xf32>
    %108 = arith.addf %107, %106 : vector<8x256xf32>
    %109 = arith.divf %107, %108 : vector<8x256xf32>
    %110 = vector.extract_strided_slice %109 {offsets = [0, 0], sizes = [8, 128], strides = [1, 1]} : vector<8x256xf32> to vector<8x128xf32>
    %111 = vector.extract_strided_slice %109 {offsets = [0, 128], sizes = [8, 128], strides = [1, 1]} : vector<8x256xf32> to vector<8x128xf32>
    %112 = vector.extract_strided_slice %101 {offsets = [0, 256], sizes = [8, 128], strides = [1, 1]} : vector<8x384xf32> to vector<8x128xf32>
    %113 = vector.extract_strided_slice %99 {offsets = [0, 256], sizes = [8, 128], strides = [1, 1]} : vector<8x384xf32> to vector<8x128xf32>
    %114 = vector.broadcast %10 : vector<1x128xf32> to vector<8x128xf32>
    %115 = arith.addf %113, %114 : vector<8x128xf32>
    %116 = arith.mulf %110, %115 : vector<8x128xf32>
    %117 = arith.addf %112, %116 : vector<8x128xf32>
    %118 = math.tanh %117 : vector<8x128xf32>
    %119 = arith.subf %93, %118 : vector<8x128xf32>
    %120 = arith.mulf %111, %119 : vector<8x128xf32>
    %121 = arith.addf %118, %120 : vector<8x128xf32>
    %c3_48 = arith.constant 3 : index
    %c0_49 = arith.constant 0 : index
    %c0_50 = arith.constant 0 : index
    %122 = vector.load %arg14[%c3_48, %c0_49, %c0_50] : memref<8x8x128xf32, #tpu.memory_space<vmem>>, vector<1x8x128xf32>
    %123 = vector.shape_cast %122 : vector<1x8x128xf32> to vector<8x128xf32>
    %124 = vector.shape_cast %121 : vector<8x128xf32> to vector<1x8x128xf32>
    tpu.vector_store %arg14[%c3_48, %c0_49, %c0_50], %124 {strides = array<i32>} : memref<8x8x128xf32, #tpu.memory_space<vmem>>, vector<1x8x128xf32>,
    %125 = arith.truncf %121 : vector<8x128xf32> to vector<8x128xbf16>
    %c0_51 = arith.constant 0 : index
    %c0_52 = arith.constant 0 : index
    %126 = vector.load %arg3[%c0_51, %c0_52] : memref<128x384xbf16, #tpu.memory_space<vmem>>, vector<128x384xbf16>
    %cst_53 = arith.constant dense<0.000000e+00> : vector<8x384xf32>
    %127 = tpu.matmul %125, %126, %cst_53 {dimension_numbers = #tpu.dot_dimension_numbers<[1], [0], [0], [1], [0, 0, 1, 1], [], []>} : vector<8x128xbf16>, vector<128x384xbf16>, vector<8x384xf32> -> vector<8x384xf32>
    %c4 = arith.constant 4 : index
    %c0_54 = arith.constant 0 : index
    %c0_55 = arith.constant 0 : index
    %128 = vector.load %arg13[%c4, %c0_54, %c0_55] : memref<8x8x384xf32, #tpu.memory_space<vmem>>, vector<1x8x384xf32>
    %129 = vector.shape_cast %128 : vector<1x8x384xf32> to vector<8x384xf32>
    %130 = vector.extract_strided_slice %129 {offsets = [0, 0], sizes = [8, 256], strides = [1, 1]} : vector<8x384xf32> to vector<8x256xf32>
    %131 = vector.extract_strided_slice %127 {offsets = [0, 0], sizes = [8, 256], strides = [1, 1]} : vector<8x384xf32> to vector<8x256xf32>
    %132 = arith.addf %130, %131 : vector<8x256xf32>
    %133 = arith.negf %132 : vector<8x256xf32>
    %134 = math.exp %133 : vector<8x256xf32>
    %cst_56 = arith.constant 1.000000e+00 : f32
    %135 = vector.broadcast %cst_56 : f32 to vector<8x256xf32>
    %136 = arith.addf %135, %134 : vector<8x256xf32>
    %137 = arith.divf %135, %136 : vector<8x256xf32>
    %138 = vector.extract_strided_slice %137 {offsets = [0, 0], sizes = [8, 128], strides = [1, 1]} : vector<8x256xf32> to vector<8x128xf32>
    %139 = vector.extract_strided_slice %137 {offsets = [0, 128], sizes = [8, 128], strides = [1, 1]} : vector<8x256xf32> to vector<8x128xf32>
    %140 = vector.extract_strided_slice %129 {offsets = [0, 256], sizes = [8, 128], strides = [1, 1]} : vector<8x384xf32> to vector<8x128xf32>
    %141 = vector.extract_strided_slice %127 {offsets = [0, 256], sizes = [8, 128], strides = [1, 1]} : vector<8x384xf32> to vector<8x128xf32>
    %142 = vector.broadcast %10 : vector<1x128xf32> to vector<8x128xf32>
    %143 = arith.addf %141, %142 : vector<8x128xf32>
    %144 = arith.mulf %138, %143 : vector<8x128xf32>
    %145 = arith.addf %140, %144 : vector<8x128xf32>
    %146 = math.tanh %145 : vector<8x128xf32>
    %147 = arith.subf %121, %146 : vector<8x128xf32>
    %148 = arith.mulf %139, %147 : vector<8x128xf32>
    %149 = arith.addf %146, %148 : vector<8x128xf32>
    %c4_57 = arith.constant 4 : index
    %c0_58 = arith.constant 0 : index
    %c0_59 = arith.constant 0 : index
    %150 = vector.load %arg14[%c4_57, %c0_58, %c0_59] : memref<8x8x128xf32, #tpu.memory_space<vmem>>, vector<1x8x128xf32>
    %151 = vector.shape_cast %150 : vector<1x8x128xf32> to vector<8x128xf32>
    %152 = vector.shape_cast %149 : vector<8x128xf32> to vector<1x8x128xf32>
    tpu.vector_store %arg14[%c4_57, %c0_58, %c0_59], %152 {strides = array<i32>} : memref<8x8x128xf32, #tpu.memory_space<vmem>>, vector<1x8x128xf32>,
    %153 = arith.truncf %149 : vector<8x128xf32> to vector<8x128xbf16>
    %c0_60 = arith.constant 0 : index
    %c0_61 = arith.constant 0 : index
    %154 = vector.load %arg3[%c0_60, %c0_61] : memref<128x384xbf16, #tpu.memory_space<vmem>>, vector<128x384xbf16>
    %cst_62 = arith.constant dense<0.000000e+00> : vector<8x384xf32>
    %155 = tpu.matmul %153, %154, %cst_62 {dimension_numbers = #tpu.dot_dimension_numbers<[1], [0], [0], [1], [0, 0, 1, 1], [], []>} : vector<8x128xbf16>, vector<128x384xbf16>, vector<8x384xf32> -> vector<8x384xf32>
    %c5 = arith.constant 5 : index
    %c0_63 = arith.constant 0 : index
    %c0_64 = arith.constant 0 : index
    %156 = vector.load %arg13[%c5, %c0_63, %c0_64] : memref<8x8x384xf32, #tpu.memory_space<vmem>>, vector<1x8x384xf32>
    %157 = vector.shape_cast %156 : vector<1x8x384xf32> to vector<8x384xf32>
    %158 = vector.extract_strided_slice %157 {offsets = [0, 0], sizes = [8, 256], strides = [1, 1]} : vector<8x384xf32> to vector<8x256xf32>
    %159 = vector.extract_strided_slice %155 {offsets = [0, 0], sizes = [8, 256], strides = [1, 1]} : vector<8x384xf32> to vector<8x256xf32>
    %160 = arith.addf %158, %159 : vector<8x256xf32>
    %161 = arith.negf %160 : vector<8x256xf32>
    %162 = math.exp %161 : vector<8x256xf32>
    %cst_65 = arith.constant 1.000000e+00 : f32
    %163 = vector.broadcast %cst_65 : f32 to vector<8x256xf32>
    %164 = arith.addf %163, %162 : vector<8x256xf32>
    %165 = arith.divf %163, %164 : vector<8x256xf32>
    %166 = vector.extract_strided_slice %165 {offsets = [0, 0], sizes = [8, 128], strides = [1, 1]} : vector<8x256xf32> to vector<8x128xf32>
    %167 = vector.extract_strided_slice %165 {offsets = [0, 128], sizes = [8, 128], strides = [1, 1]} : vector<8x256xf32> to vector<8x128xf32>
    %168 = vector.extract_strided_slice %157 {offsets = [0, 256], sizes = [8, 128], strides = [1, 1]} : vector<8x384xf32> to vector<8x128xf32>
    %169 = vector.extract_strided_slice %155 {offsets = [0, 256], sizes = [8, 128], strides = [1, 1]} : vector<8x384xf32> to vector<8x128xf32>
    %170 = vector.broadcast %10 : vector<1x128xf32> to vector<8x128xf32>
    %171 = arith.addf %169, %170 : vector<8x128xf32>
    %172 = arith.mulf %166, %171 : vector<8x128xf32>
    %173 = arith.addf %168, %172 : vector<8x128xf32>
    %174 = math.tanh %173 : vector<8x128xf32>
    %175 = arith.subf %149, %174 : vector<8x128xf32>
    %176 = arith.mulf %167, %175 : vector<8x128xf32>
    %177 = arith.addf %174, %176 : vector<8x128xf32>
    %c5_66 = arith.constant 5 : index
    %c0_67 = arith.constant 0 : index
    %c0_68 = arith.constant 0 : index
    %178 = vector.load %arg14[%c5_66, %c0_67, %c0_68] : memref<8x8x128xf32, #tpu.memory_space<vmem>>, vector<1x8x128xf32>
    %179 = vector.shape_cast %178 : vector<1x8x128xf32> to vector<8x128xf32>
    %180 = vector.shape_cast %177 : vector<8x128xf32> to vector<1x8x128xf32>
    tpu.vector_store %arg14[%c5_66, %c0_67, %c0_68], %180 {strides = array<i32>} : memref<8x8x128xf32, #tpu.memory_space<vmem>>, vector<1x8x128xf32>,
    %181 = arith.truncf %177 : vector<8x128xf32> to vector<8x128xbf16>
    %c0_69 = arith.constant 0 : index
    %c0_70 = arith.constant 0 : index
    %182 = vector.load %arg3[%c0_69, %c0_70] : memref<128x384xbf16, #tpu.memory_space<vmem>>, vector<128x384xbf16>
    %cst_71 = arith.constant dense<0.000000e+00> : vector<8x384xf32>
    %183 = tpu.matmul %181, %182, %cst_71 {dimension_numbers = #tpu.dot_dimension_numbers<[1], [0], [0], [1], [0, 0, 1, 1], [], []>} : vector<8x128xbf16>, vector<128x384xbf16>, vector<8x384xf32> -> vector<8x384xf32>
    %c6 = arith.constant 6 : index
    %c0_72 = arith.constant 0 : index
    %c0_73 = arith.constant 0 : index
    %184 = vector.load %arg13[%c6, %c0_72, %c0_73] : memref<8x8x384xf32, #tpu.memory_space<vmem>>, vector<1x8x384xf32>
    %185 = vector.shape_cast %184 : vector<1x8x384xf32> to vector<8x384xf32>
    %186 = vector.extract_strided_slice %185 {offsets = [0, 0], sizes = [8, 256], strides = [1, 1]} : vector<8x384xf32> to vector<8x256xf32>
    %187 = vector.extract_strided_slice %183 {offsets = [0, 0], sizes = [8, 256], strides = [1, 1]} : vector<8x384xf32> to vector<8x256xf32>
    %188 = arith.addf %186, %187 : vector<8x256xf32>
    %189 = arith.negf %188 : vector<8x256xf32>
    %190 = math.exp %189 : vector<8x256xf32>
    %cst_74 = arith.constant 1.000000e+00 : f32
    %191 = vector.broadcast %cst_74 : f32 to vector<8x256xf32>
    %192 = arith.addf %191, %190 : vector<8x256xf32>
    %193 = arith.divf %191, %192 : vector<8x256xf32>
    %194 = vector.extract_strided_slice %193 {offsets = [0, 0], sizes = [8, 128], strides = [1, 1]} : vector<8x256xf32> to vector<8x128xf32>
    %195 = vector.extract_strided_slice %193 {offsets = [0, 128], sizes = [8, 128], strides = [1, 1]} : vector<8x256xf32> to vector<8x128xf32>
    %196 = vector.extract_strided_slice %185 {offsets = [0, 256], sizes = [8, 128], strides = [1, 1]} : vector<8x384xf32> to vector<8x128xf32>
    %197 = vector.extract_strided_slice %183 {offsets = [0, 256], sizes = [8, 128], strides = [1, 1]} : vector<8x384xf32> to vector<8x128xf32>
    %198 = vector.broadcast %10 : vector<1x128xf32> to vector<8x128xf32>
    %199 = arith.addf %197, %198 : vector<8x128xf32>
    %200 = arith.mulf %194, %199 : vector<8x128xf32>
    %201 = arith.addf %196, %200 : vector<8x128xf32>
    %202 = math.tanh %201 : vector<8x128xf32>
    %203 = arith.subf %177, %202 : vector<8x128xf32>
    %204 = arith.mulf %195, %203 : vector<8x128xf32>
    %205 = arith.addf %202, %204 : vector<8x128xf32>
    %c6_75 = arith.constant 6 : index
    %c0_76 = arith.constant 0 : index
    %c0_77 = arith.constant 0 : index
    %206 = vector.load %arg14[%c6_75, %c0_76, %c0_77] : memref<8x8x128xf32, #tpu.memory_space<vmem>>, vector<1x8x128xf32>
    %207 = vector.shape_cast %206 : vector<1x8x128xf32> to vector<8x128xf32>
    %208 = vector.shape_cast %205 : vector<8x128xf32> to vector<1x8x128xf32>
    tpu.vector_store %arg14[%c6_75, %c0_76, %c0_77], %208 {strides = array<i32>} : memref<8x8x128xf32, #tpu.memory_space<vmem>>, vector<1x8x128xf32>,
    %209 = arith.truncf %205 : vector<8x128xf32> to vector<8x128xbf16>
    %c0_78 = arith.constant 0 : index
    %c0_79 = arith.constant 0 : index
    %210 = vector.load %arg3[%c0_78, %c0_79] : memref<128x384xbf16, #tpu.memory_space<vmem>>, vector<128x384xbf16>
    %cst_80 = arith.constant dense<0.000000e+00> : vector<8x384xf32>
    %211 = tpu.matmul %209, %210, %cst_80 {dimension_numbers = #tpu.dot_dimension_numbers<[1], [0], [0], [1], [0, 0, 1, 1], [], []>} : vector<8x128xbf16>, vector<128x384xbf16>, vector<8x384xf32> -> vector<8x384xf32>
    %c7 = arith.constant 7 : index
    %c0_81 = arith.constant 0 : index
    %c0_82 = arith.constant 0 : index
    %212 = vector.load %arg13[%c7, %c0_81, %c0_82] : memref<8x8x384xf32, #tpu.memory_space<vmem>>, vector<1x8x384xf32>
    %213 = vector.shape_cast %212 : vector<1x8x384xf32> to vector<8x384xf32>
    %214 = vector.extract_strided_slice %213 {offsets = [0, 0], sizes = [8, 256], strides = [1, 1]} : vector<8x384xf32> to vector<8x256xf32>
    %215 = vector.extract_strided_slice %211 {offsets = [0, 0], sizes = [8, 256], strides = [1, 1]} : vector<8x384xf32> to vector<8x256xf32>
    %216 = arith.addf %214, %215 : vector<8x256xf32>
    %217 = arith.negf %216 : vector<8x256xf32>
    %218 = math.exp %217 : vector<8x256xf32>
    %cst_83 = arith.constant 1.000000e+00 : f32
    %219 = vector.broadcast %cst_83 : f32 to vector<8x256xf32>
    %220 = arith.addf %219, %218 : vector<8x256xf32>
    %221 = arith.divf %219, %220 : vector<8x256xf32>
    %222 = vector.extract_strided_slice %221 {offsets = [0, 0], sizes = [8, 128], strides = [1, 1]} : vector<8x256xf32> to vector<8x128xf32>
    %223 = vector.extract_strided_slice %221 {offsets = [0, 128], sizes = [8, 128], strides = [1, 1]} : vector<8x256xf32> to vector<8x128xf32>
    %224 = vector.extract_strided_slice %213 {offsets = [0, 256], sizes = [8, 128], strides = [1, 1]} : vector<8x384xf32> to vector<8x128xf32>
    %225 = vector.extract_strided_slice %211 {offsets = [0, 256], sizes = [8, 128], strides = [1, 1]} : vector<8x384xf32> to vector<8x128xf32>
    %226 = vector.broadcast %10 : vector<1x128xf32> to vector<8x128xf32>
    %227 = arith.addf %225, %226 : vector<8x128xf32>
    %228 = arith.mulf %222, %227 : vector<8x128xf32>
    %229 = arith.addf %224, %228 : vector<8x128xf32>
    %230 = math.tanh %229 : vector<8x128xf32>
    %231 = arith.subf %205, %230 : vector<8x128xf32>
    %232 = arith.mulf %223, %231 : vector<8x128xf32>
    %233 = arith.addf %230, %232 : vector<8x128xf32>
    %c7_84 = arith.constant 7 : index
    %c0_85 = arith.constant 0 : index
    %c0_86 = arith.constant 0 : index
    %234 = vector.load %arg14[%c7_84, %c0_85, %c0_86] : memref<8x8x128xf32, #tpu.memory_space<vmem>>, vector<1x8x128xf32>
    %235 = vector.shape_cast %234 : vector<1x8x128xf32> to vector<8x128xf32>
    %236 = vector.shape_cast %233 : vector<8x128xf32> to vector<1x8x128xf32>
    tpu.vector_store %arg14[%c7_84, %c0_85, %c0_86], %236 {strides = array<i32>} : memref<8x8x128xf32, #tpu.memory_space<vmem>>, vector<1x8x128xf32>,
    %c0_87 = arith.constant 0 : index
    %c0_88 = arith.constant 0 : index
    %c0_89 = arith.constant 0 : index
    %237 = vector.load %arg14[%c0_87, %c0_88, %c0_89] : memref<8x8x128xf32, #tpu.memory_space<vmem>>, vector<8x8x128xf32>
    %238 = vector.shape_cast %237 : vector<8x8x128xf32> to vector<64x128xf32>
    %239 = arith.truncf %238 : vector<64x128xf32> to vector<64x128xbf16>
    %c0_90 = arith.constant 0 : index
    %c0_91 = arith.constant 0 : index
    %240 = vector.load %arg6[%c0_90, %c0_91] : memref<128x384xbf16, #tpu.memory_space<vmem>>, vector<128x384xbf16>
    %cst_92 = arith.constant dense<0.000000e+00> : vector<64x384xf32>
    %241 = tpu.matmul %239, %240, %cst_92 {dimension_numbers = #tpu.dot_dimension_numbers<[1], [0], [0], [1], [0, 0, 1, 1], [], []>} : vector<64x128xbf16>, vector<128x384xbf16>, vector<64x384xf32> -> vector<64x384xf32>
    %c0_93 = arith.constant 0 : index
    %c0_94 = arith.constant 0 : index
    %242 = vector.load %arg8[%c0_93, %c0_94] : memref<1x384xf32, #tpu.memory_space<vmem>>, vector<1x384xf32>
    %243 = vector.broadcast %242 : vector<1x384xf32> to vector<64x384xf32>
    %244 = arith.addf %241, %243 : vector<64x384xf32>
    %245 = vector.shape_cast %244 : vector<64x384xf32> to vector<8x8x384xf32>
    %c0_95 = arith.constant 0 : index
    %c0_96 = arith.constant 0 : index
    %c0_97 = arith.constant 0 : index
    %246 = vector.load %arg15[%c0_95, %c0_96, %c0_97] : memref<8x8x384xf32, #tpu.memory_space<vmem>>, vector<8x8x384xf32>
    tpu.vector_store %arg15[%c0_95, %c0_96, %c0_97], %245 {strides = array<i32>} : memref<8x8x384xf32, #tpu.memory_space<vmem>>, vector<8x8x384xf32>,
    %cst_98 = arith.constant 0.000000e+00 : f32
    %247 = vector.broadcast %cst_98 : f32 to vector<8x128xf32>
    %248 = arith.truncf %247 : vector<8x128xf32> to vector<8x128xbf16>
    %c0_99 = arith.constant 0 : index
    %c0_100 = arith.constant 0 : index
    %249 = vector.load %arg7[%c0_99, %c0_100] : memref<128x384xbf16, #tpu.memory_space<vmem>>, vector<128x384xbf16>
    %cst_101 = arith.constant dense<0.000000e+00> : vector<8x384xf32>
    %250 = tpu.matmul %248, %249, %cst_101 {dimension_numbers = #tpu.dot_dimension_numbers<[1], [0], [0], [1], [0, 0, 1, 1], [], []>} : vector<8x128xbf16>, vector<128x384xbf16>, vector<8x384xf32> -> vector<8x384xf32>
    %c0_102 = arith.constant 0 : index
    %c0_103 = arith.constant 0 : index
    %c0_104 = arith.constant 0 : index
    %251 = vector.load %arg15[%c0_102, %c0_103, %c0_104] : memref<8x8x384xf32, #tpu.memory_space<vmem>>, vector<1x8x384xf32>
    %252 = vector.shape_cast %251 : vector<1x8x384xf32> to vector<8x384xf32>
    %253 = vector.extract_strided_slice %252 {offsets = [0, 0], sizes = [8, 256], strides = [1, 1]} : vector<8x384xf32> to vector<8x256xf32>
    %254 = vector.extract_strided_slice %250 {offsets = [0, 0], sizes = [8, 256], strides = [1, 1]} : vector<8x384xf32> to vector<8x256xf32>
    %255 = arith.addf %253, %254 : vector<8x256xf32>
    %256 = arith.negf %255 : vector<8x256xf32>
    %257 = math.exp %256 : vector<8x256xf32>
    %cst_105 = arith.constant 1.000000e+00 : f32
    %258 = vector.broadcast %cst_105 : f32 to vector<8x256xf32>
    %259 = arith.addf %258, %257 : vector<8x256xf32>
    %260 = arith.divf %258, %259 : vector<8x256xf32>
    %261 = vector.extract_strided_slice %260 {offsets = [0, 0], sizes = [8, 128], strides = [1, 1]} : vector<8x256xf32> to vector<8x128xf32>
    %262 = vector.extract_strided_slice %260 {offsets = [0, 128], sizes = [8, 128], strides = [1, 1]} : vector<8x256xf32> to vector<8x128xf32>
    %263 = vector.extract_strided_slice %252 {offsets = [0, 256], sizes = [8, 128], strides = [1, 1]} : vector<8x384xf32> to vector<8x128xf32>
    %264 = vector.extract_strided_slice %250 {offsets = [0, 256], sizes = [8, 128], strides = [1, 1]} : vector<8x384xf32> to vector<8x128xf32>
    %265 = vector.broadcast %11 : vector<1x128xf32> to vector<8x128xf32>
    %266 = arith.addf %264, %265 : vector<8x128xf32>
    %267 = arith.mulf %261, %266 : vector<8x128xf32>
    %268 = arith.addf %263, %267 : vector<8x128xf32>
    %269 = math.tanh %268 : vector<8x128xf32>
    %270 = arith.subf %247, %269 : vector<8x128xf32>
    %271 = arith.mulf %262, %270 : vector<8x128xf32>
    %272 = arith.addf %269, %271 : vector<8x128xf32>
    %273 = arith.truncf %272 : vector<8x128xf32> to vector<8x128xbf16>
    %c0_106 = arith.constant 0 : index
    %c0_107 = arith.constant 0 : index
    %274 = vector.load %arg7[%c0_106, %c0_107] : memref<128x384xbf16, #tpu.memory_space<vmem>>, vector<128x384xbf16>
    %cst_108 = arith.constant dense<0.000000e+00> : vector<8x384xf32>
    %275 = tpu.matmul %273, %274, %cst_108 {dimension_numbers = #tpu.dot_dimension_numbers<[1], [0], [0], [1], [0, 0, 1, 1], [], []>} : vector<8x128xbf16>, vector<128x384xbf16>, vector<8x384xf32> -> vector<8x384xf32>
    %c1_109 = arith.constant 1 : index
    %c0_110 = arith.constant 0 : index
    %c0_111 = arith.constant 0 : index
    %276 = vector.load %arg15[%c1_109, %c0_110, %c0_111] : memref<8x8x384xf32, #tpu.memory_space<vmem>>, vector<1x8x384xf32>
    %277 = vector.shape_cast %276 : vector<1x8x384xf32> to vector<8x384xf32>
    %278 = vector.extract_strided_slice %277 {offsets = [0, 0], sizes = [8, 256], strides = [1, 1]} : vector<8x384xf32> to vector<8x256xf32>
    %279 = vector.extract_strided_slice %275 {offsets = [0, 0], sizes = [8, 256], strides = [1, 1]} : vector<8x384xf32> to vector<8x256xf32>
    %280 = arith.addf %278, %279 : vector<8x256xf32>
    %281 = arith.negf %280 : vector<8x256xf32>
    %282 = math.exp %281 : vector<8x256xf32>
    %cst_112 = arith.constant 1.000000e+00 : f32
    %283 = vector.broadcast %cst_112 : f32 to vector<8x256xf32>
    %284 = arith.addf %283, %282 : vector<8x256xf32>
    %285 = arith.divf %283, %284 : vector<8x256xf32>
    %286 = vector.extract_strided_slice %285 {offsets = [0, 0], sizes = [8, 128], strides = [1, 1]} : vector<8x256xf32> to vector<8x128xf32>
    %287 = vector.extract_strided_slice %285 {offsets = [0, 128], sizes = [8, 128], strides = [1, 1]} : vector<8x256xf32> to vector<8x128xf32>
    %288 = vector.extract_strided_slice %277 {offsets = [0, 256], sizes = [8, 128], strides = [1, 1]} : vector<8x384xf32> to vector<8x128xf32>
    %289 = vector.extract_strided_slice %275 {offsets = [0, 256], sizes = [8, 128], strides = [1, 1]} : vector<8x384xf32> to vector<8x128xf32>
    %290 = vector.broadcast %11 : vector<1x128xf32> to vector<8x128xf32>
    %291 = arith.addf %289, %290 : vector<8x128xf32>
    %292 = arith.mulf %286, %291 : vector<8x128xf32>
    %293 = arith.addf %288, %292 : vector<8x128xf32>
    %294 = math.tanh %293 : vector<8x128xf32>
    %295 = arith.subf %272, %294 : vector<8x128xf32>
    %296 = arith.mulf %287, %295 : vector<8x128xf32>
    %297 = arith.addf %294, %296 : vector<8x128xf32>
    %298 = arith.truncf %297 : vector<8x128xf32> to vector<8x128xbf16>
    %c0_113 = arith.constant 0 : index
    %c0_114 = arith.constant 0 : index
    %299 = vector.load %arg7[%c0_113, %c0_114] : memref<128x384xbf16, #tpu.memory_space<vmem>>, vector<128x384xbf16>
    %cst_115 = arith.constant dense<0.000000e+00> : vector<8x384xf32>
    %300 = tpu.matmul %298, %299, %cst_115 {dimension_numbers = #tpu.dot_dimension_numbers<[1], [0], [0], [1], [0, 0, 1, 1], [], []>} : vector<8x128xbf16>, vector<128x384xbf16>, vector<8x384xf32> -> vector<8x384xf32>
    %c2_116 = arith.constant 2 : index
    %c0_117 = arith.constant 0 : index
    %c0_118 = arith.constant 0 : index
    %301 = vector.load %arg15[%c2_116, %c0_117, %c0_118] : memref<8x8x384xf32, #tpu.memory_space<vmem>>, vector<1x8x384xf32>
    %302 = vector.shape_cast %301 : vector<1x8x384xf32> to vector<8x384xf32>
    %303 = vector.extract_strided_slice %302 {offsets = [0, 0], sizes = [8, 256], strides = [1, 1]} : vector<8x384xf32> to vector<8x256xf32>
    %304 = vector.extract_strided_slice %300 {offsets = [0, 0], sizes = [8, 256], strides = [1, 1]} : vector<8x384xf32> to vector<8x256xf32>
    %305 = arith.addf %303, %304 : vector<8x256xf32>
    %306 = arith.negf %305 : vector<8x256xf32>
    %307 = math.exp %306 : vector<8x256xf32>
    %cst_119 = arith.constant 1.000000e+00 : f32
    %308 = vector.broadcast %cst_119 : f32 to vector<8x256xf32>
    %309 = arith.addf %308, %307 : vector<8x256xf32>
    %310 = arith.divf %308, %309 : vector<8x256xf32>
    %311 = vector.extract_strided_slice %310 {offsets = [0, 0], sizes = [8, 128], strides = [1, 1]} : vector<8x256xf32> to vector<8x128xf32>
    %312 = vector.extract_strided_slice %310 {offsets = [0, 128], sizes = [8, 128], strides = [1, 1]} : vector<8x256xf32> to vector<8x128xf32>
    %313 = vector.extract_strided_slice %302 {offsets = [0, 256], sizes = [8, 128], strides = [1, 1]} : vector<8x384xf32> to vector<8x128xf32>
    %314 = vector.extract_strided_slice %300 {offsets = [0, 256], sizes = [8, 128], strides = [1, 1]} : vector<8x384xf32> to vector<8x128xf32>
    %315 = vector.broadcast %11 : vector<1x128xf32> to vector<8x128xf32>
    %316 = arith.addf %314, %315 : vector<8x128xf32>
    %317 = arith.mulf %311, %316 : vector<8x128xf32>
    %318 = arith.addf %313, %317 : vector<8x128xf32>
    %319 = math.tanh %318 : vector<8x128xf32>
    %320 = arith.subf %297, %319 : vector<8x128xf32>
    %321 = arith.mulf %312, %320 : vector<8x128xf32>
    %322 = arith.addf %319, %321 : vector<8x128xf32>
    %323 = arith.truncf %322 : vector<8x128xf32> to vector<8x128xbf16>
    %c0_120 = arith.constant 0 : index
    %c0_121 = arith.constant 0 : index
    %324 = vector.load %arg7[%c0_120, %c0_121] : memref<128x384xbf16, #tpu.memory_space<vmem>>, vector<128x384xbf16>
    %cst_122 = arith.constant dense<0.000000e+00> : vector<8x384xf32>
    %325 = tpu.matmul %323, %324, %cst_122 {dimension_numbers = #tpu.dot_dimension_numbers<[1], [0], [0], [1], [0, 0, 1, 1], [], []>} : vector<8x128xbf16>, vector<128x384xbf16>, vector<8x384xf32> -> vector<8x384xf32>
    %c3_123 = arith.constant 3 : index
    %c0_124 = arith.constant 0 : index
    %c0_125 = arith.constant 0 : index
    %326 = vector.load %arg15[%c3_123, %c0_124, %c0_125] : memref<8x8x384xf32, #tpu.memory_space<vmem>>, vector<1x8x384xf32>
    %327 = vector.shape_cast %326 : vector<1x8x384xf32> to vector<8x384xf32>
    %328 = vector.extract_strided_slice %327 {offsets = [0, 0], sizes = [8, 256], strides = [1, 1]} : vector<8x384xf32> to vector<8x256xf32>
    %329 = vector.extract_strided_slice %325 {offsets = [0, 0], sizes = [8, 256], strides = [1, 1]} : vector<8x384xf32> to vector<8x256xf32>
    %330 = arith.addf %328, %329 : vector<8x256xf32>
    %331 = arith.negf %330 : vector<8x256xf32>
    %332 = math.exp %331 : vector<8x256xf32>
    %cst_126 = arith.constant 1.000000e+00 : f32
    %333 = vector.broadcast %cst_126 : f32 to vector<8x256xf32>
    %334 = arith.addf %333, %332 : vector<8x256xf32>
    %335 = arith.divf %333, %334 : vector<8x256xf32>
    %336 = vector.extract_strided_slice %335 {offsets = [0, 0], sizes = [8, 128], strides = [1, 1]} : vector<8x256xf32> to vector<8x128xf32>
    %337 = vector.extract_strided_slice %335 {offsets = [0, 128], sizes = [8, 128], strides = [1, 1]} : vector<8x256xf32> to vector<8x128xf32>
    %338 = vector.extract_strided_slice %327 {offsets = [0, 256], sizes = [8, 128], strides = [1, 1]} : vector<8x384xf32> to vector<8x128xf32>
    %339 = vector.extract_strided_slice %325 {offsets = [0, 256], sizes = [8, 128], strides = [1, 1]} : vector<8x384xf32> to vector<8x128xf32>
    %340 = vector.broadcast %11 : vector<1x128xf32> to vector<8x128xf32>
    %341 = arith.addf %339, %340 : vector<8x128xf32>
    %342 = arith.mulf %336, %341 : vector<8x128xf32>
    %343 = arith.addf %338, %342 : vector<8x128xf32>
    %344 = math.tanh %343 : vector<8x128xf32>
    %345 = arith.subf %322, %344 : vector<8x128xf32>
    %346 = arith.mulf %337, %345 : vector<8x128xf32>
    %347 = arith.addf %344, %346 : vector<8x128xf32>
    %348 = arith.truncf %347 : vector<8x128xf32> to vector<8x128xbf16>
    %c0_127 = arith.constant 0 : index
    %c0_128 = arith.constant 0 : index
    %349 = vector.load %arg7[%c0_127, %c0_128] : memref<128x384xbf16, #tpu.memory_space<vmem>>, vector<128x384xbf16>
    %cst_129 = arith.constant dense<0.000000e+00> : vector<8x384xf32>
    %350 = tpu.matmul %348, %349, %cst_129 {dimension_numbers = #tpu.dot_dimension_numbers<[1], [0], [0], [1], [0, 0, 1, 1], [], []>} : vector<8x128xbf16>, vector<128x384xbf16>, vector<8x384xf32> -> vector<8x384xf32>
    %c4_130 = arith.constant 4 : index
    %c0_131 = arith.constant 0 : index
    %c0_132 = arith.constant 0 : index
    %351 = vector.load %arg15[%c4_130, %c0_131, %c0_132] : memref<8x8x384xf32, #tpu.memory_space<vmem>>, vector<1x8x384xf32>
    %352 = vector.shape_cast %351 : vector<1x8x384xf32> to vector<8x384xf32>
    %353 = vector.extract_strided_slice %352 {offsets = [0, 0], sizes = [8, 256], strides = [1, 1]} : vector<8x384xf32> to vector<8x256xf32>
    %354 = vector.extract_strided_slice %350 {offsets = [0, 0], sizes = [8, 256], strides = [1, 1]} : vector<8x384xf32> to vector<8x256xf32>
    %355 = arith.addf %353, %354 : vector<8x256xf32>
    %356 = arith.negf %355 : vector<8x256xf32>
    %357 = math.exp %356 : vector<8x256xf32>
    %cst_133 = arith.constant 1.000000e+00 : f32
    %358 = vector.broadcast %cst_133 : f32 to vector<8x256xf32>
    %359 = arith.addf %358, %357 : vector<8x256xf32>
    %360 = arith.divf %358, %359 : vector<8x256xf32>
    %361 = vector.extract_strided_slice %360 {offsets = [0, 0], sizes = [8, 128], strides = [1, 1]} : vector<8x256xf32> to vector<8x128xf32>
    %362 = vector.extract_strided_slice %360 {offsets = [0, 128], sizes = [8, 128], strides = [1, 1]} : vector<8x256xf32> to vector<8x128xf32>
    %363 = vector.extract_strided_slice %352 {offsets = [0, 256], sizes = [8, 128], strides = [1, 1]} : vector<8x384xf32> to vector<8x128xf32>
    %364 = vector.extract_strided_slice %350 {offsets = [0, 256], sizes = [8, 128], strides = [1, 1]} : vector<8x384xf32> to vector<8x128xf32>
    %365 = vector.broadcast %11 : vector<1x128xf32> to vector<8x128xf32>
    %366 = arith.addf %364, %365 : vector<8x128xf32>
    %367 = arith.mulf %361, %366 : vector<8x128xf32>
    %368 = arith.addf %363, %367 : vector<8x128xf32>
    %369 = math.tanh %368 : vector<8x128xf32>
    %370 = arith.subf %347, %369 : vector<8x128xf32>
    %371 = arith.mulf %362, %370 : vector<8x128xf32>
    %372 = arith.addf %369, %371 : vector<8x128xf32>
    %373 = arith.truncf %372 : vector<8x128xf32> to vector<8x128xbf16>
    %c0_134 = arith.constant 0 : index
    %c0_135 = arith.constant 0 : index
    %374 = vector.load %arg7[%c0_134, %c0_135] : memref<128x384xbf16, #tpu.memory_space<vmem>>, vector<128x384xbf16>
    %cst_136 = arith.constant dense<0.000000e+00> : vector<8x384xf32>
    %375 = tpu.matmul %373, %374, %cst_136 {dimension_numbers = #tpu.dot_dimension_numbers<[1], [0], [0], [1], [0, 0, 1, 1], [], []>} : vector<8x128xbf16>, vector<128x384xbf16>, vector<8x384xf32> -> vector<8x384xf32>
    %c5_137 = arith.constant 5 : index
    %c0_138 = arith.constant 0 : index
    %c0_139 = arith.constant 0 : index
    %376 = vector.load %arg15[%c5_137, %c0_138, %c0_139] : memref<8x8x384xf32, #tpu.memory_space<vmem>>, vector<1x8x384xf32>
    %377 = vector.shape_cast %376 : vector<1x8x384xf32> to vector<8x384xf32>
    %378 = vector.extract_strided_slice %377 {offsets = [0, 0], sizes = [8, 256], strides = [1, 1]} : vector<8x384xf32> to vector<8x256xf32>
    %379 = vector.extract_strided_slice %375 {offsets = [0, 0], sizes = [8, 256], strides = [1, 1]} : vector<8x384xf32> to vector<8x256xf32>
    %380 = arith.addf %378, %379 : vector<8x256xf32>
    %381 = arith.negf %380 : vector<8x256xf32>
    %382 = math.exp %381 : vector<8x256xf32>
    %cst_140 = arith.constant 1.000000e+00 : f32
    %383 = vector.broadcast %cst_140 : f32 to vector<8x256xf32>
    %384 = arith.addf %383, %382 : vector<8x256xf32>
    %385 = arith.divf %383, %384 : vector<8x256xf32>
    %386 = vector.extract_strided_slice %385 {offsets = [0, 0], sizes = [8, 128], strides = [1, 1]} : vector<8x256xf32> to vector<8x128xf32>
    %387 = vector.extract_strided_slice %385 {offsets = [0, 128], sizes = [8, 128], strides = [1, 1]} : vector<8x256xf32> to vector<8x128xf32>
    %388 = vector.extract_strided_slice %377 {offsets = [0, 256], sizes = [8, 128], strides = [1, 1]} : vector<8x384xf32> to vector<8x128xf32>
    %389 = vector.extract_strided_slice %375 {offsets = [0, 256], sizes = [8, 128], strides = [1, 1]} : vector<8x384xf32> to vector<8x128xf32>
    %390 = vector.broadcast %11 : vector<1x128xf32> to vector<8x128xf32>
    %391 = arith.addf %389, %390 : vector<8x128xf32>
    %392 = arith.mulf %386, %391 : vector<8x128xf32>
    %393 = arith.addf %388, %392 : vector<8x128xf32>
    %394 = math.tanh %393 : vector<8x128xf32>
    %395 = arith.subf %372, %394 : vector<8x128xf32>
    %396 = arith.mulf %387, %395 : vector<8x128xf32>
    %397 = arith.addf %394, %396 : vector<8x128xf32>
    %398 = arith.truncf %397 : vector<8x128xf32> to vector<8x128xbf16>
    %c0_141 = arith.constant 0 : index
    %c0_142 = arith.constant 0 : index
    %399 = vector.load %arg7[%c0_141, %c0_142] : memref<128x384xbf16, #tpu.memory_space<vmem>>, vector<128x384xbf16>
    %cst_143 = arith.constant dense<0.000000e+00> : vector<8x384xf32>
    %400 = tpu.matmul %398, %399, %cst_143 {dimension_numbers = #tpu.dot_dimension_numbers<[1], [0], [0], [1], [0, 0, 1, 1], [], []>} : vector<8x128xbf16>, vector<128x384xbf16>, vector<8x384xf32> -> vector<8x384xf32>
    %c6_144 = arith.constant 6 : index
    %c0_145 = arith.constant 0 : index
    %c0_146 = arith.constant 0 : index
    %401 = vector.load %arg15[%c6_144, %c0_145, %c0_146] : memref<8x8x384xf32, #tpu.memory_space<vmem>>, vector<1x8x384xf32>
    %402 = vector.shape_cast %401 : vector<1x8x384xf32> to vector<8x384xf32>
    %403 = vector.extract_strided_slice %402 {offsets = [0, 0], sizes = [8, 256], strides = [1, 1]} : vector<8x384xf32> to vector<8x256xf32>
    %404 = vector.extract_strided_slice %400 {offsets = [0, 0], sizes = [8, 256], strides = [1, 1]} : vector<8x384xf32> to vector<8x256xf32>
    %405 = arith.addf %403, %404 : vector<8x256xf32>
    %406 = arith.negf %405 : vector<8x256xf32>
    %407 = math.exp %406 : vector<8x256xf32>
    %cst_147 = arith.constant 1.000000e+00 : f32
    %408 = vector.broadcast %cst_147 : f32 to vector<8x256xf32>
    %409 = arith.addf %408, %407 : vector<8x256xf32>
    %410 = arith.divf %408, %409 : vector<8x256xf32>
    %411 = vector.extract_strided_slice %410 {offsets = [0, 0], sizes = [8, 128], strides = [1, 1]} : vector<8x256xf32> to vector<8x128xf32>
    %412 = vector.extract_strided_slice %410 {offsets = [0, 128], sizes = [8, 128], strides = [1, 1]} : vector<8x256xf32> to vector<8x128xf32>
    %413 = vector.extract_strided_slice %402 {offsets = [0, 256], sizes = [8, 128], strides = [1, 1]} : vector<8x384xf32> to vector<8x128xf32>
    %414 = vector.extract_strided_slice %400 {offsets = [0, 256], sizes = [8, 128], strides = [1, 1]} : vector<8x384xf32> to vector<8x128xf32>
    %415 = vector.broadcast %11 : vector<1x128xf32> to vector<8x128xf32>
    %416 = arith.addf %414, %415 : vector<8x128xf32>
    %417 = arith.mulf %411, %416 : vector<8x128xf32>
    %418 = arith.addf %413, %417 : vector<8x128xf32>
    %419 = math.tanh %418 : vector<8x128xf32>
    %420 = arith.subf %397, %419 : vector<8x128xf32>
    %421 = arith.mulf %412, %420 : vector<8x128xf32>
    %422 = arith.addf %419, %421 : vector<8x128xf32>
    %423 = arith.truncf %422 : vector<8x128xf32> to vector<8x128xbf16>
    %c0_148 = arith.constant 0 : index
    %c0_149 = arith.constant 0 : index
    %424 = vector.load %arg7[%c0_148, %c0_149] : memref<128x384xbf16, #tpu.memory_space<vmem>>, vector<128x384xbf16>
    %cst_150 = arith.constant dense<0.000000e+00> : vector<8x384xf32>
    %425 = tpu.matmul %423, %424, %cst_150 {dimension_numbers = #tpu.dot_dimension_numbers<[1], [0], [0], [1], [0, 0, 1, 1], [], []>} : vector<8x128xbf16>, vector<128x384xbf16>, vector<8x384xf32> -> vector<8x384xf32>
    %c7_151 = arith.constant 7 : index
    %c0_152 = arith.constant 0 : index
    %c0_153 = arith.constant 0 : index
    %426 = vector.load %arg15[%c7_151, %c0_152, %c0_153] : memref<8x8x384xf32, #tpu.memory_space<vmem>>, vector<1x8x384xf32>
    %427 = vector.shape_cast %426 : vector<1x8x384xf32> to vector<8x384xf32>
    %428 = vector.extract_strided_slice %427 {offsets = [0, 0], sizes = [8, 256], strides = [1, 1]} : vector<8x384xf32> to vector<8x256xf32>
    %429 = vector.extract_strided_slice %425 {offsets = [0, 0], sizes = [8, 256], strides = [1, 1]} : vector<8x384xf32> to vector<8x256xf32>
    %430 = arith.addf %428, %429 : vector<8x256xf32>
    %431 = arith.negf %430 : vector<8x256xf32>
    %432 = math.exp %431 : vector<8x256xf32>
    %cst_154 = arith.constant 1.000000e+00 : f32
    %433 = vector.broadcast %cst_154 : f32 to vector<8x256xf32>
    %434 = arith.addf %433, %432 : vector<8x256xf32>
    %435 = arith.divf %433, %434 : vector<8x256xf32>
    %436 = vector.extract_strided_slice %435 {offsets = [0, 0], sizes = [8, 128], strides = [1, 1]} : vector<8x256xf32> to vector<8x128xf32>
    %437 = vector.extract_strided_slice %435 {offsets = [0, 128], sizes = [8, 128], strides = [1, 1]} : vector<8x256xf32> to vector<8x128xf32>
    %438 = vector.extract_strided_slice %427 {offsets = [0, 256], sizes = [8, 128], strides = [1, 1]} : vector<8x384xf32> to vector<8x128xf32>
    %439 = vector.extract_strided_slice %425 {offsets = [0, 256], sizes = [8, 128], strides = [1, 1]} : vector<8x384xf32> to vector<8x128xf32>
    %440 = vector.broadcast %11 : vector<1x128xf32> to vector<8x128xf32>
    %441 = arith.addf %439, %440 : vector<8x128xf32>
    %442 = arith.mulf %436, %441 : vector<8x128xf32>
    %443 = arith.addf %438, %442 : vector<8x128xf32>
    %444 = math.tanh %443 : vector<8x128xf32>
    %445 = arith.subf %422, %444 : vector<8x128xf32>
    %446 = arith.mulf %437, %445 : vector<8x128xf32>
    %447 = arith.addf %444, %446 : vector<8x128xf32>
    %448 = arith.truncf %447 : vector<8x128xf32> to vector<8x128xbf16>
    %c0_155 = arith.constant 0 : index
    %c0_156 = arith.constant 0 : index
    %449 = vector.load %arg10[%c0_155, %c0_156] : memref<128x128xbf16, #tpu.memory_space<vmem>>, vector<128x128xbf16>
    %cst_157 = arith.constant dense<0.000000e+00> : vector<8x128xf32>
    %450 = tpu.matmul %448, %449, %cst_157 {dimension_numbers = #tpu.dot_dimension_numbers<[1], [0], [0], [1], [0, 0, 1, 1], [], []>} : vector<8x128xbf16>, vector<128x128xbf16>, vector<8x128xf32> -> vector<8x128xf32>
    %c0_158 = arith.constant 0 : index
    %c0_159 = arith.constant 0 : index
    %451 = vector.load %arg11[%c0_158, %c0_159] : memref<1x128xf32, #tpu.memory_space<vmem>>, vector<1x128xf32>
    %452 = vector.broadcast %451 : vector<1x128xf32> to vector<8x128xf32>
    %453 = arith.addf %450, %452 : vector<8x128xf32>
    %c0_160 = arith.constant 0 : index
    %c0_161 = arith.constant 0 : index
    %454 = vector.load %arg12[%c0_160, %c0_161] : memref<8x128xf32, #tpu.memory_space<vmem>>, vector<8x128xf32>
    tpu.vector_store %arg12[%c0_160, %c0_161], %453 {strides = array<i32>} : memref<8x128xf32, #tpu.memory_space<vmem>>, vector<8x128xf32>,
    return
  }
  func.func @transform_0(%arg0: i32) -> (i32, i32, i32) {
    %c0_i32 = arith.constant 0 : i32
    %c0_i32_0 = arith.constant 0 : i32
    %c0_i32_1 = arith.constant 0 : i32
    return %c0_i32, %arg0, %c0_i32_0 : i32, i32, i32
  }
  func.func @transform_1(%arg0: i32) -> (i32, i32) {
    %c0_i32 = arith.constant 0 : i32
    %c0_i32_0 = arith.constant 0 : i32
    %c0_i32_1 = arith.constant 0 : i32
    return %c0_i32, %c0_i32_0 : i32, i32
  }
  func.func @transform_2(%arg0: i32) -> (i32, i32) {
    %c0_i32 = arith.constant 0 : i32
    %c0_i32_0 = arith.constant 0 : i32
    %c0_i32_1 = arith.constant 0 : i32
    return %c0_i32, %c0_i32_0 : i32, i32
  }
  func.func @transform_3(%arg0: i32) -> (i32, i32) {
    %c0_i32 = arith.constant 0 : i32
    %c0_i32_0 = arith.constant 0 : i32
    %c0_i32_1 = arith.constant 0 : i32
    return %c0_i32, %c0_i32_0 : i32, i32
  }
  func.func @transform_4(%arg0: i32) -> (i32, i32) {
    %c0_i32 = arith.constant 0 : i32
    %c0_i32_0 = arith.constant 0 : i32
    %c0_i32_1 = arith.constant 0 : i32
    return %c0_i32, %c0_i32_0 : i32, i32
  }
  func.func @transform_5(%arg0: i32) -> (i32, i32) {
    %c0_i32 = arith.constant 0 : i32
    %c0_i32_0 = arith.constant 0 : i32
    %c0_i32_1 = arith.constant 0 : i32
    return %c0_i32, %c0_i32_0 : i32, i32
  }
  func.func @transform_6(%arg0: i32) -> (i32, i32) {
    %c0_i32 = arith.constant 0 : i32
    %c0_i32_0 = arith.constant 0 : i32
    %c0_i32_1 = arith.constant 0 : i32
    return %c0_i32, %c0_i32_0 : i32, i32
  }
  func.func @transform_7(%arg0: i32) -> (i32, i32) {
    %c0_i32 = arith.constant 0 : i32
    %c0_i32_0 = arith.constant 0 : i32
    %c0_i32_1 = arith.constant 0 : i32
    return %c0_i32, %c0_i32_0 : i32, i32
  }
  func.func @transform_8(%arg0: i32) -> (i32, i32) {
    %c0_i32 = arith.constant 0 : i32
    %c0_i32_0 = arith.constant 0 : i32
    %c0_i32_1 = arith.constant 0 : i32
    return %c0_i32, %c0_i32_0 : i32, i32
  }
  func.func @transform_9(%arg0: i32) -> (i32, i32) {
    %c0_i32 = arith.constant 0 : i32
    %c0_i32_0 = arith.constant 0 : i32
    %c0_i32_1 = arith.constant 0 : i32
    return %c0_i32, %c0_i32_0 : i32, i32
  }
  func.func @transform_10(%arg0: i32) -> (i32, i32) {
    %c0_i32 = arith.constant 0 : i32
    %c0_i32_0 = arith.constant 0 : i32
    %c0_i32_1 = arith.constant 0 : i32
    return %c0_i32, %c0_i32_0 : i32, i32
  }
  func.func @transform_11(%arg0: i32) -> (i32, i32) {
    %c0_i32 = arith.constant 0 : i32
    %c0_i32_0 = arith.constant 0 : i32
    return %arg0, %c0_i32 : i32, i32
  }
}

</mosaic_0001>

<llo_original>
// kernel: tpu_custom_call.1
$region0: #{tpu_custom_call.1}
  #allocation0 [shape = 'u32[]', space=smem, size = 0x4, offset = 0x4, fixed_abs, tag = 'smem constant byte address 0x4 - core index']
  #allocation1 [shape = 'u32[144,128]{1,0:T(1,128)}', space=vmem, size = 0x12000, scoped, tag = 'internal scratch']
  #allocation2 [shape = 'f32[8,8,384]{2,1,0:T(8,128)}', space=vmem, size = 0x18000, scoped, tag = 'scratch operand']
  #allocation3 [shape = 'f32[8,8,128]{2,1,0:T(8,128)}', space=vmem, size = 0x8000, scoped, tag = 'scratch operand']
  #allocation4 [shape = 'f32[8,8,384]{2,1,0:T(8,128)}', space=vmem, size = 0x18000, scoped, tag = 'scratch operand']
  %s0 = inlined_call_operand.hbm [shape: f32[8,8,32], index: 0, kind: input, shape index: {}]
  %s1 = inlined_call_operand.hbm [shape: bf16[32,384], index: 1, kind: input, shape index: {}]
  %s2 = inlined_call_operand.hbm [shape: bf16[128,384], index: 2, kind: input, shape index: {}]
  %s3 = inlined_call_operand.vmem [shape: f32[1,384], index: 3, kind: input, shape index: {}]
  %s4 = inlined_call_operand.vmem [shape: f32[1,128], index: 4, kind: input, shape index: {}]
  %s5 = inlined_call_operand.hbm [shape: bf16[128,384], index: 5, kind: input, shape index: {}]
  %s6 = inlined_call_operand.hbm [shape: bf16[128,384], index: 6, kind: input, shape index: {}]
  %s7 = inlined_call_operand.vmem [shape: f32[1,384], index: 7, kind: input, shape index: {}]
  %s8 = inlined_call_operand.vmem [shape: f32[1,128], index: 8, kind: input, shape index: {}]
  %s9 = inlined_call_operand.hbm [shape: bf16[128,128], index: 9, kind: input, shape index: {}]
  %s10 = inlined_call_operand.vmem [shape: f32[1,128], index: 10, kind: input, shape index: {}]
  %s11 = inlined_call_operand.hbm [shape: f32[8,128], index: 11, kind: output, shape index: {}]
  %s12 = sld [smem:[#allocation0]]
  $region78: #{tpu_custom_call.1} parent=0
    _
  %s14 = ssub.s32 1, %s12
  %s15 = scalar_select 0, %s14, %s12
  $region1: #{tpu_custom_call.1} parent=0
    #allocation5 [shape = 'u8[32768]{0}', space=vmem, size = 0x8000, scoped, tag = 'input window, operand 0, single buffered']
    #allocation6 [shape = 's32[1]{0}', space=sflag, size = 0x4, scoped, tag = 'scoped memory for tpu_custom_call.1']
    #allocation7 [shape = 's32[1]{0}', space=sflag, size = 0x4, scoped, tag = 'scoped memory for tpu_custom_call.1']
    #allocation8 [shape = 'u8[24576]{0}', space=vmem, size = 0x6000, scoped, tag = 'input window, operand 1, single buffered']
    #allocation9 [shape = 's32[1]{0}', space=sflag, size = 0x4, scoped, tag = 'scoped memory for tpu_custom_call.1']
    #allocation10 [shape = 'u8[98304]{0}', space=vmem, size = 0x18000, scoped, tag = 'input window, operand 2, single buffered']
    #allocation11 [shape = 'u8[98304]{0}', space=vmem, size = 0x18000, scoped, tag = 'input window, operand 5, single buffered']
    #allocation12 [shape = 's32[1]{0}', space=sflag, size = 0x4, scoped, tag = 'scoped memory for tpu_custom_call.1']
    #allocation13 [shape = 'u8[98304]{0}', space=vmem, size = 0x18000, scoped, tag = 'input window, operand 6, single buffered']
    #allocation14 [shape = 'u8[32768]{0}', space=vmem, size = 0x8000, scoped, tag = 'input window, operand 9, single buffered']
    #allocation15 [shape = 's32[1]{0}', space=sflag, size = 0x4, scoped, tag = 'scoped memory for tpu_custom_call.1']
    #allocation16 [shape = 'u8[4096]{0}', space=vmem, size = 0x1000, scoped, tag = 'output window, operand 0, single buffered']
    %16 = vsyncpa [#allocation6], 0
    %17 = vsyncpa [#allocation9], 0
    %18 = vsyncpa [#allocation12], 0
    %19 = vsyncpa [#allocation15], 0
    %20 = vsyncpa [#allocation7], 0
    // Predicated region
    $region2: #{tpu_custom_call.1} parent=1 // pred_check
      _
    $region3: #{tpu_custom_call.1} parent=1 // pred_check_branch
      %22 = sbr.rel (0) target = $region5
    $region4: #{tpu_custom_call.1} parent=1 // pred_region
      %s24 = ssub.s32 1024, 1024
      %25 = vsyncadd [#allocation6], %s24
      %s26 = sshll.u32 [#allocation5], 4
      %s27 = int_to_ptr.vmem [resolvable:$true] %s26
      %32 = dma.hbm_to_vmem [thread:$0]  %s0, 1024, %s27, [#allocation6], 128, 128, 8
    $region5: #{tpu_custom_call.1} parent=1 // pred_fallthru
      _
    // Predicated region
    $region6: #{tpu_custom_call.1} parent=1 // pred_check
      _
    $region7: #{tpu_custom_call.1} parent=1 // pred_check_branch
      %34 = sbr.rel (0) target = $region9
    $region8: #{tpu_custom_call.1} parent=1 // pred_region
      %s36 = ssub.s32 768, 768
      %37 = vsyncadd [#allocation9], %s36
      %s38 = sshll.u32 [#allocation8], 4
      %s39 = int_to_ptr.vmem [resolvable:$true] %s38
      %44 = dma.hbm_to_vmem [thread:$0]  %s1, 768, %s39, [#allocation9], 192, 192, 12
    $region9: #{tpu_custom_call.1} parent=1 // pred_fallthru
      _
    // Predicated region
    $region10: #{tpu_custom_call.1} parent=1 // pred_check
      _
    $region11: #{tpu_custom_call.1} parent=1 // pred_check_branch
      %46 = sbr.rel (0) target = $region13
    $region12: #{tpu_custom_call.1} parent=1 // pred_region
      %s48 = ssub.s32 3072, 3072
      %49 = vsyncadd [#allocation9], %s48
      %s50 = sshll.u32 [#allocation10], 4
      %s51 = int_to_ptr.vmem [resolvable:$true] %s50
      %56 = dma.hbm_to_vmem [thread:$0]  %s2, 3072, %s51, [#allocation9], 192, 192, 12
    $region13: #{tpu_custom_call.1} parent=1 // pred_fallthru
      _
    // Predicated region
    $region14: #{tpu_custom_call.1} parent=1 // pred_check
      _
    $region15: #{tpu_custom_call.1} parent=1 // pred_check_branch
      %58 = sbr.rel (0) target = $region17
    $region16: #{tpu_custom_call.1} parent=1 // pred_region
      _
    $region17: #{tpu_custom_call.1} parent=1 // pred_fallthru
      _
    // Predicated region
    $region18: #{tpu_custom_call.1} parent=1 // pred_check
      _
    $region19: #{tpu_custom_call.1} parent=1 // pred_check_branch
      %60 = sbr.rel (0) target = $region21
    $region20: #{tpu_custom_call.1} parent=1 // pred_region
      _
    $region21: #{tpu_custom_call.1} parent=1 // pred_fallthru
      _
    // Predicated region
    $region22: #{tpu_custom_call.1} parent=1 // pred_check
      _
    $region23: #{tpu_custom_call.1} parent=1 // pred_check_branch
      %62 = sbr.rel (0) target = $region25
    $region24: #{tpu_custom_call.1} parent=1 // pred_region
      %s64 = ssub.s32 3072, 3072
      %65 = vsyncadd [#allocation12], %s64
      %s66 = sshll.u32 [#allocation11], 4
      %s67 = int_to_ptr.vmem [resolvable:$true] %s66
      %72 = dma.hbm_to_vmem [thread:$0]  %s5, 3072, %s67, [#allocation12], 192, 192, 12
    $region25: #{tpu_custom_call.1} parent=1 // pred_fallthru
      _
    // Predicated region
    $region26: #{tpu_custom_call.1} parent=1 // pred_check
      _
    $region27: #{tpu_custom_call.1} parent=1 // pred_check_branch
      %74 = sbr.rel (0) target = $region29
    $region28: #{tpu_custom_call.1} parent=1 // pred_region
      %s76 = ssub.s32 3072, 3072
      %77 = vsyncadd [#allocation12], %s76
      %s78 = sshll.u32 [#allocation13], 4
      %s79 = int_to_ptr.vmem [resolvable:$true] %s78
      %84 = dma.hbm_to_vmem [thread:$0]  %s6, 3072, %s79, [#allocation12], 192, 192, 12
    $region29: #{tpu_custom_call.1} parent=1 // pred_fallthru
      _
    // Predicated region
    $region30: #{tpu_custom_call.1} parent=1 // pred_check
      _
    $region31: #{tpu_custom_call.1} parent=1 // pred_check_branch
      %86 = sbr.rel (0) target = $region33
    $region32: #{tpu_custom_call.1} parent=1 // pred_region
      _
    $region33: #{tpu_custom_call.1} parent=1 // pred_fallthru
      _
    // Predicated region
    $region34: #{tpu_custom_call.1} parent=1 // pred_check
      _
    $region35: #{tpu_custom_call.1} parent=1 // pred_check_branch
      %88 = sbr.rel (0) target = $region37
    $region36: #{tpu_custom_call.1} parent=1 // pred_region
      _
    $region37: #{tpu_custom_call.1} parent=1 // pred_fallthru
      _
    // Predicated region
    $region38: #{tpu_custom_call.1} parent=1 // pred_check
      _
    $region39: #{tpu_custom_call.1} parent=1 // pred_check_branch
      %90 = sbr.rel (0) target = $region41
    $region40: #{tpu_custom_call.1} parent=1 // pred_region
      %s92 = ssub.s32 1024, 1024
      %93 = vsyncadd [#allocation15], %s92
      %s94 = sshll.u32 [#allocation14], 4
      %s95 = int_to_ptr.vmem [resolvable:$true] %s94
      %100 = dma.hbm_to_vmem [thread:$0]  %s9, 1024, %s95, [#allocation15], 64, 64, 4
    $region41: #{tpu_custom_call.1} parent=1 // pred_fallthru
      _
    // Predicated region
    $region42: #{tpu_custom_call.1} parent=1 // pred_check
      _
    $region43: #{tpu_custom_call.1} parent=1 // pred_check_branch
      %102 = sbr.rel (0) target = $region45
    $region44: #{tpu_custom_call.1} parent=1 // pred_region
      _
    $region45: #{tpu_custom_call.1} parent=1 // pred_fallthru
      _
    // Predicated region
    $region46: #{tpu_custom_call.1} parent=1 // pred_check
      _
    $region47: #{tpu_custom_call.1} parent=1 // pred_check_branch
      %104 = sbr.rel (0) target = $region49
    $region48: #{tpu_custom_call.1} parent=1 // pred_region
      %105 = dma.done [#allocation6], 1024
    $region49: #{tpu_custom_call.1} parent=1 // pred_fallthru
      _
    // Predicated region
    $region50: #{tpu_custom_call.1} parent=1 // pred_check
      _
    $region51: #{tpu_custom_call.1} parent=1 // pred_check_branch
      %107 = sbr.rel (0) target = $region53
    $region52: #{tpu_custom_call.1} parent=1 // pred_region
      %108 = dma.done [#allocation9], 768
    $region53: #{tpu_custom_call.1} parent=1 // pred_fallthru
      _
    // Predicated region
    $region54: #{tpu_custom_call.1} parent=1 // pred_check
      _
    $region55: #{tpu_custom_call.1} parent=1 // pred_check_branch
      %110 = sbr.rel (0) target = $region57
    $region56: #{tpu_custom_call.1} parent=1 // pred_region
      %111 = dma.done [#allocation9], 3072
    $region57: #{tpu_custom_call.1} parent=1 // pred_fallthru
      _
    // Predicated region
    $region58: #{tpu_custom_call.1} parent=1 // pred_check
      _
    $region59: #{tpu_custom_call.1} parent=1 // pred_check_branch
      %113 = sbr.rel (0) target = $region61
    $region60: #{tpu_custom_call.1} parent=1 // pred_region
      %114 = dma.done [#allocation12], 3072
    $region61: #{tpu_custom_call.1} parent=1 // pred_fallthru
      _
    // Predicated region
    $region62: #{tpu_custom_call.1} parent=1 // pred_check
      _
    $region63: #{tpu_custom_call.1} parent=1 // pred_check_branch
      %116 = sbr.rel (0) target = $region65
    $region64: #{tpu_custom_call.1} parent=1 // pred_region
      %117 = dma.done [#allocation12], 3072
    $region65: #{tpu_custom_call.1} parent=1 // pred_fallthru
      _
    // Predicated region
    $region66: #{tpu_custom_call.1} parent=1 // pred_check
      _
    $region67: #{tpu_custom_call.1} parent=1 // pred_check_branch
      %119 = sbr.rel (0) target = $region69
    $region68: #{tpu_custom_call.1} parent=1 // pred_region
      %120 = dma.done [#allocation15], 1024
    $region69: #{tpu_custom_call.1} parent=1 // pred_fallthru
      _
    %v122 = vld [vmem:[#allocation5] sm:$0xff]
    %v123 = vld [vmem:[#allocation5 + $0x8] sm:$0xff]
    %v124 = vld [vmem:[#allocation5 + $0x10] sm:$0xff]
    %v125 = vld [vmem:[#allocation5 + $0x18] sm:$0xff]
    %v126 = vld [vmem:[#allocation5 + $0x20] sm:$0xff]
    %v127 = vld [vmem:[#allocation5 + $0x28] sm:$0xff]
    %v128 = vld [vmem:[#allocation5 + $0x30] sm:$0xff]
    %v129 = vld [vmem:[#allocation5 + $0x38] sm:$0xff]
    %v130 = vpack.c.bf16 %v123, %v122
    %v131 = vpack.c.bf16 %v125, %v124
    %v132 = vpack.c.bf16 %v127, %v126
    %v133 = vpack.c.bf16 %v129, %v128
    %v134 = vld [vmem:[#allocation8] sm:$0xff]
    %v135 = vld [vmem:[#allocation8 + $0x8] sm:$0xf]
    %v136 = vld [vmem:[#allocation8 + $0xc] sm:$0xff]
    %v137 = vld [vmem:[#allocation8 + $0x14] sm:$0xf]
    %v138 = vld [vmem:[#allocation8 + $0x18] sm:$0xff]
    %v139 = vld [vmem:[#allocation8 + $0x20] sm:$0xf]
    %v140 = vld [vmem:[#allocation8 + $0x24] sm:$0xff]
    %v141 = vld [vmem:[#allocation8 + $0x2c] sm:$0xf]
    %v142 = vld [vmem:[%s3] sm:$0x7]
    %v144 = vlaneseq
    %v145 = vshrl.u32 %v144, 7
    %v146 = vsub.s32 0, %v145
    %v147 = vrot.slane %v142, %v146
    %v148 = vlaneseq
    %v149 = vshrl.u32 %v148, 7
    %v150 = vsub.s32 1, %v149
    %v151 = vrot.slane %v142, %v150
    %v152 = vlaneseq
    %v153 = vshrl.u32 %v152, 7
    %v154 = vsub.s32 2, %v153
    %v155 = vrot.slane %v142, %v154
    %v167 = vunpack.c.l.b16 %v134
    %v168 = vunpack.c.h.b16 %v134
    %v169 = vunpack.c.l.b16 %v135
    %v170 = vunpack.c.l.b16 %v136
    %v171 = vunpack.c.h.b16 %v136
    %v172 = vunpack.c.l.b16 %v137
    %v173 = vunpack.c.l.b16 %v138
    %v174 = vunpack.c.h.b16 %v138
    %v175 = vunpack.c.l.b16 %v139
    %v176 = vunpack.c.l.b16 %v140
    %v177 = vunpack.c.h.b16 %v140
    %v178 = vunpack.c.l.b16 %v141
    %v179 = vpack.c.b16 %v170, %v167
    %v180 = vpack.c.b16 %v171, %v168
    %v181 = vpack.c.b16 %v172, %v169
    %v182 = vpack.c.b16 %v176, %v173
    %v183 = vpack.c.b16 %v177, %v174
    %v184 = vpack.c.b16 %v178, %v175
    %vm191 = vcmask 261120
    %v193 = vsel %vm191, %v130, 0
    %v196 = vsel %vm191, %v131, 0
    %v199 = vsel %vm191, %v132, 0
    %v202 = vsel %vm191, %v133, 0
    %204 = vmatprep.subr.bf16.mxu0 %v180
    %205 = vmatpush1.bf16.msra.mxu0 %v179
    %206 = vmatprep.subr.bf16.mxu0 %v183
    %207 = vmatpush1.bf16.msra.mxu0 %v182
    %208 = vmatprep.subr.bf16.mxu0 0
    %209 = vmatpush1.bf16.msra.mxu0 0
    %210 = vmatprep.subr.bf16.mxu0 0
    %211 = vmatpush1.bf16.msra.mxu0 0
    %212 = vmatprep.subr.bf16.mxu0 0
    %213 = vmatpush1.bf16.msra.mxu0 0
    %214 = vmatprep.subr.bf16.mxu0 0
    %215 = vmatpush1.bf16.msra.mxu0 0
    %216 = vmatprep.subr.bf16.mxu0 0
    %217 = vmatpush1.bf16.msra.mxu0 0
    %218 = vmatprep.subr.bf16.mxu0 0
    %219 = vmatpush1.bf16.msra.mxu0 0
    %220 = vmatprep.subr.bf16.mxu0 0
    %221 = vmatpush1.bf16.msra.mxu0 0
    %222 = vmatprep.subr.bf16.mxu0 0
    %223 = vmatpush1.bf16.msra.mxu0 0
    %224 = vmatprep.subr.bf16.mxu0 0
    %225 = vmatpush1.bf16.msra.mxu0 0
    %226 = vmatprep.subr.bf16.mxu0 0
    %227 = vmatpush1.bf16.msra.mxu0 0
    %228 = vmatprep.subr.bf16.mxu0 0
    %229 = vmatpush1.bf16.msra.mxu0 0
    %230 = vmatprep.subr.bf16.mxu0 0
    %231 = vmatpush1.bf16.msra.mxu0 0
    %232 = vmatprep.subr.bf16.mxu0 0
    %233 = vmatpush1.bf16.msra.mxu0 0
    %234 = vmatprep.subr.bf16.mxu0 0
    %235 = vmatpush1.bf16.msra.mxu0 0
    %236 = vmatprep.mubr.bf16.mxu0 0
    %237 = vmatmul.mubr.bf16.gmra.mrb[0].mxu0 %v193
    %v238 = vpop.f32.mrb[0].mxu0
    %v239 = vadd.f32 %v147, %v238
    %v240 = vpop.f32.mrb[0].mxu0
    %v241 = vadd.f32 %v151, %v240
    %v242 = vpop.f32.mrb[0].mxu0
    %v243 = vadd.f32 %v147, %v242
    %v244 = vpop.f32.mrb[0].mxu0
    %v245 = vadd.f32 %v151, %v244
    %246 = vmatprep.mubr.bf16.mxu0 0
    %247 = vmatmul.mubr.bf16.gmra.mrb[0].mxu0 %v196
    %v248 = vpop.f32.mrb[0].mxu0
    %v249 = vadd.f32 %v147, %v248
    %v250 = vpop.f32.mrb[0].mxu0
    %v251 = vadd.f32 %v151, %v250
    %v252 = vpop.f32.mrb[0].mxu0
    %v253 = vadd.f32 %v147, %v252
    %v254 = vpop.f32.mrb[0].mxu0
    %v255 = vadd.f32 %v151, %v254
    %256 = vmatprep.mubr.bf16.mxu0 0
    %257 = vmatmul.mubr.bf16.gmra.mrb[0].mxu0 %v199
    %v258 = vpop.f32.mrb[0].mxu0
    %v259 = vadd.f32 %v147, %v258
    %v260 = vpop.f32.mrb[0].mxu0
    %v261 = vadd.f32 %v151, %v260
    %v262 = vpop.f32.mrb[0].mxu0
    %v263 = vadd.f32 %v147, %v262
    %v264 = vpop.f32.mrb[0].mxu0
    %v265 = vadd.f32 %v151, %v264
    %266 = vmatprep.mubr.bf16.mxu0 0
    %267 = vmatmul.mubr.bf16.gmra.mrb[0].mxu0 %v202
    %v268 = vpop.f32.mrb[0].mxu0
    %v269 = vadd.f32 %v147, %v268
    %v270 = vpop.f32.mrb[0].mxu0
    %v271 = vadd.f32 %v151, %v270
    %v272 = vpop.f32.mrb[0].mxu0
    %v273 = vadd.f32 %v147, %v272
    %v274 = vpop.f32.mrb[0].mxu0
    %v275 = vadd.f32 %v151, %v274
    %276 = vdwg.mxu0
    %277 = vmatprep.subr.bf16.mxu0 0
    %278 = vmatpush1.bf16.msra.mxu0 %v181
    %279 = vmatprep.subr.bf16.mxu0 0
    %280 = vmatpush1.bf16.msra.mxu0 %v184
    %281 = vmatprep.subr.bf16.mxu0 0
    %282 = vmatpush1.bf16.msra.mxu0 0
    %283 = vmatprep.subr.bf16.mxu0 0
    %284 = vmatpush1.bf16.msra.mxu0 0
    %285 = vmatprep.subr.bf16.mxu0 0
    %286 = vmatpush1.bf16.msra.mxu0 0
    %287 = vmatprep.subr.bf16.mxu0 0
    %288 = vmatpush1.bf16.msra.mxu0 0
    %289 = vmatprep.subr.bf16.mxu0 0
    %290 = vmatpush1.bf16.msra.mxu0 0
    %291 = vmatprep.subr.bf16.mxu0 0
    %292 = vmatpush1.bf16.msra.mxu0 0
    %293 = vmatprep.subr.bf16.mxu0 0
    %294 = vmatpush1.bf16.msra.mxu0 0
    %295 = vmatprep.subr.bf16.mxu0 0
    %296 = vmatpush1.bf16.msra.mxu0 0
    %297 = vmatprep.subr.bf16.mxu0 0
    %298 = vmatpush1.bf16.msra.mxu0 0
    %299 = vmatprep.subr.bf16.mxu0 0
    %300 = vmatpush1.bf16.msra.mxu0 0
    %301 = vmatprep.subr.bf16.mxu0 0
    %302 = vmatpush1.bf16.msra.mxu0 0
    %303 = vmatprep.subr.bf16.mxu0 0
    %304 = vmatpush1.bf16.msra.mxu0 0
    %305 = vmatprep.subr.bf16.mxu0 0
    %306 = vmatpush1.bf16.msra.mxu0 0
    %307 = vmatprep.subr.bf16.mxu0 0
    %308 = vmatpush1.bf16.msra.mxu0 0
    %309 = vmatprep.mubr.bf16.mxu0 0
    %310 = vmatmul.mubr.bf16.gmra.mrb[0].mxu0 %v193
    %v311 = vpop.f32.mrb[0].mxu0
    %v312 = vadd.f32 %v155, %v311
    %v313 = vpop.f32.mrb[0].mxu0
    %v314 = vpop.f32.mrb[0].mxu0
    %v315 = vadd.f32 %v155, %v314
    %v316 = vpop.f32.mrb[0].mxu0
    %317 = vmatprep.mubr.bf16.mxu0 0
    %318 = vmatmul.mubr.bf16.gmra.mrb[0].mxu0 %v196
    %v319 = vpop.f32.mrb[0].mxu0
    %v320 = vadd.f32 %v155, %v319
    %v321 = vpop.f32.mrb[0].mxu0
    %v322 = vpop.f32.mrb[0].mxu0
    %v323 = vadd.f32 %v155, %v322
    %v324 = vpop.f32.mrb[0].mxu0
    %325 = vmatprep.mubr.bf16.mxu0 0
    %326 = vmatmul.mubr.bf16.gmra.mrb[0].mxu0 %v199
    %v327 = vpop.f32.mrb[0].mxu0
    %v328 = vadd.f32 %v155, %v327
    %v329 = vpop.f32.mrb[0].mxu0
    %v330 = vpop.f32.mrb[0].mxu0
    %v331 = vadd.f32 %v155, %v330
    %v332 = vpop.f32.mrb[0].mxu0
    %333 = vmatprep.mubr.bf16.mxu0 0
    %334 = vmatmul.mubr.bf16.gmra.mrb[0].mxu0 %v202
    %v335 = vpop.f32.mrb[0].mxu0
    %v336 = vadd.f32 %v155, %v335
    %v337 = vpop.f32.mrb[0].mxu0
    %v338 = vpop.f32.mrb[0].mxu0
    %v339 = vadd.f32 %v155, %v338
    %v340 = vpop.f32.mrb[0].mxu0
    %341 = vdwg.mxu0
    %342 = vst [vmem:[#allocation2] sm:$0xff] %v239
    %343 = vst [vmem:[#allocation2 + $0x8] sm:$0xff] %v241
    %344 = vst [vmem:[#allocation2 + $0x10] sm:$0xff] %v312
    %345 = vst [vmem:[#allocation2 + $0x18] sm:$0xff] %v243
    %346 = vst [vmem:[#allocation2 + $0x20] sm:$0xff] %v245
    %347 = vst [vmem:[#allocation2 + $0x28] sm:$0xff] %v315
    %348 = vst [vmem:[#allocation2 + $0x30] sm:$0xff] %v249
    %349 = vst [vmem:[#allocation2 + $0x38] sm:$0xff] %v251
    %350 = vst [vmem:[#allocation2 + $0x40] sm:$0xff] %v320
    %351 = vst [vmem:[#allocation2 + $0x48] sm:$0xff] %v253
    %352 = vst [vmem:[#allocation2 + $0x50] sm:$0xff] %v255
    %353 = vst [vmem:[#allocation2 + $0x58] sm:$0xff] %v323
    %354 = vst [vmem:[#allocation2 + $0x60] sm:$0xff] %v259
    %355 = vst [vmem:[#allocation2 + $0x68] sm:$0xff] %v261
    %356 = vst [vmem:[#allocation2 + $0x70] sm:$0xff] %v328
    %357 = vst [vmem:[#allocation2 + $0x78] sm:$0xff] %v263
    %358 = vst [vmem:[#allocation2 + $0x80] sm:$0xff] %v265
    %359 = vst [vmem:[#allocation2 + $0x88] sm:$0xff] %v331
    %360 = vst [vmem:[#allocation2 + $0x90] sm:$0xff] %v269
    %361 = vst [vmem:[#allocation2 + $0x98] sm:$0xff] %v271
    %362 = vst [vmem:[#allocation2 + $0xa0] sm:$0xff] %v336
    %363 = vst [vmem:[#allocation2 + $0xa8] sm:$0xff] %v273
    %364 = vst [vmem:[#allocation2 + $0xb0] sm:$0xff] %v275
    %365 = vst [vmem:[#allocation2 + $0xb8] sm:$0xff] %v339
    %v366 = vld [vmem:[%s4] sm:$0x1]
    %v367 = vld [vmem:[%s8] sm:$0x1]
    %v368 = vld [vmem:[#allocation10] sm:$0xff]
    %v369 = vld [vmem:[#allocation10 + $0x8] sm:$0xf]
    %v370 = vld [vmem:[#allocation10 + $0xc] sm:$0xff]
    %v371 = vld [vmem:[#allocation10 + $0x14] sm:$0xf]
    %v372 = vld [vmem:[#allocation10 + $0x18] sm:$0xff]
    %v373 = vld [vmem:[#allocation10 + $0x20] sm:$0xf]
    %v374 = vld [vmem:[#allocation10 + $0x24] sm:$0xff]
    %v375 = vld [vmem:[#allocation10 + $0x2c] sm:$0xf]
    %v376 = vld [vmem:[#allocation10 + $0x30] sm:$0xff]
    %v377 = vld [vmem:[#allocation10 + $0x38] sm:$0xf]
    %v378 = vld [vmem:[#allocation10 + $0x3c] sm:$0xff]
    %v379 = vld [vmem:[#allocation10 + $0x44] sm:$0xf]
    %v380 = vld [vmem:[#allocation10 + $0x48] sm:$0xff]
    %v381 = vld [vmem:[#allocation10 + $0x50] sm:$0xf]
    %v382 = vld [vmem:[#allocation10 + $0x54] sm:$0xff]
    %v383 = vld [vmem:[#allocation10 + $0x5c] sm:$0xf]
    %v384 = vld [vmem:[#allocation10 + $0x60] sm:$0xff]
    %v385 = vld [vmem:[#allocation10 + $0x68] sm:$0xf]
    %v386 = vld [vmem:[#allocation10 + $0x6c] sm:$0xff]
    %v387 = vld [vmem:[#allocation10 + $0x74] sm:$0xf]
    %v388 = vld [vmem:[#allocation10 + $0x78] sm:$0xff]
    %v389 = vld [vmem:[#allocation10 + $0x80] sm:$0xf]
    %v390 = vld [vmem:[#allocation10 + $0x84] sm:$0xff]
    %v391 = vld [vmem:[#allocation10 + $0x8c] sm:$0xf]
    %v392 = vld [vmem:[#allocation10 + $0x90] sm:$0xff]
    %v393 = vld [vmem:[#allocation10 + $0x98] sm:$0xf]
    %v394 = vld [vmem:[#allocation10 + $0x9c] sm:$0xff]
    %v395 = vld [vmem:[#allocation10 + $0xa4] sm:$0xf]
    %v396 = vld [vmem:[#allocation10 + $0xa8] sm:$0xff]
    %v397 = vld [vmem:[#allocation10 + $0xb0] sm:$0xf]
    %v398 = vld [vmem:[#allocation10 + $0xb4] sm:$0xff]
    %v399 = vld [vmem:[#allocation10 + $0xbc] sm:$0xf]
    %v432 = vunpack.c.l.b16 %v368
    %v433 = vunpack.c.h.b16 %v368
    %v434 = vunpack.c.l.b16 %v369
    %v435 = vunpack.c.l.b16 %v370
    %v436 = vunpack.c.h.b16 %v370
    %v437 = vunpack.c.l.b16 %v371
    %v438 = vunpack.c.l.b16 %v372
    %v439 = vunpack.c.h.b16 %v372
    %v440 = vunpack.c.l.b16 %v373
    %v441 = vunpack.c.l.b16 %v374
    %v442 = vunpack.c.h.b16 %v374
    %v443 = vunpack.c.l.b16 %v375
    %v444 = vunpack.c.l.b16 %v376
    %v445 = vunpack.c.h.b16 %v376
    %v446 = vunpack.c.l.b16 %v377
    %v447 = vunpack.c.l.b16 %v378
    %v448 = vunpack.c.h.b16 %v378
    %v449 = vunpack.c.l.b16 %v379
    %v450 = vunpack.c.l.b16 %v380
    %v451 = vunpack.c.h.b16 %v380
    %v452 = vunpack.c.l.b16 %v381
    %v453 = vunpack.c.l.b16 %v382
    %v454 = vunpack.c.h.b16 %v382
    %v455 = vunpack.c.l.b16 %v383
    %v456 = vunpack.c.l.b16 %v384
    %v457 = vunpack.c.h.b16 %v384
    %v458 = vunpack.c.l.b16 %v385
    %v459 = vunpack.c.l.b16 %v386
    %v460 = vunpack.c.h.b16 %v386
    %v461 = vunpack.c.l.b16 %v387
    %v462 = vunpack.c.l.b16 %v388
    %v463 = vunpack.c.h.b16 %v388
    %v464 = vunpack.c.l.b16 %v389
    %v465 = vunpack.c.l.b16 %v390
    %v466 = vunpack.c.h.b16 %v390
    %v467 = vunpack.c.l.b16 %v391
    %v468 = vunpack.c.l.b16 %v392
    %v469 = vunpack.c.h.b16 %v392
    %v470 = vunpack.c.l.b16 %v393
    %v471 = vunpack.c.l.b16 %v394
    %v472 = vunpack.c.h.b16 %v394
    %v473 = vunpack.c.l.b16 %v395
    %v474 = vunpack.c.l.b16 %v396
    %v475 = vunpack.c.h.b16 %v396
    %v476 = vunpack.c.l.b16 %v397
    %v477 = vunpack.c.l.b16 %v398
    %v478 = vunpack.c.h.b16 %v398
    %v479 = vunpack.c.l.b16 %v399
    %v480 = vpack.c.b16 %v435, %v432
    %v481 = vpack.c.b16 %v436, %v433
    %v482 = vpack.c.b16 %v437, %v434
    %v483 = vpack.c.b16 %v441, %v438
    %v484 = vpack.c.b16 %v442, %v439
    %v485 = vpack.c.b16 %v443, %v440
    %v486 = vpack.c.b16 %v447, %v444
    %v487 = vpack.c.b16 %v448, %v445
    %v488 = vpack.c.b16 %v449, %v446
    %v489 = vpack.c.b16 %v453, %v450
    %v490 = vpack.c.b16 %v454, %v451
    %v491 = vpack.c.b16 %v455, %v452
    %v492 = vpack.c.b16 %v459, %v456
    %v493 = vpack.c.b16 %v460, %v457
    %v494 = vpack.c.b16 %v461, %v458
    %v495 = vpack.c.b16 %v465, %v462
    %v496 = vpack.c.b16 %v466, %v463
    %v497 = vpack.c.b16 %v467, %v464
    %v498 = vpack.c.b16 %v471, %v468
    %v499 = vpack.c.b16 %v472, %v469
    %v500 = vpack.c.b16 %v473, %v470
    %v501 = vpack.c.b16 %v477, %v474
    %v502 = vpack.c.b16 %v478, %v475
    %v503 = vpack.c.b16 %v479, %v476
    %528 = vmatprep.subr.bf16.mxu0 %v481
    %529 = vmatpush1.bf16.msra.mxu0 %v480
    %530 = vmatprep.subr.bf16.mxu0 %v484
    %531 = vmatpush1.bf16.msra.mxu0 %v483
    %532 = vmatprep.subr.bf16.mxu0 %v487
    %533 = vmatpush1.bf16.msra.mxu0 %v486
    %534 = vmatprep.subr.bf16.mxu0 %v490
    %535 = vmatpush1.bf16.msra.mxu0 %v489
    %536 = vmatprep.subr.bf16.mxu0 %v493
    %537 = vmatpush1.bf16.msra.mxu0 %v492
    %538 = vmatprep.subr.bf16.mxu0 %v496
    %539 = vmatpush1.bf16.msra.mxu0 %v495
    %540 = vmatprep.subr.bf16.mxu0 %v499
    %541 = vmatpush1.bf16.msra.mxu0 %v498
    %542 = vmatprep.subr.bf16.mxu0 %v502
    %543 = vmatpush1.bf16.msra.mxu0 %v501
    %544 = vmatprep.subr.bf16.mxu0 0
    %545 = vmatpush1.bf16.msra.mxu0 0
    %546 = vmatprep.subr.bf16.mxu0 0
    %547 = vmatpush1.bf16.msra.mxu0 0
    %548 = vmatprep.subr.bf16.mxu0 0
    %549 = vmatpush1.bf16.msra.mxu0 0
    %550 = vmatprep.subr.bf16.mxu0 0
    %551 = vmatpush1.bf16.msra.mxu0 0
    %552 = vmatprep.subr.bf16.mxu0 0
    %553 = vmatpush1.bf16.msra.mxu0 0
    %554 = vmatprep.subr.bf16.mxu0 0
    %555 = vmatpush1.bf16.msra.mxu0 0
    %556 = vmatprep.subr.bf16.mxu0 0
    %557 = vmatpush1.bf16.msra.mxu0 0
    %558 = vmatprep.subr.bf16.mxu0 0
    %559 = vmatpush1.bf16.msra.mxu0 0
    %560 = vmatprep.mubr.bf16.mxu0 0
    %561 = vmatmul.mubr.bf16.gmra.mrb[0].mxu0 0
    %v562 = vpop.f32.mrb[0].mxu0
    %v563 = vadd.f32 0.0, %v562
    %v564 = vpop.f32.mrb[0].mxu0
    %v565 = vadd.f32 0.0, %v564
    %v566 = vpop.f32.mrb[0].mxu0
    %v567 = vpop.f32.mrb[0].mxu0
    %568 = vdwg.mxu0
    %569 = vmatprep.subr.bf16.mxu0 0
    %570 = vmatpush1.bf16.msra.mxu0 %v482
    %571 = vmatprep.subr.bf16.mxu0 0
    %572 = vmatpush1.bf16.msra.mxu0 %v485
    %573 = vmatprep.subr.bf16.mxu0 0
    %574 = vmatpush1.bf16.msra.mxu0 %v488
    %575 = vmatprep.subr.bf16.mxu0 0
    %576 = vmatpush1.bf16.msra.mxu0 %v491
    %577 = vmatprep.subr.bf16.mxu0 0
    %578 = vmatpush1.bf16.msra.mxu0 %v494
    %579 = vmatprep.subr.bf16.mxu0 0
    %580 = vmatpush1.bf16.msra.mxu0 %v497
    %581 = vmatprep.subr.bf16.mxu0 0
    %582 = vmatpush1.bf16.msra.mxu0 %v500
    %583 = vmatprep.subr.bf16.mxu0 0
    %584 = vmatpush1.bf16.msra.mxu0 %v503
    %585 = vmatprep.subr.bf16.mxu0 0
    %586 = vmatpush1.bf16.msra.mxu0 0
    %587 = vmatprep.subr.bf16.mxu0 0
    %588 = vmatpush1.bf16.msra.mxu0 0
    %589 = vmatprep.subr.bf16.mxu0 0
    %590 = vmatpush1.bf16.msra.mxu0 0
    %591 = vmatprep.subr.bf16.mxu0 0
    %592 = vmatpush1.bf16.msra.mxu0 0
    %593 = vmatprep.subr.bf16.mxu0 0
    %594 = vmatpush1.bf16.msra.mxu0 0
    %595 = vmatprep.subr.bf16.mxu0 0
    %596 = vmatpush1.bf16.msra.mxu0 0
    %597 = vmatprep.subr.bf16.mxu0 0
    %598 = vmatpush1.bf16.msra.mxu0 0
    %599 = vmatprep.subr.bf16.mxu0 0
    %600 = vmatpush1.bf16.msra.mxu0 0
    %601 = vmatprep.mubr.bf16.mxu0 0
    %602 = vmatmul.mubr.bf16.gmra.mrb[0].mxu0 0
    %v603 = vpop.f32.mrb[0].mxu0
    %v604 = vadd.f32 0.0, %v603
    %v605 = vpop.f32.mrb[0].mxu0
    %v606 = vpop.f32.mrb[0].mxu0
    %v607 = vpop.f32.mrb[0].mxu0
    %608 = vdwg.mxu0
    %v609 = vld [vmem:[#allocation2] sm:$0xff]
    %v610 = vld [vmem:[#allocation2 + $0x8] sm:$0xff]
    %v611 = vld [vmem:[#allocation2 + $0x10] sm:$0xff]
    %v612 = vadd.f32 %v609, %v563
    %v613 = vadd.f32 %v610, %v565
    %v614 = vxor.u32 %v612, 2147483648
    %v615 = vxor.u32 %v613, 2147483648
    %v616 = vmul.f32 %v614, 1.442695
    %v617 = vpow.pop %v616
    %v618 = vmul.f32 %v615, 1.442695
    %v619 = vpow.pop %v618
    %v620 = vadd.f32 %v617, 1.0
    %v621 = vadd.f32 %v619, 1.0
    %v622 = vrcp.pop %v620
    %v623 = vmul.f32 1.0, %v622
    %v624 = vrcp.pop %v621
    %v625 = vmul.f32 1.0, %v624
    %v627 = vlaneseq
    %v628 = vshrl.u32 %v627, 7
    %v629 = vsub.s32 0, %v628
    %v630 = vrot.slane %v366, %v629
    %v632 = vadd.f32 %v604, %v630
    %v633 = vmul.f32 %v623, %v632
    %v634 = vadd.f32 %v611, %v633
    %v635 = vtanh.pop %v634
    %v636 = vsub.f32 0.0, %v635
    %v637 = vmul.f32 %v625, %v636
    %v638 = vadd.f32 %v635, %v637
    %639 = vst [vmem:[#allocation3] sm:$0xff] %v638
    %v640 = vpack.c.bf16 %v638, %v638
    %v641 = vld [vmem:[#allocation10] sm:$0xff]
    %v642 = vld [vmem:[#allocation10 + $0x8] sm:$0xf]
    %v643 = vld [vmem:[#allocation10 + $0xc] sm:$0xff]
    %v644 = vld [vmem:[#allocation10 + $0x14] sm:$0xf]
    %v645 = vld [vmem:[#allocation10 + $0x18] sm:$0xff]
    %v646 = vld [vmem:[#allocation10 + $0x20] sm:$0xf]
    %v647 = vld [vmem:[#allocation10 + $0x24] sm:$0xff]
    %v648 = vld [vmem:[#allocation10 + $0x2c] sm:$0xf]
    %v649 = vld [vmem:[#allocation10 + $0x30] sm:$0xff]
    %v650 = vld [vmem:[#allocation10 + $0x38] sm:$0xf]
    %v651 = vld [vmem:[#allocation10 + $0x3c] sm:$0xff]
    %v652 = vld [vmem:[#allocation10 + $0x44] sm:$0xf]
    %v653 = vld [vmem:[#allocation10 + $0x48] sm:$0xff]
    %v654 = vld [vmem:[#allocation10 + $0x50] sm:$0xf]
    %v655 = vld [vmem:[#allocation10 + $0x54] sm:$0xff]
    %v656 = vld [vmem:[#allocation10 + $0x5c] sm:$0xf]
    %v657 = vld [vmem:[#allocation10 + $0x60] sm:$0xff]
    %v658 = vld [vmem:[#allocation10 + $0x68] sm:$0xf]
    %v659 = vld [vmem:[#allocation10 + $0x6c] sm:$0xff]
    %v660 = vld [vmem:[#allocation10 + $0x74] sm:$0xf]
    %v661 = vld [vmem:[#allocation10 + $0x78] sm:$0xff]
    %v662 = vld [vmem:[#allocation10 + $0x80] sm:$0xf]
    %v663 = vld [vmem:[#allocation10 + $0x84] sm:$0xff]
    %v664 = vld [vmem:[#allocation10 + $0x8c] sm:$0xf]
    %v665 = vld [vmem:[#allocation10 + $0x90] sm:$0xff]
    %v666 = vld [vmem:[#allocation10 + $0x98] sm:$0xf]
    %v667 = vld [vmem:[#allocation10 + $0x9c] sm:$0xff]
    %v668 = vld [vmem:[#allocation10 + $0xa4] sm:$0xf]
    %v669 = vld [vmem:[#allocation10 + $0xa8] sm:$0xff]
    %v670 = vld [vmem:[#allocation10 + $0xb0] sm:$0xf]
    %v671 = vld [vmem:[#allocation10 + $0xb4] sm:$0xff]
    %v672 = vld [vmem:[#allocation10 + $0xbc] sm:$0xf]
    %v705 = vunpack.c.l.b16 %v641
    %v706 = vunpack.c.h.b16 %v641
    %v707 = vunpack.c.l.b16 %v642
    %v708 = vunpack.c.l.b16 %v643
    %v709 = vunpack.c.h.b16 %v643
    %v710 = vunpack.c.l.b16 %v644
    %v711 = vunpack.c.l.b16 %v645
    %v712 = vunpack.c.h.b16 %v645
    %v713 = vunpack.c.l.b16 %v646
    %v714 = vunpack.c.l.b16 %v647
    %v715 = vunpack.c.h.b16 %v647
    %v716 = vunpack.c.l.b16 %v648
    %v717 = vunpack.c.l.b16 %v649
    %v718 = vunpack.c.h.b16 %v649
    %v719 = vunpack.c.l.b16 %v650
    %v720 = vunpack.c.l.b16 %v651
    %v721 = vunpack.c.h.b16 %v651
    %v722 = vunpack.c.l.b16 %v652
    %v723 = vunpack.c.l.b16 %v653
    %v724 = vunpack.c.h.b16 %v653
    %v725 = vunpack.c.l.b16 %v654
    %v726 = vunpack.c.l.b16 %v655
    %v727 = vunpack.c.h.b16 %v655
    %v728 = vunpack.c.l.b16 %v656
    %v729 = vunpack.c.l.b16 %v657
    %v730 = vunpack.c.h.b16 %v657
    %v731 = vunpack.c.l.b16 %v658
    %v732 = vunpack.c.l.b16 %v659
    %v733 = vunpack.c.h.b16 %v659
    %v734 = vunpack.c.l.b16 %v660
    %v735 = vunpack.c.l.b16 %v661
    %v736 = vunpack.c.h.b16 %v661
    %v737 = vunpack.c.l.b16 %v662
    %v738 = vunpack.c.l.b16 %v663
    %v739 = vunpack.c.h.b16 %v663
    %v740 = vunpack.c.l.b16 %v664
    %v741 = vunpack.c.l.b16 %v665
    %v742 = vunpack.c.h.b16 %v665
    %v743 = vunpack.c.l.b16 %v666
    %v744 = vunpack.c.l.b16 %v667
    %v745 = vunpack.c.h.b16 %v667
    %v746 = vunpack.c.l.b16 %v668
    %v747 = vunpack.c.l.b16 %v669
    %v748 = vunpack.c.h.b16 %v669
    %v749 = vunpack.c.l.b16 %v670
    %v750 = vunpack.c.l.b16 %v671
    %v751 = vunpack.c.h.b16 %v671
    %v752 = vunpack.c.l.b16 %v672
    %v753 = vpack.c.b16 %v708, %v705
    %v754 = vpack.c.b16 %v709, %v706
    %v755 = vpack.c.b16 %v710, %v707
    %v756 = vpack.c.b16 %v714, %v711
    %v757 = vpack.c.b16 %v715, %v712
    %v758 = vpack.c.b16 %v716, %v713
    %v759 = vpack.c.b16 %v720, %v717
    %v760 = vpack.c.b16 %v721, %v718
    %v761 = vpack.c.b16 %v722, %v719
    %v762 = vpack.c.b16 %v726, %v723
    %v763 = vpack.c.b16 %v727, %v724
    %v764 = vpack.c.b16 %v728, %v725
    %v765 = vpack.c.b16 %v732, %v729
    %v766 = vpack.c.b16 %v733, %v730
    %v767 = vpack.c.b16 %v734, %v731
    %v768 = vpack.c.b16 %v738, %v735
    %v769 = vpack.c.b16 %v739, %v736
    %v770 = vpack.c.b16 %v740, %v737
    %v771 = vpack.c.b16 %v744, %v741
    %v772 = vpack.c.b16 %v745, %v742
    %v773 = vpack.c.b16 %v746, %v743
    %v774 = vpack.c.b16 %v750, %v747
    %v775 = vpack.c.b16 %v751, %v748
    %v776 = vpack.c.b16 %v752, %v749
    %801 = vmatprep.subr.bf16.mxu0 %v754
    %802 = vmatpush1.bf16.msra.mxu0 %v753
    %803 = vmatprep.subr.bf16.mxu0 %v757
    %804 = vmatpush1.bf16.msra.mxu0 %v756
    %805 = vmatprep.subr.bf16.mxu0 %v760
    %806 = vmatpush1.bf16.msra.mxu0 %v759
    %807 = vmatprep.subr.bf16.mxu0 %v763
    %808 = vmatpush1.bf16.msra.mxu0 %v762
    %809 = vmatprep.subr.bf16.mxu0 %v766
    %810 = vmatpush1.bf16.msra.mxu0 %v765
    %811 = vmatprep.subr.bf16.mxu0 %v769
    %812 = vmatpush1.bf16.msra.mxu0 %v768
    %813 = vmatprep.subr.bf16.mxu0 %v772
    %814 = vmatpush1.bf16.msra.mxu0 %v771
    %815 = vmatprep.subr.bf16.mxu0 %v775
    %816 = vmatpush1.bf16.msra.mxu0 %v774
    %817 = vmatprep.subr.bf16.mxu0 0
    %818 = vmatpush1.bf16.msra.mxu0 0
    %819 = vmatprep.subr.bf16.mxu0 0
    %820 = vmatpush1.bf16.msra.mxu0 0
    %821 = vmatprep.subr.bf16.mxu0 0
    %822 = vmatpush1.bf16.msra.mxu0 0
    %823 = vmatprep.subr.bf16.mxu0 0
    %824 = vmatpush1.bf16.msra.mxu0 0
    %825 = vmatprep.subr.bf16.mxu0 0
    %826 = vmatpush1.bf16.msra.mxu0 0
    %827 = vmatprep.subr.bf16.mxu0 0
    %828 = vmatpush1.bf16.msra.mxu0 0
    %829 = vmatprep.subr.bf16.mxu0 0
    %830 = vmatpush1.bf16.msra.mxu0 0
    %831 = vmatprep.subr.bf16.mxu0 0
    %832 = vmatpush1.bf16.msra.mxu0 0
    %833 = vmatprep.mubr.bf16.mxu0 0
    %834 = vmatmul.mubr.bf16.gmra.mrb[0].mxu0 %v640
    %v835 = vpop.f32.mrb[0].mxu0
    %v836 = vadd.f32 0.0, %v835
    %v837 = vpop.f32.mrb[0].mxu0
    %v838 = vadd.f32 0.0, %v837
    %v839 = vpop.f32.mrb[0].mxu0
    %v840 = vpop.f32.mrb[0].mxu0
    %841 = vdwg.mxu0
    %842 = vmatprep.subr.bf16.mxu0 0
    %843 = vmatpush1.bf16.msra.mxu0 %v755
    %844 = vmatprep.subr.bf16.mxu0 0
    %845 = vmatpush1.bf16.msra.mxu0 %v758
    %846 = vmatprep.subr.bf16.mxu0 0
    %847 = vmatpush1.bf16.msra.mxu0 %v761
    %848 = vmatprep.subr.bf16.mxu0 0
    %849 = vmatpush1.bf16.msra.mxu0 %v764
    %850 = vmatprep.subr.bf16.mxu0 0
    %851 = vmatpush1.bf16.msra.mxu0 %v767
    %852 = vmatprep.subr.bf16.mxu0 0
    %853 = vmatpush1.bf16.msra.mxu0 %v770
    %854 = vmatprep.subr.bf16.mxu0 0
    %855 = vmatpush1.bf16.msra.mxu0 %v773
    %856 = vmatprep.subr.bf16.mxu0 0
    %857 = vmatpush1.bf16.msra.mxu0 %v776
    %858 = vmatprep.subr.bf16.mxu0 0
    %859 = vmatpush1.bf16.msra.mxu0 0
    %860 = vmatprep.subr.bf16.mxu0 0
    %861 = vmatpush1.bf16.msra.mxu0 0
    %862 = vmatprep.subr.bf16.mxu0 0
    %863 = vmatpush1.bf16.msra.mxu0 0
    %864 = vmatprep.subr.bf16.mxu0 0
    %865 = vmatpush1.bf16.msra.mxu0 0
    %866 = vmatprep.subr.bf16.mxu0 0
    %867 = vmatpush1.bf16.msra.mxu0 0
    %868 = vmatprep.subr.bf16.mxu0 0
    %869 = vmatpush1.bf16.msra.mxu0 0
    %870 = vmatprep.subr.bf16.mxu0 0
    %871 = vmatpush1.bf16.msra.mxu0 0
    %872 = vmatprep.subr.bf16.mxu0 0
    %873 = vmatpush1.bf16.msra.mxu0 0
    %874 = vmatprep.mubr.bf16.mxu0 0
    %875 = vmatmul.mubr.bf16.gmra.mrb[0].mxu0 %v640
    %v876 = vpop.f32.mrb[0].mxu0
    %v877 = vadd.f32 0.0, %v876
    %v878 = vpop.f32.mrb[0].mxu0
    %v879 = vpop.f32.mrb[0].mxu0
    %v880 = vpop.f32.mrb[0].mxu0
    %881 = vdwg.mxu0
    %s882 = scalar_lea.vmem [#allocation2], 24
    %v883 = vld [vmem:[%s882] sm:$0xff]
    %v884 = vld [vmem:[%s882 + $0x8] sm:$0xff]
    %v885 = vld [vmem:[%s882 + $0x10] sm:$0xff]
    %v886 = vadd.f32 %v883, %v836
    %v887 = vadd.f32 %v884, %v838
    %v888 = vxor.u32 %v886, 2147483648
    %v889 = vxor.u32 %v887, 2147483648
    %v890 = vmul.f32 %v888, 1.442695
    %v891 = vpow.pop %v890
    %v892 = vmul.f32 %v889, 1.442695
    %v893 = vpow.pop %v892
    %v894 = vadd.f32 %v891, 1.0
    %v895 = vadd.f32 %v893, 1.0
    %v896 = vrcp.pop %v894
    %v897 = vmul.f32 1.0, %v896
    %v898 = vrcp.pop %v895
    %v899 = vmul.f32 1.0, %v898
    %v900 = vadd.f32 %v877, %v630
    %v901 = vmul.f32 %v897, %v900
    %v902 = vadd.f32 %v885, %v901
    %v903 = vtanh.pop %v902
    %v904 = vsub.f32 %v638, %v903
    %v905 = vmul.f32 %v899, %v904
    %v906 = vadd.f32 %v903, %v905
    %s907 = scalar_lea.vmem [#allocation3], 8
    %908 = vst [vmem:[%s907] sm:$0xff] %v906
    %v909 = vpack.c.bf16 %v906, %v906
    %v910 = vld [vmem:[#allocation10] sm:$0xff]
    %v911 = vld [vmem:[#allocation10 + $0x8] sm:$0xf]
    %v912 = vld [vmem:[#allocation10 + $0xc] sm:$0xff]
    %v913 = vld [vmem:[#allocation10 + $0x14] sm:$0xf]
    %v914 = vld [vmem:[#allocation10 + $0x18] sm:$0xff]
    %v915 = vld [vmem:[#allocation10 + $0x20] sm:$0xf]
    %v916 = vld [vmem:[#allocation10 + $0x24] sm:$0xff]
    %v917 = vld [vmem:[#allocation10 + $0x2c] sm:$0xf]
    %v918 = vld [vmem:[#allocation10 + $0x30] sm:$0xff]
    %v919 = vld [vmem:[#allocation10 + $0x38] sm:$0xf]
    %v920 = vld [vmem:[#allocation10 + $0x3c] sm:$0xff]
    %v921 = vld [vmem:[#allocation10 + $0x44] sm:$0xf]
    %v922 = vld [vmem:[#allocation10 + $0x48] sm:$0xff]
    %v923 = vld [vmem:[#allocation10 + $0x50] sm:$0xf]
    %v924 = vld [vmem:[#allocation10 + $0x54] sm:$0xff]
    %v925 = vld [vmem:[#allocation10 + $0x5c] sm:$0xf]
    %v926 = vld [vmem:[#allocation10 + $0x60] sm:$0xff]
    %v927 = vld [vmem:[#allocation10 + $0x68] sm:$0xf]
    %v928 = vld [vmem:[#allocation10 + $0x6c] sm:$0xff]
    %v929 = vld [vmem:[#allocation10 + $0x74] sm:$0xf]
    %v930 = vld [vmem:[#allocation10 + $0x78] sm:$0xff]
    %v931 = vld [vmem:[#allocation10 + $0x80] sm:$0xf]
    %v932 = vld [vmem:[#allocation10 + $0x84] sm:$0xff]
    %v933 = vld [vmem:[#allocation10 + $0x8c] sm:$0xf]
    %v934 = vld [vmem:[#allocation10 + $0x90] sm:$0xff]
    %v935 = vld [vmem:[#allocation10 + $0x98] sm:$0xf]
    %v936 = vld [vmem:[#allocation10 + $0x9c] sm:$0xff]
    %v937 = vld [vmem:[#allocation10 + $0xa4] sm:$0xf]
    %v938 = vld [vmem:[#allocation10 + $0xa8] sm:$0xff]
    %v939 = vld [vmem:[#allocation10 + $0xb0] sm:$0xf]
    %v940 = vld [vmem:[#allocation10 + $0xb4] sm:$0xff]
    %v941 = vld [vmem:[#allocation10 + $0xbc] sm:$0xf]
    %v974 = vunpack.c.l.b16 %v910
    %v975 = vunpack.c.h.b16 %v910
    %v976 = vunpack.c.l.b16 %v911
    %v977 = vunpack.c.l.b16 %v912
    %v978 = vunpack.c.h.b16 %v912
    %v979 = vunpack.c.l.b16 %v913
    %v980 = vunpack.c.l.b16 %v914
    %v981 = vunpack.c.h.b16 %v914
    %v982 = vunpack.c.l.b16 %v915
    %v983 = vunpack.c.l.b16 %v916
    %v984 = vunpack.c.h.b16 %v916
    %v985 = vunpack.c.l.b16 %v917
    %v986 = vunpack.c.l.b16 %v918
    %v987 = vunpack.c.h.b16 %v918
    %v988 = vunpack.c.l.b16 %v919
    %v989 = vunpack.c.l.b16 %v920
    %v990 = vunpack.c.h.b16 %v920
    %v991 = vunpack.c.l.b16 %v921
    %v992 = vunpack.c.l.b16 %v922
    %v993 = vunpack.c.h.b16 %v922
    %v994 = vunpack.c.l.b16 %v923
    %v995 = vunpack.c.l.b16 %v924
    %v996 = vunpack.c.h.b16 %v924
    %v997 = vunpack.c.l.b16 %v925
    %v998 = vunpack.c.l.b16 %v926
    %v999 = vunpack.c.h.b16 %v926
    %v1000 = vunpack.c.l.b16 %v927
    %v1001 = vunpack.c.l.b16 %v928
    %v1002 = vunpack.c.h.b16 %v928
    %v1003 = vunpack.c.l.b16 %v929
    %v1004 = vunpack.c.l.b16 %v930
    %v1005 = vunpack.c.h.b16 %v930
    %v1006 = vunpack.c.l.b16 %v931
    %v1007 = vunpack.c.l.b16 %v932
    %v1008 = vunpack.c.h.b16 %v932
    %v1009 = vunpack.c.l.b16 %v933
    %v1010 = vunpack.c.l.b16 %v934
    %v1011 = vunpack.c.h.b16 %v934
    %v1012 = vunpack.c.l.b16 %v935
    %v1013 = vunpack.c.l.b16 %v936
    %v1014 = vunpack.c.h.b16 %v936
    %v1015 = vunpack.c.l.b16 %v937
    %v1016 = vunpack.c.l.b16 %v938
    %v1017 = vunpack.c.h.b16 %v938
    %v1018 = vunpack.c.l.b16 %v939
    %v1019 = vunpack.c.l.b16 %v940
    %v1020 = vunpack.c.h.b16 %v940
    %v1021 = vunpack.c.l.b16 %v941
    %v1022 = vpack.c.b16 %v977, %v974
    %v1023 = vpack.c.b16 %v978, %v975
    %v1024 = vpack.c.b16 %v979, %v976
    %v1025 = vpack.c.b16 %v983, %v980
    %v1026 = vpack.c.b16 %v984, %v981
    %v1027 = vpack.c.b16 %v985, %v982
    %v1028 = vpack.c.b16 %v989, %v986
    %v1029 = vpack.c.b16 %v990, %v987
    %v1030 = vpack.c.b16 %v991, %v988
    %v1031 = vpack.c.b16 %v995, %v992
    %v1032 = vpack.c.b16 %v996, %v993
    %v1033 = vpack.c.b16 %v997, %v994
    %v1034 = vpack.c.b16 %v1001, %v998
    %v1035 = vpack.c.b16 %v1002, %v999
    %v1036 = vpack.c.b16 %v1003, %v1000
    %v1037 = vpack.c.b16 %v1007, %v1004
    %v1038 = vpack.c.b16 %v1008, %v1005
    %v1039 = vpack.c.b16 %v1009, %v1006
    %v1040 = vpack.c.b16 %v1013, %v1010
    %v1041 = vpack.c.b16 %v1014, %v1011
    %v1042 = vpack.c.b16 %v1015, %v1012
    %v1043 = vpack.c.b16 %v1019, %v1016
    %v1044 = vpack.c.b16 %v1020, %v1017
    %v1045 = vpack.c.b16 %v1021, %v1018
    %1070 = vmatprep.subr.bf16.mxu0 %v1023
    %1071 = vmatpush1.bf16.msra.mxu0 %v1022
    %1072 = vmatprep.subr.bf16.mxu0 %v1026
    %1073 = vmatpush1.bf16.msra.mxu0 %v1025
    %1074 = vmatprep.subr.bf16.mxu0 %v1029
    %1075 = vmatpush1.bf16.msra.mxu0 %v1028
    %1076 = vmatprep.subr.bf16.mxu0 %v1032
    %1077 = vmatpush1.bf16.msra.mxu0 %v1031
    %1078 = vmatprep.subr.bf16.mxu0 %v1035
    %1079 = vmatpush1.bf16.msra.mxu0 %v1034
    %1080 = vmatprep.subr.bf16.mxu0 %v1038
    %1081 = vmatpush1.bf16.msra.mxu0 %v1037
    %1082 = vmatprep.subr.bf16.mxu0 %v1041
    %1083 = vmatpush1.bf16.msra.mxu0 %v1040
    %1084 = vmatprep.subr.bf16.mxu0 %v1044
    %1085 = vmatpush1.bf16.msra.mxu0 %v1043
    %1086 = vmatprep.subr.bf16.mxu0 0
    %1087 = vmatpush1.bf16.msra.mxu0 0
    %1088 = vmatprep.subr.bf16.mxu0 0
    %1089 = vmatpush1.bf16.msra.mxu0 0
    %1090 = vmatprep.subr.bf16.mxu0 0
    %1091 = vmatpush1.bf16.msra.mxu0 0
    %1092 = vmatprep.subr.bf16.mxu0 0
    %1093 = vmatpush1.bf16.msra.mxu0 0
    %1094 = vmatprep.subr.bf16.mxu0 0
    %1095 = vmatpush1.bf16.msra.mxu0 0
    %1096 = vmatprep.subr.bf16.mxu0 0
    %1097 = vmatpush1.bf16.msra.mxu0 0
    %1098 = vmatprep.subr.bf16.mxu0 0
    %1099 = vmatpush1.bf16.msra.mxu0 0
    %1100 = vmatprep.subr.bf16.mxu0 0
    %1101 = vmatpush1.bf16.msra.mxu0 0
    %1102 = vmatprep.mubr.bf16.mxu0 0
    %1103 = vmatmul.mubr.bf16.gmra.mrb[0].mxu0 %v909
    %v1104 = vpop.f32.mrb[0].mxu0
    %v1105 = vadd.f32 0.0, %v1104
    %v1106 = vpop.f32.mrb[0].mxu0
    %v1107 = vadd.f32 0.0, %v1106
    %v1108 = vpop.f32.mrb[0].mxu0
    %v1109 = vpop.f32.mrb[0].mxu0
    %1110 = vdwg.mxu0
    %1111 = vmatprep.subr.bf16.mxu0 0
    %1112 = vmatpush1.bf16.msra.mxu0 %v1024
    %1113 = vmatprep.subr.bf16.mxu0 0
    %1114 = vmatpush1.bf16.msra.mxu0 %v1027
    %1115 = vmatprep.subr.bf16.mxu0 0
    %1116 = vmatpush1.bf16.msra.mxu0 %v1030
    %1117 = vmatprep.subr.bf16.mxu0 0
    %1118 = vmatpush1.bf16.msra.mxu0 %v1033
    %1119 = vmatprep.subr.bf16.mxu0 0
    %1120 = vmatpush1.bf16.msra.mxu0 %v1036
    %1121 = vmatprep.subr.bf16.mxu0 0
    %1122 = vmatpush1.bf16.msra.mxu0 %v1039
    %1123 = vmatprep.subr.bf16.mxu0 0
    %1124 = vmatpush1.bf16.msra.mxu0 %v1042
    %1125 = vmatprep.subr.bf16.mxu0 0
    %1126 = vmatpush1.bf16.msra.mxu0 %v1045
    %1127 = vmatprep.subr.bf16.mxu0 0
    %1128 = vmatpush1.bf16.msra.mxu0 0
    %1129 = vmatprep.subr.bf16.mxu0 0
    %1130 = vmatpush1.bf16.msra.mxu0 0
    %1131 = vmatprep.subr.bf16.mxu0 0
    %1132 = vmatpush1.bf16.msra.mxu0 0
    %1133 = vmatprep.subr.bf16.mxu0 0
    %1134 = vmatpush1.bf16.msra.mxu0 0
    %1135 = vmatprep.subr.bf16.mxu0 0
    %1136 = vmatpush1.bf16.msra.mxu0 0
    %1137 = vmatprep.subr.bf16.mxu0 0
    %1138 = vmatpush1.bf16.msra.mxu0 0
    %1139 = vmatprep.subr.bf16.mxu0 0
    %1140 = vmatpush1.bf16.msra.mxu0 0
    %1141 = vmatprep.subr.bf16.mxu0 0
    %1142 = vmatpush1.bf16.msra.mxu0 0
    %1143 = vmatprep.mubr.bf16.mxu0 0
    %1144 = vmatmul.mubr.bf16.gmra.mrb[0].mxu0 %v909
    %v1145 = vpop.f32.mrb[0].mxu0
    %v1146 = vadd.f32 0.0, %v1145
    %v1147 = vpop.f32.mrb[0].mxu0
    %v1148 = vpop.f32.mrb[0].mxu0
    %v1149 = vpop.f32.mrb[0].mxu0
    %1150 = vdwg.mxu0
    %s1151 = scalar_lea.vmem [#allocation2], 48
    %v1152 = vld [vmem:[%s1151] sm:$0xff]
    %v1153 = vld [vmem:[%s1151 + $0x8] sm:$0xff]
    %v1154 = vld [vmem:[%s1151 + $0x10] sm:$0xff]
    %v1155 = vadd.f32 %v1152, %v1105
    %v1156 = vadd.f32 %v1153, %v1107
    %v1157 = vxor.u32 %v1155, 2147483648
    %v1158 = vxor.u32 %v1156, 2147483648
    %v1159 = vmul.f32 %v1157, 1.442695
    %v1160 = vpow.pop %v1159
    %v1161 = vmul.f32 %v1158, 1.442695
    %v1162 = vpow.pop %v1161
    %v1163 = vadd.f32 %v1160, 1.0
    %v1164 = vadd.f32 %v1162, 1.0
    %v1165 = vrcp.pop %v1163
    %v1166 = vmul.f32 1.0, %v1165
    %v1167 = vrcp.pop %v1164
    %v1168 = vmul.f32 1.0, %v1167
    %v1169 = vadd.f32 %v1146, %v630
    %v1170 = vmul.f32 %v1166, %v1169
    %v1171 = vadd.f32 %v1154, %v1170
    %v1172 = vtanh.pop %v1171
    %v1173 = vsub.f32 %v906, %v1172
    %v1174 = vmul.f32 %v1168, %v1173
    %v1175 = vadd.f32 %v1172, %v1174
    %s1176 = scalar_lea.vmem [#allocation3], 16
    %1177 = vst [vmem:[%s1176] sm:$0xff] %v1175
    %v1178 = vpack.c.bf16 %v1175, %v1175
    %v1179 = vld [vmem:[#allocation10] sm:$0xff]
    %v1180 = vld [vmem:[#allocation10 + $0x8] sm:$0xf]
    %v1181 = vld [vmem:[#allocation10 + $0xc] sm:$0xff]
    %v1182 = vld [vmem:[#allocation10 + $0x14] sm:$0xf]
    %v1183 = vld [vmem:[#allocation10 + $0x18] sm:$0xff]
    %v1184 = vld [vmem:[#allocation10 + $0x20] sm:$0xf]
    %v1185 = vld [vmem:[#allocation10 + $0x24] sm:$0xff]
    %v1186 = vld [vmem:[#allocation10 + $0x2c] sm:$0xf]
    %v1187 = vld [vmem:[#allocation10 + $0x30] sm:$0xff]
    %v1188 = vld [vmem:[#allocation10 + $0x38] sm:$0xf]
    %v1189 = vld [vmem:[#allocation10 + $0x3c] sm:$0xff]
    %v1190 = vld [vmem:[#allocation10 + $0x44] sm:$0xf]
    %v1191 = vld [vmem:[#allocation10 + $0x48] sm:$0xff]
    %v1192 = vld [vmem:[#allocation10 + $0x50] sm:$0xf]
    %v1193 = vld [vmem:[#allocation10 + $0x54] sm:$0xff]
    %v1194 = vld [vmem:[#allocation10 + $0x5c] sm:$0xf]
    %v1195 = vld [vmem:[#allocation10 + $0x60] sm:$0xff]
    %v1196 = vld [vmem:[#allocation10 + $0x68] sm:$0xf]
    %v1197 = vld [vmem:[#allocation10 + $0x6c] sm:$0xff]
    %v1198 = vld [vmem:[#allocation10 + $0x74] sm:$0xf]
    %v1199 = vld [vmem:[#allocation10 + $0x78] sm:$0xff]
    %v1200 = vld [vmem:[#allocation10 + $0x80] sm:$0xf]
    %v1201 = vld [vmem:[#allocation10 + $0x84] sm:$0xff]
    %v1202 = vld [vmem:[#allocation10 + $0x8c] sm:$0xf]
    %v1203 = vld [vmem:[#allocation10 + $0x90] sm:$0xff]
    %v1204 = vld [vmem:[#allocation10 + $0x98] sm:$0xf]
    %v1205 = vld [vmem:[#allocation10 + $0x9c] sm:$0xff]
    %v1206 = vld [vmem:[#allocation10 + $0xa4] sm:$0xf]
    %v1207 = vld [vmem:[#allocation10 + $0xa8] sm:$0xff]
    %v1208 = vld [vmem:[#allocation10 + $0xb0] sm:$0xf]
    %v1209 = vld [vmem:[#allocation10 + $0xb4] sm:$0xff]
    %v1210 = vld [vmem:[#allocation10 + $0xbc] sm:$0xf]
    %v1243 = vunpack.c.l.b16 %v1179
    %v1244 = vunpack.c.h.b16 %v1179
    %v1245 = vunpack.c.l.b16 %v1180
    %v1246 = vunpack.c.l.b16 %v1181
    %v1247 = vunpack.c.h.b16 %v1181
    %v1248 = vunpack.c.l.b16 %v1182
    %v1249 = vunpack.c.l.b16 %v1183
    %v1250 = vunpack.c.h.b16 %v1183
    %v1251 = vunpack.c.l.b16 %v1184
    %v1252 = vunpack.c.l.b16 %v1185
    %v1253 = vunpack.c.h.b16 %v1185
    %v1254 = vunpack.c.l.b16 %v1186
    %v1255 = vunpack.c.l.b16 %v1187
    %v1256 = vunpack.c.h.b16 %v1187
    %v1257 = vunpack.c.l.b16 %v1188
    %v1258 = vunpack.c.l.b16 %v1189
    %v1259 = vunpack.c.h.b16 %v1189
    %v1260 = vunpack.c.l.b16 %v1190
    %v1261 = vunpack.c.l.b16 %v1191
    %v1262 = vunpack.c.h.b16 %v1191
    %v1263 = vunpack.c.l.b16 %v1192
    %v1264 = vunpack.c.l.b16 %v1193
    %v1265 = vunpack.c.h.b16 %v1193
    %v1266 = vunpack.c.l.b16 %v1194
    %v1267 = vunpack.c.l.b16 %v1195
    %v1268 = vunpack.c.h.b16 %v1195
    %v1269 = vunpack.c.l.b16 %v1196
    %v1270 = vunpack.c.l.b16 %v1197
    %v1271 = vunpack.c.h.b16 %v1197
    %v1272 = vunpack.c.l.b16 %v1198
    %v1273 = vunpack.c.l.b16 %v1199
    %v1274 = vunpack.c.h.b16 %v1199
    %v1275 = vunpack.c.l.b16 %v1200
    %v1276 = vunpack.c.l.b16 %v1201
    %v1277 = vunpack.c.h.b16 %v1201
    %v1278 = vunpack.c.l.b16 %v1202
    %v1279 = vunpack.c.l.b16 %v1203
    %v1280 = vunpack.c.h.b16 %v1203
    %v1281 = vunpack.c.l.b16 %v1204
    %v1282 = vunpack.c.l.b16 %v1205
    %v1283 = vunpack.c.h.b16 %v1205
    %v1284 = vunpack.c.l.b16 %v1206
    %v1285 = vunpack.c.l.b16 %v1207
    %v1286 = vunpack.c.h.b16 %v1207
    %v1287 = vunpack.c.l.b16 %v1208
    %v1288 = vunpack.c.l.b16 %v1209
    %v1289 = vunpack.c.h.b16 %v1209
    %v1290 = vunpack.c.l.b16 %v1210
    %v1291 = vpack.c.b16 %v1246, %v1243
    %v1292 = vpack.c.b16 %v1247, %v1244
    %v1293 = vpack.c.b16 %v1248, %v1245
    %v1294 = vpack.c.b16 %v1252, %v1249
    %v1295 = vpack.c.b16 %v1253, %v1250
    %v1296 = vpack.c.b16 %v1254, %v1251
    %v1297 = vpack.c.b16 %v1258, %v1255
    %v1298 = vpack.c.b16 %v1259, %v1256
    %v1299 = vpack.c.b16 %v1260, %v1257
    %v1300 = vpack.c.b16 %v1264, %v1261
    %v1301 = vpack.c.b16 %v1265, %v1262
    %v1302 = vpack.c.b16 %v1266, %v1263
    %v1303 = vpack.c.b16 %v1270, %v1267
    %v1304 = vpack.c.b16 %v1271, %v1268
    %v1305 = vpack.c.b16 %v1272, %v1269
    %v1306 = vpack.c.b16 %v1276, %v1273
    %v1307 = vpack.c.b16 %v1277, %v1274
    %v1308 = vpack.c.b16 %v1278, %v1275
    %v1309 = vpack.c.b16 %v1282, %v1279
    %v1310 = vpack.c.b16 %v1283, %v1280
    %v1311 = vpack.c.b16 %v1284, %v1281
    %v1312 = vpack.c.b16 %v1288, %v1285
    %v1313 = vpack.c.b16 %v1289, %v1286
    %v1314 = vpack.c.b16 %v1290, %v1287
    %1339 = vmatprep.subr.bf16.mxu0 %v1292
    %1340 = vmatpush1.bf16.msra.mxu0 %v1291
    %1341 = vmatprep.subr.bf16.mxu0 %v1295
    %1342 = vmatpush1.bf16.msra.mxu0 %v1294
    %1343 = vmatprep.subr.bf16.mxu0 %v1298
    %1344 = vmatpush1.bf16.msra.mxu0 %v1297
    %1345 = vmatprep.subr.bf16.mxu0 %v1301
    %1346 = vmatpush1.bf16.msra.mxu0 %v1300
    %1347 = vmatprep.subr.bf16.mxu0 %v1304
    %1348 = vmatpush1.bf16.msra.mxu0 %v1303
    %1349 = vmatprep.subr.bf16.mxu0 %v1307
    %1350 = vmatpush1.bf16.msra.mxu0 %v1306
    %1351 = vmatprep.subr.bf16.mxu0 %v1310
    %1352 = vmatpush1.bf16.msra.mxu0 %v1309
    %1353 = vmatprep.subr.bf16.mxu0 %v1313
    %1354 = vmatpush1.bf16.msra.mxu0 %v1312
    %1355 = vmatprep.subr.bf16.mxu0 0
    %1356 = vmatpush1.bf16.msra.mxu0 0
    %1357 = vmatprep.subr.bf16.mxu0 0
    %1358 = vmatpush1.bf16.msra.mxu0 0
    %1359 = vmatprep.subr.bf16.mxu0 0
    %1360 = vmatpush1.bf16.msra.mxu0 0
    %1361 = vmatprep.subr.bf16.mxu0 0
    %1362 = vmatpush1.bf16.msra.mxu0 0
    %1363 = vmatprep.subr.bf16.mxu0 0
    %1364 = vmatpush1.bf16.msra.mxu0 0
    %1365 = vmatprep.subr.bf16.mxu0 0
    %1366 = vmatpush1.bf16.msra.mxu0 0
    %1367 = vmatprep.subr.bf16.mxu0 0
    %1368 = vmatpush1.bf16.msra.mxu0 0
    %1369 = vmatprep.subr.bf16.mxu0 0
    %1370 = vmatpush1.bf16.msra.mxu0 0
    %1371 = vmatprep.mubr.bf16.mxu0 0
    %1372 = vmatmul.mubr.bf16.gmra.mrb[0].mxu0 %v1178
    %v1373 = vpop.f32.mrb[0].mxu0
    %v1374 = vadd.f32 0.0, %v1373
    %v1375 = vpop.f32.mrb[0].mxu0
    %v1376 = vadd.f32 0.0, %v1375
    %v1377 = vpop.f32.mrb[0].mxu0
    %v1378 = vpop.f32.mrb[0].mxu0
    %1379 = vdwg.mxu0
    %1380 = vmatprep.subr.bf16.mxu0 0
    %1381 = vmatpush1.bf16.msra.mxu0 %v1293
    %1382 = vmatprep.subr.bf16.mxu0 0
    %1383 = vmatpush1.bf16.msra.mxu0 %v1296
    %1384 = vmatprep.subr.bf16.mxu0 0
    %1385 = vmatpush1.bf16.msra.mxu0 %v1299
    %1386 = vmatprep.subr.bf16.mxu0 0
    %1387 = vmatpush1.bf16.msra.mxu0 %v1302
    %1388 = vmatprep.subr.bf16.mxu0 0
    %1389 = vmatpush1.bf16.msra.mxu0 %v1305
    %1390 = vmatprep.subr.bf16.mxu0 0
    %1391 = vmatpush1.bf16.msra.mxu0 %v1308
    %1392 = vmatprep.subr.bf16.mxu0 0
    %1393 = vmatpush1.bf16.msra.mxu0 %v1311
    %1394 = vmatprep.subr.bf16.mxu0 0
    %1395 = vmatpush1.bf16.msra.mxu0 %v1314
    %1396 = vmatprep.subr.bf16.mxu0 0
    %1397 = vmatpush1.bf16.msra.mxu0 0
    %1398 = vmatprep.subr.bf16.mxu0 0
    %1399 = vmatpush1.bf16.msra.mxu0 0
    %1400 = vmatprep.subr.bf16.mxu0 0
    %1401 = vmatpush1.bf16.msra.mxu0 0
    %1402 = vmatprep.subr.bf16.mxu0 0
    %1403 = vmatpush1.bf16.msra.mxu0 0
    %1404 = vmatprep.subr.bf16.mxu0 0
    %1405 = vmatpush1.bf16.msra.mxu0 0
    %1406 = vmatprep.subr.bf16.mxu0 0
    %1407 = vmatpush1.bf16.msra.mxu0 0
    %1408 = vmatprep.subr.bf16.mxu0 0
    %1409 = vmatpush1.bf16.msra.mxu0 0
    %1410 = vmatprep.subr.bf16.mxu0 0
    %1411 = vmatpush1.bf16.msra.mxu0 0
    %1412 = vmatprep.mubr.bf16.mxu0 0
    %1413 = vmatmul.mubr.bf16.gmra.mrb[0].mxu0 %v1178
    %v1414 = vpop.f32.mrb[0].mxu0
    %v1415 = vadd.f32 0.0, %v1414
    %v1416 = vpop.f32.mrb[0].mxu0
    %v1417 = vpop.f32.mrb[0].mxu0
    %v1418 = vpop.f32.mrb[0].mxu0
    %1419 = vdwg.mxu0
    %s1420 = scalar_lea.vmem [#allocation2], 72
    %v1421 = vld [vmem:[%s1420] sm:$0xff]
    %v1422 = vld [vmem:[%s1420 + $0x8] sm:$0xff]
    %v1423 = vld [vmem:[%s1420 + $0x10] sm:$0xff]
    %v1424 = vadd.f32 %v1421, %v1374
    %v1425 = vadd.f32 %v1422, %v1376
    %v1426 = vxor.u32 %v1424, 2147483648
    %v1427 = vxor.u32 %v1425, 2147483648
    %v1428 = vmul.f32 %v1426, 1.442695
    %v1429 = vpow.pop %v1428
    %v1430 = vmul.f32 %v1427, 1.442695
    %v1431 = vpow.pop %v1430
    %v1432 = vadd.f32 %v1429, 1.0
    %v1433 = vadd.f32 %v1431, 1.0
    %v1434 = vrcp.pop %v1432
    %v1435 = vmul.f32 1.0, %v1434
    %v1436 = vrcp.pop %v1433
    %v1437 = vmul.f32 1.0, %v1436
    %v1438 = vadd.f32 %v1415, %v630
    %v1439 = vmul.f32 %v1435, %v1438
    %v1440 = vadd.f32 %v1423, %v1439
    %v1441 = vtanh.pop %v1440
    %v1442 = vsub.f32 %v1175, %v1441
    %v1443 = vmul.f32 %v1437, %v1442
    %v1444 = vadd.f32 %v1441, %v1443
    %s1445 = scalar_lea.vmem [#allocation3], 24
    %1446 = vst [vmem:[%s1445] sm:$0xff] %v1444
    %v1447 = vpack.c.bf16 %v1444, %v1444
    %v1448 = vld [vmem:[#allocation10] sm:$0xff]
    %v1449 = vld [vmem:[#allocation10 + $0x8] sm:$0xf]
    %v1450 = vld [vmem:[#allocation10 + $0xc] sm:$0xff]
    %v1451 = vld [vmem:[#allocation10 + $0x14] sm:$0xf]
    %v1452 = vld [vmem:[#allocation10 + $0x18] sm:$0xff]
    %v1453 = vld [vmem:[#allocation10 + $0x20] sm:$0xf]
    %v1454 = vld [vmem:[#allocation10 + $0x24] sm:$0xff]
    %v1455 = vld [vmem:[#allocation10 + $0x2c] sm:$0xf]
    %v1456 = vld [vmem:[#allocation10 + $0x30] sm:$0xff]
    %v1457 = vld [vmem:[#allocation10 + $0x38] sm:$0xf]
    %v1458 = vld [vmem:[#allocation10 + $0x3c] sm:$0xff]
    %v1459 = vld [vmem:[#allocation10 + $0x44] sm:$0xf]
    %v1460 = vld [vmem:[#allocation10 + $0x48] sm:$0xff]
    %v1461 = vld [vmem:[#allocation10 + $0x50] sm:$0xf]
    %v1462 = vld [vmem:[#allocation10 + $0x54] sm:$0xff]
    %v1463 = vld [vmem:[#allocation10 + $0x5c] sm:$0xf]
    %v1464 = vld [vmem:[#allocation10 + $0x60] sm:$0xff]
    %v1465 = vld [vmem:[#allocation10 + $0x68] sm:$0xf]
    %v1466 = vld [vmem:[#allocation10 + $0x6c] sm:$0xff]
    %v1467 = vld [vmem:[#allocation10 + $0x74] sm:$0xf]
    %v1468 = vld [vmem:[#allocation10 + $0x78] sm:$0xff]
    %v1469 = vld [vmem:[#allocation10 + $0x80] sm:$0xf]
    %v1470 = vld [vmem:[#allocation10 + $0x84] sm:$0xff]
    %v1471 = vld [vmem:[#allocation10 + $0x8c] sm:$0xf]
    %v1472 = vld [vmem:[#allocation10 + $0x90] sm:$0xff]
    %v1473 = vld [vmem:[#allocation10 + $0x98] sm:$0xf]
    %v1474 = vld [vmem:[#allocation10 + $0x9c] sm:$0xff]
    %v1475 = vld [vmem:[#allocation10 + $0xa4] sm:$0xf]
    %v1476 = vld [vmem:[#allocation10 + $0xa8] sm:$0xff]
    %v1477 = vld [vmem:[#allocation10 + $0xb0] sm:$0xf]
    %v1478 = vld [vmem:[#allocation10 + $0xb4] sm:$0xff]
    %v1479 = vld [vmem:[#allocation10 + $0xbc] sm:$0xf]
    %v1512 = vunpack.c.l.b16 %v1448
    %v1513 = vunpack.c.h.b16 %v1448
    %v1514 = vunpack.c.l.b16 %v1449
    %v1515 = vunpack.c.l.b16 %v1450
    %v1516 = vunpack.c.h.b16 %v1450
    %v1517 = vunpack.c.l.b16 %v1451
    %v1518 = vunpack.c.l.b16 %v1452
    %v1519 = vunpack.c.h.b16 %v1452
    %v1520 = vunpack.c.l.b16 %v1453
    %v1521 = vunpack.c.l.b16 %v1454
    %v1522 = vunpack.c.h.b16 %v1454
    %v1523 = vunpack.c.l.b16 %v1455
    %v1524 = vunpack.c.l.b16 %v1456
    %v1525 = vunpack.c.h.b16 %v1456
    %v1526 = vunpack.c.l.b16 %v1457
    %v1527 = vunpack.c.l.b16 %v1458
    %v1528 = vunpack.c.h.b16 %v1458
    %v1529 = vunpack.c.l.b16 %v1459
    %v1530 = vunpack.c.l.b16 %v1460
    %v1531 = vunpack.c.h.b16 %v1460
    %v1532 = vunpack.c.l.b16 %v1461
    %v1533 = vunpack.c.l.b16 %v1462
    %v1534 = vunpack.c.h.b16 %v1462
    %v1535 = vunpack.c.l.b16 %v1463
    %v1536 = vunpack.c.l.b16 %v1464
    %v1537 = vunpack.c.h.b16 %v1464
    %v1538 = vunpack.c.l.b16 %v1465
    %v1539 = vunpack.c.l.b16 %v1466
    %v1540 = vunpack.c.h.b16 %v1466
    %v1541 = vunpack.c.l.b16 %v1467
    %v1542 = vunpack.c.l.b16 %v1468
    %v1543 = vunpack.c.h.b16 %v1468
    %v1544 = vunpack.c.l.b16 %v1469
    %v1545 = vunpack.c.l.b16 %v1470
    %v1546 = vunpack.c.h.b16 %v1470
    %v1547 = vunpack.c.l.b16 %v1471
    %v1548 = vunpack.c.l.b16 %v1472
    %v1549 = vunpack.c.h.b16 %v1472
    %v1550 = vunpack.c.l.b16 %v1473
    %v1551 = vunpack.c.l.b16 %v1474
    %v1552 = vunpack.c.h.b16 %v1474
    %v1553 = vunpack.c.l.b16 %v1475
    %v1554 = vunpack.c.l.b16 %v1476
    %v1555 = vunpack.c.h.b16 %v1476
    %v1556 = vunpack.c.l.b16 %v1477
    %v1557 = vunpack.c.l.b16 %v1478
    %v1558 = vunpack.c.h.b16 %v1478
    %v1559 = vunpack.c.l.b16 %v1479
    %v1560 = vpack.c.b16 %v1515, %v1512
    %v1561 = vpack.c.b16 %v1516, %v1513
    %v1562 = vpack.c.b16 %v1517, %v1514
    %v1563 = vpack.c.b16 %v1521, %v1518
    %v1564 = vpack.c.b16 %v1522, %v1519
    %v1565 = vpack.c.b16 %v1523, %v1520
    %v1566 = vpack.c.b16 %v1527, %v1524
    %v1567 = vpack.c.b16 %v1528, %v1525
    %v1568 = vpack.c.b16 %v1529, %v1526
    %v1569 = vpack.c.b16 %v1533, %v1530
    %v1570 = vpack.c.b16 %v1534, %v1531
    %v1571 = vpack.c.b16 %v1535, %v1532
    %v1572 = vpack.c.b16 %v1539, %v1536
    %v1573 = vpack.c.b16 %v1540, %v1537
    %v1574 = vpack.c.b16 %v1541, %v1538
    %v1575 = vpack.c.b16 %v1545, %v1542
    %v1576 = vpack.c.b16 %v1546, %v1543
    %v1577 = vpack.c.b16 %v1547, %v1544
    %v1578 = vpack.c.b16 %v1551, %v1548
    %v1579 = vpack.c.b16 %v1552, %v1549
    %v1580 = vpack.c.b16 %v1553, %v1550
    %v1581 = vpack.c.b16 %v1557, %v1554
    %v1582 = vpack.c.b16 %v1558, %v1555
    %v1583 = vpack.c.b16 %v1559, %v1556
    %1608 = vmatprep.subr.bf16.mxu0 %v1561
    %1609 = vmatpush1.bf16.msra.mxu0 %v1560
    %1610 = vmatprep.subr.bf16.mxu0 %v1564
    %1611 = vmatpush1.bf16.msra.mxu0 %v1563
    %1612 = vmatprep.subr.bf16.mxu0 %v1567
    %1613 = vmatpush1.bf16.msra.mxu0 %v1566
    %1614 = vmatprep.subr.bf16.mxu0 %v1570
    %1615 = vmatpush1.bf16.msra.mxu0 %v1569
    %1616 = vmatprep.subr.bf16.mxu0 %v1573
    %1617 = vmatpush1.bf16.msra.mxu0 %v1572
    %1618 = vmatprep.subr.bf16.mxu0 %v1576
    %1619 = vmatpush1.bf16.msra.mxu0 %v1575
    %1620 = vmatprep.subr.bf16.mxu0 %v1579
    %1621 = vmatpush1.bf16.msra.mxu0 %v1578
    %1622 = vmatprep.subr.bf16.mxu0 %v1582
    %1623 = vmatpush1.bf16.msra.mxu0 %v1581
    %1624 = vmatprep.subr.bf16.mxu0 0
    %1625 = vmatpush1.bf16.msra.mxu0 0
    %1626 = vmatprep.subr.bf16.mxu0 0
    %1627 = vmatpush1.bf16.msra.mxu0 0
    %1628 = vmatprep.subr.bf16.mxu0 0
    %1629 = vmatpush1.bf16.msra.mxu0 0
    %1630 = vmatprep.subr.bf16.mxu0 0
    %1631 = vmatpush1.bf16.msra.mxu0 0
    %1632 = vmatprep.subr.bf16.mxu0 0
    %1633 = vmatpush1.bf16.msra.mxu0 0
    %1634 = vmatprep.subr.bf16.mxu0 0
    %1635 = vmatpush1.bf16.msra.mxu0 0
    %1636 = vmatprep.subr.bf16.mxu0 0
    %1637 = vmatpush1.bf16.msra.mxu0 0
    %1638 = vmatprep.subr.bf16.mxu0 0
    %1639 = vmatpush1.bf16.msra.mxu0 0
    %1640 = vmatprep.mubr.bf16.mxu0 0
    %1641 = vmatmul.mubr.bf16.gmra.mrb[0].mxu0 %v1447
    %v1642 = vpop.f32.mrb[0].mxu0
    %v1643 = vadd.f32 0.0, %v1642
    %v1644 = vpop.f32.mrb[0].mxu0
    %v1645 = vadd.f32 0.0, %v1644
    %v1646 = vpop.f32.mrb[0].mxu0
    %v1647 = vpop.f32.mrb[0].mxu0
    %1648 = vdwg.mxu0
    %1649 = vmatprep.subr.bf16.mxu0 0
    %1650 = vmatpush1.bf16.msra.mxu0 %v1562
    %1651 = vmatprep.subr.bf16.mxu0 0
    %1652 = vmatpush1.bf16.msra.mxu0 %v1565
    %1653 = vmatprep.subr.bf16.mxu0 0
    %1654 = vmatpush1.bf16.msra.mxu0 %v1568
    %1655 = vmatprep.subr.bf16.mxu0 0
    %1656 = vmatpush1.bf16.msra.mxu0 %v1571
    %1657 = vmatprep.subr.bf16.mxu0 0
    %1658 = vmatpush1.bf16.msra.mxu0 %v1574
    %1659 = vmatprep.subr.bf16.mxu0 0
    %1660 = vmatpush1.bf16.msra.mxu0 %v1577
    %1661 = vmatprep.subr.bf16.mxu0 0
    %1662 = vmatpush1.bf16.msra.mxu0 %v1580
    %1663 = vmatprep.subr.bf16.mxu0 0
    %1664 = vmatpush1.bf16.msra.mxu0 %v1583
    %1665 = vmatprep.subr.bf16.mxu0 0
    %1666 = vmatpush1.bf16.msra.mxu0 0
    %1667 = vmatprep.subr.bf16.mxu0 0
    %1668 = vmatpush1.bf16.msra.mxu0 0
    %1669 = vmatprep.subr.bf16.mxu0 0
    %1670 = vmatpush1.bf16.msra.mxu0 0
    %1671 = vmatprep.subr.bf16.mxu0 0
    %1672 = vmatpush1.bf16.msra.mxu0 0
    %1673 = vmatprep.subr.bf16.mxu0 0
    %1674 = vmatpush1.bf16.msra.mxu0 0
    %1675 = vmatprep.subr.bf16.mxu0 0
    %1676 = vmatpush1.bf16.msra.mxu0 0
    %1677 = vmatprep.subr.bf16.mxu0 0
    %1678 = vmatpush1.bf16.msra.mxu0 0
    %1679 = vmatprep.subr.bf16.mxu0 0
    %1680 = vmatpush1.bf16.msra.mxu0 0
    %1681 = vmatprep.mubr.bf16.mxu0 0
    %1682 = vmatmul.mubr.bf16.gmra.mrb[0].mxu0 %v1447
    %v1683 = vpop.f32.mrb[0].mxu0
    %v1684 = vadd.f32 0.0, %v1683
    %v1685 = vpop.f32.mrb[0].mxu0
    %v1686 = vpop.f32.mrb[0].mxu0
    %v1687 = vpop.f32.mrb[0].mxu0
    %1688 = vdwg.mxu0
    %s1689 = scalar_lea.vmem [#allocation2], 96
    %v1690 = vld [vmem:[%s1689] sm:$0xff]
    %v1691 = vld [vmem:[%s1689 + $0x8] sm:$0xff]
    %v1692 = vld [vmem:[%s1689 + $0x10] sm:$0xff]
    %v1693 = vadd.f32 %v1690, %v1643
    %v1694 = vadd.f32 %v1691, %v1645
    %v1695 = vxor.u32 %v1693, 2147483648
    %v1696 = vxor.u32 %v1694, 2147483648
    %v1697 = vmul.f32 %v1695, 1.442695
    %v1698 = vpow.pop %v1697
    %v1699 = vmul.f32 %v1696, 1.442695
    %v1700 = vpow.pop %v1699
    %v1701 = vadd.f32 %v1698, 1.0
    %v1702 = vadd.f32 %v1700, 1.0
    %v1703 = vrcp.pop %v1701
    %v1704 = vmul.f32 1.0, %v1703
    %v1705 = vrcp.pop %v1702
    %v1706 = vmul.f32 1.0, %v1705
    %v1707 = vadd.f32 %v1684, %v630
    %v1708 = vmul.f32 %v1704, %v1707
    %v1709 = vadd.f32 %v1692, %v1708
    %v1710 = vtanh.pop %v1709
    %v1711 = vsub.f32 %v1444, %v1710
    %v1712 = vmul.f32 %v1706, %v1711
    %v1713 = vadd.f32 %v1710, %v1712
    %s1714 = scalar_lea.vmem [#allocation3], 32
    %1715 = vst [vmem:[%s1714] sm:$0xff] %v1713
    %v1716 = vpack.c.bf16 %v1713, %v1713
    %v1717 = vld [vmem:[#allocation10] sm:$0xff]
    %v1718 = vld [vmem:[#allocation10 + $0x8] sm:$0xf]
    %v1719 = vld [vmem:[#allocation10 + $0xc] sm:$0xff]
    %v1720 = vld [vmem:[#allocation10 + $0x14] sm:$0xf]
    %v1721 = vld [vmem:[#allocation10 + $0x18] sm:$0xff]
    %v1722 = vld [vmem:[#allocation10 + $0x20] sm:$0xf]
    %v1723 = vld [vmem:[#allocation10 + $0x24] sm:$0xff]
    %v1724 = vld [vmem:[#allocation10 + $0x2c] sm:$0xf]
    %v1725 = vld [vmem:[#allocation10 + $0x30] sm:$0xff]
    %v1726 = vld [vmem:[#allocation10 + $0x38] sm:$0xf]
    %v1727 = vld [vmem:[#allocation10 + $0x3c] sm:$0xff]
    %v1728 = vld [vmem:[#allocation10 + $0x44] sm:$0xf]
    %v1729 = vld [vmem:[#allocation10 + $0x48] sm:$0xff]
    %v1730 = vld [vmem:[#allocation10 + $0x50] sm:$0xf]
    %v1731 = vld [vmem:[#allocation10 + $0x54] sm:$0xff]
    %v1732 = vld [vmem:[#allocation10 + $0x5c] sm:$0xf]
    %v1733 = vld [vmem:[#allocation10 + $0x60] sm:$0xff]
    %v1734 = vld [vmem:[#allocation10 + $0x68] sm:$0xf]
    %v1735 = vld [vmem:[#allocation10 + $0x6c] sm:$0xff]
    %v1736 = vld [vmem:[#allocation10 + $0x74] sm:$0xf]
    %v1737 = vld [vmem:[#allocation10 + $0x78] sm:$0xff]
    %v1738 = vld [vmem:[#allocation10 + $0x80] sm:$0xf]
    %v1739 = vld [vmem:[#allocation10 + $0x84] sm:$0xff]
    %v1740 = vld [vmem:[#allocation10 + $0x8c] sm:$0xf]
    %v1741 = vld [vmem:[#allocation10 + $0x90] sm:$0xff]
    %v1742 = vld [vmem:[#allocation10 + $0x98] sm:$0xf]
    %v1743 = vld [vmem:[#allocation10 + $0x9c] sm:$0xff]
    %v1744 = vld [vmem:[#allocation10 + $0xa4] sm:$0xf]
    %v1745 = vld [vmem:[#allocation10 + $0xa8] sm:$0xff]
    %v1746 = vld [vmem:[#allocation10 + $0xb0] sm:$0xf]
    %v1747 = vld [vmem:[#allocation10 + $0xb4] sm:$0xff]
    %v1748 = vld [vmem:[#allocation10 + $0xbc] sm:$0xf]
    %v1781 = vunpack.c.l.b16 %v1717
    %v1782 = vunpack.c.h.b16 %v1717
    %v1783 = vunpack.c.l.b16 %v1718
    %v1784 = vunpack.c.l.b16 %v1719
    %v1785 = vunpack.c.h.b16 %v1719
    %v1786 = vunpack.c.l.b16 %v1720
    %v1787 = vunpack.c.l.b16 %v1721
    %v1788 = vunpack.c.h.b16 %v1721
    %v1789 = vunpack.c.l.b16 %v1722
    %v1790 = vunpack.c.l.b16 %v1723
    %v1791 = vunpack.c.h.b16 %v1723
    %v1792 = vunpack.c.l.b16 %v1724
    %v1793 = vunpack.c.l.b16 %v1725
    %v1794 = vunpack.c.h.b16 %v1725
    %v1795 = vunpack.c.l.b16 %v1726
    %v1796 = vunpack.c.l.b16 %v1727
    %v1797 = vunpack.c.h.b16 %v1727
    %v1798 = vunpack.c.l.b16 %v1728
    %v1799 = vunpack.c.l.b16 %v1729
    %v1800 = vunpack.c.h.b16 %v1729
    %v1801 = vunpack.c.l.b16 %v1730
    %v1802 = vunpack.c.l.b16 %v1731
    %v1803 = vunpack.c.h.b16 %v1731
    %v1804 = vunpack.c.l.b16 %v1732
    %v1805 = vunpack.c.l.b16 %v1733
    %v1806 = vunpack.c.h.b16 %v1733
    %v1807 = vunpack.c.l.b16 %v1734
    %v1808 = vunpack.c.l.b16 %v1735
    %v1809 = vunpack.c.h.b16 %v1735
    %v1810 = vunpack.c.l.b16 %v1736
    %v1811 = vunpack.c.l.b16 %v1737
    %v1812 = vunpack.c.h.b16 %v1737
    %v1813 = vunpack.c.l.b16 %v1738
    %v1814 = vunpack.c.l.b16 %v1739
    %v1815 = vunpack.c.h.b16 %v1739
    %v1816 = vunpack.c.l.b16 %v1740
    %v1817 = vunpack.c.l.b16 %v1741
    %v1818 = vunpack.c.h.b16 %v1741
    %v1819 = vunpack.c.l.b16 %v1742
    %v1820 = vunpack.c.l.b16 %v1743
    %v1821 = vunpack.c.h.b16 %v1743
    %v1822 = vunpack.c.l.b16 %v1744
    %v1823 = vunpack.c.l.b16 %v1745
    %v1824 = vunpack.c.h.b16 %v1745
    %v1825 = vunpack.c.l.b16 %v1746
    %v1826 = vunpack.c.l.b16 %v1747
    %v1827 = vunpack.c.h.b16 %v1747
    %v1828 = vunpack.c.l.b16 %v1748
    %v1829 = vpack.c.b16 %v1784, %v1781
    %v1830 = vpack.c.b16 %v1785, %v1782
    %v1831 = vpack.c.b16 %v1786, %v1783
    %v1832 = vpack.c.b16 %v1790, %v1787
    %v1833 = vpack.c.b16 %v1791, %v1788
    %v1834 = vpack.c.b16 %v1792, %v1789
    %v1835 = vpack.c.b16 %v1796, %v1793
    %v1836 = vpack.c.b16 %v1797, %v1794
    %v1837 = vpack.c.b16 %v1798, %v1795
    %v1838 = vpack.c.b16 %v1802, %v1799
    %v1839 = vpack.c.b16 %v1803, %v1800
    %v1840 = vpack.c.b16 %v1804, %v1801
    %v1841 = vpack.c.b16 %v1808, %v1805
    %v1842 = vpack.c.b16 %v1809, %v1806
    %v1843 = vpack.c.b16 %v1810, %v1807
    %v1844 = vpack.c.b16 %v1814, %v1811
    %v1845 = vpack.c.b16 %v1815, %v1812
    %v1846 = vpack.c.b16 %v1816, %v1813
    %v1847 = vpack.c.b16 %v1820, %v1817
    %v1848 = vpack.c.b16 %v1821, %v1818
    %v1849 = vpack.c.b16 %v1822, %v1819
    %v1850 = vpack.c.b16 %v1826, %v1823
    %v1851 = vpack.c.b16 %v1827, %v1824
    %v1852 = vpack.c.b16 %v1828, %v1825
    %1877 = vmatprep.subr.bf16.mxu0 %v1830
    %1878 = vmatpush1.bf16.msra.mxu0 %v1829
    %1879 = vmatprep.subr.bf16.mxu0 %v1833
    %1880 = vmatpush1.bf16.msra.mxu0 %v1832
    %1881 = vmatprep.subr.bf16.mxu0 %v1836
    %1882 = vmatpush1.bf16.msra.mxu0 %v1835
    %1883 = vmatprep.subr.bf16.mxu0 %v1839
    %1884 = vmatpush1.bf16.msra.mxu0 %v1838
    %1885 = vmatprep.subr.bf16.mxu0 %v1842
    %1886 = vmatpush1.bf16.msra.mxu0 %v1841
    %1887 = vmatprep.subr.bf16.mxu0 %v1845
    %1888 = vmatpush1.bf16.msra.mxu0 %v1844
    %1889 = vmatprep.subr.bf16.mxu0 %v1848
    %1890 = vmatpush1.bf16.msra.mxu0 %v1847
    %1891 = vmatprep.subr.bf16.mxu0 %v1851
    %1892 = vmatpush1.bf16.msra.mxu0 %v1850
    %1893 = vmatprep.subr.bf16.mxu0 0
    %1894 = vmatpush1.bf16.msra.mxu0 0
    %1895 = vmatprep.subr.bf16.mxu0 0
    %1896 = vmatpush1.bf16.msra.mxu0 0
    %1897 = vmatprep.subr.bf16.mxu0 0
    %1898 = vmatpush1.bf16.msra.mxu0 0
    %1899 = vmatprep.subr.bf16.mxu0 0
    %1900 = vmatpush1.bf16.msra.mxu0 0
    %1901 = vmatprep.subr.bf16.mxu0 0
    %1902 = vmatpush1.bf16.msra.mxu0 0
    %1903 = vmatprep.subr.bf16.mxu0 0
    %1904 = vmatpush1.bf16.msra.mxu0 0
    %1905 = vmatprep.subr.bf16.mxu0 0
    %1906 = vmatpush1.bf16.msra.mxu0 0
    %1907 = vmatprep.subr.bf16.mxu0 0
    %1908 = vmatpush1.bf16.msra.mxu0 0
    %1909 = vmatprep.mubr.bf16.mxu0 0
    %1910 = vmatmul.mubr.bf16.gmra.mrb[0].mxu0 %v1716
    %v1911 = vpop.f32.mrb[0].mxu0
    %v1912 = vadd.f32 0.0, %v1911
    %v1913 = vpop.f32.mrb[0].mxu0
    %v1914 = vadd.f32 0.0, %v1913
    %v1915 = vpop.f32.mrb[0].mxu0
    %v1916 = vpop.f32.mrb[0].mxu0
    %1917 = vdwg.mxu0
    %1918 = vmatprep.subr.bf16.mxu0 0
    %1919 = vmatpush1.bf16.msra.mxu0 %v1831
    %1920 = vmatprep.subr.bf16.mxu0 0
    %1921 = vmatpush1.bf16.msra.mxu0 %v1834
    %1922 = vmatprep.subr.bf16.mxu0 0
    %1923 = vmatpush1.bf16.msra.mxu0 %v1837
    %1924 = vmatprep.subr.bf16.mxu0 0
    %1925 = vmatpush1.bf16.msra.mxu0 %v1840
    %1926 = vmatprep.subr.bf16.mxu0 0
    %1927 = vmatpush1.bf16.msra.mxu0 %v1843
    %1928 = vmatprep.subr.bf16.mxu0 0
    %1929 = vmatpush1.bf16.msra.mxu0 %v1846
    %1930 = vmatprep.subr.bf16.mxu0 0
    %1931 = vmatpush1.bf16.msra.mxu0 %v1849
    %1932 = vmatprep.subr.bf16.mxu0 0
    %1933 = vmatpush1.bf16.msra.mxu0 %v1852
    %1934 = vmatprep.subr.bf16.mxu0 0
    %1935 = vmatpush1.bf16.msra.mxu0 0
    %1936 = vmatprep.subr.bf16.mxu0 0
    %1937 = vmatpush1.bf16.msra.mxu0 0
    %1938 = vmatprep.subr.bf16.mxu0 0
    %1939 = vmatpush1.bf16.msra.mxu0 0
    %1940 = vmatprep.subr.bf16.mxu0 0
    %1941 = vmatpush1.bf16.msra.mxu0 0
    %1942 = vmatprep.subr.bf16.mxu0 0
    %1943 = vmatpush1.bf16.msra.mxu0 0
    %1944 = vmatprep.subr.bf16.mxu0 0
    %1945 = vmatpush1.bf16.msra.mxu0 0
    %1946 = vmatprep.subr.bf16.mxu0 0
    %1947 = vmatpush1.bf16.msra.mxu0 0
    %1948 = vmatprep.subr.bf16.mxu0 0
    %1949 = vmatpush1.bf16.msra.mxu0 0
    %1950 = vmatprep.mubr.bf16.mxu0 0
    %1951 = vmatmul.mubr.bf16.gmra.mrb[0].mxu0 %v1716
    %v1952 = vpop.f32.mrb[0].mxu0
    %v1953 = vadd.f32 0.0, %v1952
    %v1954 = vpop.f32.mrb[0].mxu0
    %v1955 = vpop.f32.mrb[0].mxu0
    %v1956 = vpop.f32.mrb[0].mxu0
    %1957 = vdwg.mxu0
    %s1958 = scalar_lea.vmem [#allocation2], 120
    %v1959 = vld [vmem:[%s1958] sm:$0xff]
    %v1960 = vld [vmem:[%s1958 + $0x8] sm:$0xff]
    %v1961 = vld [vmem:[%s1958 + $0x10] sm:$0xff]
    %v1962 = vadd.f32 %v1959, %v1912
    %v1963 = vadd.f32 %v1960, %v1914
    %v1964 = vxor.u32 %v1962, 2147483648
    %v1965 = vxor.u32 %v1963, 2147483648
    %v1966 = vmul.f32 %v1964, 1.442695
    %v1967 = vpow.pop %v1966
    %v1968 = vmul.f32 %v1965, 1.442695
    %v1969 = vpow.pop %v1968
    %v1970 = vadd.f32 %v1967, 1.0
    %v1971 = vadd.f32 %v1969, 1.0
    %v1972 = vrcp.pop %v1970
    %v1973 = vmul.f32 1.0, %v1972
    %v1974 = vrcp.pop %v1971
    %v1975 = vmul.f32 1.0, %v1974
    %v1976 = vadd.f32 %v1953, %v630
    %v1977 = vmul.f32 %v1973, %v1976
    %v1978 = vadd.f32 %v1961, %v1977
    %v1979 = vtanh.pop %v1978
    %v1980 = vsub.f32 %v1713, %v1979
    %v1981 = vmul.f32 %v1975, %v1980
    %v1982 = vadd.f32 %v1979, %v1981
    %s1983 = scalar_lea.vmem [#allocation3], 40
    %1984 = vst [vmem:[%s1983] sm:$0xff] %v1982
    %v1985 = vpack.c.bf16 %v1982, %v1982
    %v1986 = vld [vmem:[#allocation10] sm:$0xff]
    %v1987 = vld [vmem:[#allocation10 + $0x8] sm:$0xf]
    %v1988 = vld [vmem:[#allocation10 + $0xc] sm:$0xff]
    %v1989 = vld [vmem:[#allocation10 + $0x14] sm:$0xf]
    %v1990 = vld [vmem:[#allocation10 + $0x18] sm:$0xff]
    %v1991 = vld [vmem:[#allocation10 + $0x20] sm:$0xf]
    %v1992 = vld [vmem:[#allocation10 + $0x24] sm:$0xff]
    %v1993 = vld [vmem:[#allocation10 + $0x2c] sm:$0xf]
    %v1994 = vld [vmem:[#allocation10 + $0x30] sm:$0xff]
    %v1995 = vld [vmem:[#allocation10 + $0x38] sm:$0xf]
    %v1996 = vld [vmem:[#allocation10 + $0x3c] sm:$0xff]
    %v1997 = vld [vmem:[#allocation10 + $0x44] sm:$0xf]
    %v1998 = vld [vmem:[#allocation10 + $0x48] sm:$0xff]
    %v1999 = vld [vmem:[#allocation10 + $0x50] sm:$0xf]
    %v2000 = vld [vmem:[#allocation10 + $0x54] sm:$0xff]
    %v2001 = vld [vmem:[#allocation10 + $0x5c] sm:$0xf]
    %v2002 = vld [vmem:[#allocation10 + $0x60] sm:$0xff]
    %v2003 = vld [vmem:[#allocation10 + $0x68] sm:$0xf]
    %v2004 = vld [vmem:[#allocation10 + $0x6c] sm:$0xff]
    %v2005 = vld [vmem:[#allocation10 + $0x74] sm:$0xf]
    %v2006 = vld [vmem:[#allocation10 + $0x78] sm:$0xff]
    %v2007 = vld [vmem:[#allocation10 + $0x80] sm:$0xf]
    %v2008 = vld [vmem:[#allocation10 + $0x84] sm:$0xff]
    %v2009 = vld [vmem:[#allocation10 + $0x8c] sm:$0xf]
    %v2010 = vld [vmem:[#allocation10 + $0x90] sm:$0xff]
    %v2011 = vld [vmem:[#allocation10 + $0x98] sm:$0xf]
    %v2012 = vld [vmem:[#allocation10 + $0x9c] sm:$0xff]
    %v2013 = vld [vmem:[#allocation10 + $0xa4] sm:$0xf]
    %v2014 = vld [vmem:[#allocation10 + $0xa8] sm:$0xff]
    %v2015 = vld [vmem:[#allocation10 + $0xb0] sm:$0xf]
    %v2016 = vld [vmem:[#allocation10 + $0xb4] sm:$0xff]
    %v2017 = vld [vmem:[#allocation10 + $0xbc] sm:$0xf]
    %v2050 = vunpack.c.l.b16 %v1986
    %v2051 = vunpack.c.h.b16 %v1986
    %v2052 = vunpack.c.l.b16 %v1987
    %v2053 = vunpack.c.l.b16 %v1988
    %v2054 = vunpack.c.h.b16 %v1988
    %v2055 = vunpack.c.l.b16 %v1989
    %v2056 = vunpack.c.l.b16 %v1990
    %v2057 = vunpack.c.h.b16 %v1990
    %v2058 = vunpack.c.l.b16 %v1991
    %v2059 = vunpack.c.l.b16 %v1992
    %v2060 = vunpack.c.h.b16 %v1992
    %v2061 = vunpack.c.l.b16 %v1993
    %v2062 = vunpack.c.l.b16 %v1994
    %v2063 = vunpack.c.h.b16 %v1994
    %v2064 = vunpack.c.l.b16 %v1995
    %v2065 = vunpack.c.l.b16 %v1996
    %v2066 = vunpack.c.h.b16 %v1996
    %v2067 = vunpack.c.l.b16 %v1997
    %v2068 = vunpack.c.l.b16 %v1998
    %v2069 = vunpack.c.h.b16 %v1998
    %v2070 = vunpack.c.l.b16 %v1999
    %v2071 = vunpack.c.l.b16 %v2000
    %v2072 = vunpack.c.h.b16 %v2000
    %v2073 = vunpack.c.l.b16 %v2001
    %v2074 = vunpack.c.l.b16 %v2002
    %v2075 = vunpack.c.h.b16 %v2002
    %v2076 = vunpack.c.l.b16 %v2003
    %v2077 = vunpack.c.l.b16 %v2004
    %v2078 = vunpack.c.h.b16 %v2004
    %v2079 = vunpack.c.l.b16 %v2005
    %v2080 = vunpack.c.l.b16 %v2006
    %v2081 = vunpack.c.h.b16 %v2006
    %v2082 = vunpack.c.l.b16 %v2007
    %v2083 = vunpack.c.l.b16 %v2008
    %v2084 = vunpack.c.h.b16 %v2008
    %v2085 = vunpack.c.l.b16 %v2009
    %v2086 = vunpack.c.l.b16 %v2010
    %v2087 = vunpack.c.h.b16 %v2010
    %v2088 = vunpack.c.l.b16 %v2011
    %v2089 = vunpack.c.l.b16 %v2012
    %v2090 = vunpack.c.h.b16 %v2012
    %v2091 = vunpack.c.l.b16 %v2013
    %v2092 = vunpack.c.l.b16 %v2014
    %v2093 = vunpack.c.h.b16 %v2014
    %v2094 = vunpack.c.l.b16 %v2015
    %v2095 = vunpack.c.l.b16 %v2016
    %v2096 = vunpack.c.h.b16 %v2016
    %v2097 = vunpack.c.l.b16 %v2017
    %v2098 = vpack.c.b16 %v2053, %v2050
    %v2099 = vpack.c.b16 %v2054, %v2051
    %v2100 = vpack.c.b16 %v2055, %v2052
    %v2101 = vpack.c.b16 %v2059, %v2056
    %v2102 = vpack.c.b16 %v2060, %v2057
    %v2103 = vpack.c.b16 %v2061, %v2058
    %v2104 = vpack.c.b16 %v2065, %v2062
    %v2105 = vpack.c.b16 %v2066, %v2063
    %v2106 = vpack.c.b16 %v2067, %v2064
    %v2107 = vpack.c.b16 %v2071, %v2068
    %v2108 = vpack.c.b16 %v2072, %v2069
    %v2109 = vpack.c.b16 %v2073, %v2070
    %v2110 = vpack.c.b16 %v2077, %v2074
    %v2111 = vpack.c.b16 %v2078, %v2075
    %v2112 = vpack.c.b16 %v2079, %v2076
    %v2113 = vpack.c.b16 %v2083, %v2080
    %v2114 = vpack.c.b16 %v2084, %v2081
    %v2115 = vpack.c.b16 %v2085, %v2082
    %v2116 = vpack.c.b16 %v2089, %v2086
    %v2117 = vpack.c.b16 %v2090, %v2087
    %v2118 = vpack.c.b16 %v2091, %v2088
    %v2119 = vpack.c.b16 %v2095, %v2092
    %v2120 = vpack.c.b16 %v2096, %v2093
    %v2121 = vpack.c.b16 %v2097, %v2094
    %2146 = vmatprep.subr.bf16.mxu0 %v2099
    %2147 = vmatpush1.bf16.msra.mxu0 %v2098
    %2148 = vmatprep.subr.bf16.mxu0 %v2102
    %2149 = vmatpush1.bf16.msra.mxu0 %v2101
    %2150 = vmatprep.subr.bf16.mxu0 %v2105
    %2151 = vmatpush1.bf16.msra.mxu0 %v2104
    %2152 = vmatprep.subr.bf16.mxu0 %v2108
    %2153 = vmatpush1.bf16.msra.mxu0 %v2107
    %2154 = vmatprep.subr.bf16.mxu0 %v2111
    %2155 = vmatpush1.bf16.msra.mxu0 %v2110
    %2156 = vmatprep.subr.bf16.mxu0 %v2114
    %2157 = vmatpush1.bf16.msra.mxu0 %v2113
    %2158 = vmatprep.subr.bf16.mxu0 %v2117
    %2159 = vmatpush1.bf16.msra.mxu0 %v2116
    %2160 = vmatprep.subr.bf16.mxu0 %v2120
    %2161 = vmatpush1.bf16.msra.mxu0 %v2119
    %2162 = vmatprep.subr.bf16.mxu0 0
    %2163 = vmatpush1.bf16.msra.mxu0 0
    %2164 = vmatprep.subr.bf16.mxu0 0
    %2165 = vmatpush1.bf16.msra.mxu0 0
    %2166 = vmatprep.subr.bf16.mxu0 0
    %2167 = vmatpush1.bf16.msra.mxu0 0
    %2168 = vmatprep.subr.bf16.mxu0 0
    %2169 = vmatpush1.bf16.msra.mxu0 0
    %2170 = vmatprep.subr.bf16.mxu0 0
    %2171 = vmatpush1.bf16.msra.mxu0 0
    %2172 = vmatprep.subr.bf16.mxu0 0
    %2173 = vmatpush1.bf16.msra.mxu0 0
    %2174 = vmatprep.subr.bf16.mxu0 0
    %2175 = vmatpush1.bf16.msra.mxu0 0
    %2176 = vmatprep.subr.bf16.mxu0 0
    %2177 = vmatpush1.bf16.msra.mxu0 0
    %2178 = vmatprep.mubr.bf16.mxu0 0
    %2179 = vmatmul.mubr.bf16.gmra.mrb[0].mxu0 %v1985
    %v2180 = vpop.f32.mrb[0].mxu0
    %v2181 = vadd.f32 0.0, %v2180
    %v2182 = vpop.f32.mrb[0].mxu0
    %v2183 = vadd.f32 0.0, %v2182
    %v2184 = vpop.f32.mrb[0].mxu0
    %v2185 = vpop.f32.mrb[0].mxu0
    %2186 = vdwg.mxu0
    %2187 = vmatprep.subr.bf16.mxu0 0
    %2188 = vmatpush1.bf16.msra.mxu0 %v2100
    %2189 = vmatprep.subr.bf16.mxu0 0
    %2190 = vmatpush1.bf16.msra.mxu0 %v2103
    %2191 = vmatprep.subr.bf16.mxu0 0
    %2192 = vmatpush1.bf16.msra.mxu0 %v2106
    %2193 = vmatprep.subr.bf16.mxu0 0
    %2194 = vmatpush1.bf16.msra.mxu0 %v2109
    %2195 = vmatprep.subr.bf16.mxu0 0
    %2196 = vmatpush1.bf16.msra.mxu0 %v2112
    %2197 = vmatprep.subr.bf16.mxu0 0
    %2198 = vmatpush1.bf16.msra.mxu0 %v2115
    %2199 = vmatprep.subr.bf16.mxu0 0
    %2200 = vmatpush1.bf16.msra.mxu0 %v2118
    %2201 = vmatprep.subr.bf16.mxu0 0
    %2202 = vmatpush1.bf16.msra.mxu0 %v2121
    %2203 = vmatprep.subr.bf16.mxu0 0
    %2204 = vmatpush1.bf16.msra.mxu0 0
    %2205 = vmatprep.subr.bf16.mxu0 0
    %2206 = vmatpush1.bf16.msra.mxu0 0
    %2207 = vmatprep.subr.bf16.mxu0 0
    %2208 = vmatpush1.bf16.msra.mxu0 0
    %2209 = vmatprep.subr.bf16.mxu0 0
    %2210 = vmatpush1.bf16.msra.mxu0 0
    %2211 = vmatprep.subr.bf16.mxu0 0
    %2212 = vmatpush1.bf16.msra.mxu0 0
    %2213 = vmatprep.subr.bf16.mxu0 0
    %2214 = vmatpush1.bf16.msra.mxu0 0
    %2215 = vmatprep.subr.bf16.mxu0 0
    %2216 = vmatpush1.bf16.msra.mxu0 0
    %2217 = vmatprep.subr.bf16.mxu0 0
    %2218 = vmatpush1.bf16.msra.mxu0 0
    %2219 = vmatprep.mubr.bf16.mxu0 0
    %2220 = vmatmul.mubr.bf16.gmra.mrb[0].mxu0 %v1985
    %v2221 = vpop.f32.mrb[0].mxu0
    %v2222 = vadd.f32 0.0, %v2221
    %v2223 = vpop.f32.mrb[0].mxu0
    %v2224 = vpop.f32.mrb[0].mxu0
    %v2225 = vpop.f32.mrb[0].mxu0
    %2226 = vdwg.mxu0
    %s2227 = scalar_lea.vmem [#allocation2], 144
    %v2228 = vld [vmem:[%s2227] sm:$0xff]
    %v2229 = vld [vmem:[%s2227 + $0x8] sm:$0xff]
    %v2230 = vld [vmem:[%s2227 + $0x10] sm:$0xff]
    %v2231 = vadd.f32 %v2228, %v2181
    %v2232 = vadd.f32 %v2229, %v2183
    %v2233 = vxor.u32 %v2231, 2147483648
    %v2234 = vxor.u32 %v2232, 2147483648
    %v2235 = vmul.f32 %v2233, 1.442695
    %v2236 = vpow.pop %v2235
    %v2237 = vmul.f32 %v2234, 1.442695
    %v2238 = vpow.pop %v2237
    %v2239 = vadd.f32 %v2236, 1.0
    %v2240 = vadd.f32 %v2238, 1.0
    %v2241 = vrcp.pop %v2239
    %v2242 = vmul.f32 1.0, %v2241
    %v2243 = vrcp.pop %v2240
    %v2244 = vmul.f32 1.0, %v2243
    %v2245 = vadd.f32 %v2222, %v630
    %v2246 = vmul.f32 %v2242, %v2245
    %v2247 = vadd.f32 %v2230, %v2246
    %v2248 = vtanh.pop %v2247
    %v2249 = vsub.f32 %v1982, %v2248
    %v2250 = vmul.f32 %v2244, %v2249
    %v2251 = vadd.f32 %v2248, %v2250
    %s2252 = scalar_lea.vmem [#allocation3], 48
    %2253 = vst [vmem:[%s2252] sm:$0xff] %v2251
    %v2254 = vpack.c.bf16 %v2251, %v2251
    %v2255 = vld [vmem:[#allocation10] sm:$0xff]
    %v2256 = vld [vmem:[#allocation10 + $0x8] sm:$0xf]
    %v2257 = vld [vmem:[#allocation10 + $0xc] sm:$0xff]
    %v2258 = vld [vmem:[#allocation10 + $0x14] sm:$0xf]
    %v2259 = vld [vmem:[#allocation10 + $0x18] sm:$0xff]
    %v2260 = vld [vmem:[#allocation10 + $0x20] sm:$0xf]
    %v2261 = vld [vmem:[#allocation10 + $0x24] sm:$0xff]
    %v2262 = vld [vmem:[#allocation10 + $0x2c] sm:$0xf]
    %v2263 = vld [vmem:[#allocation10 + $0x30] sm:$0xff]
    %v2264 = vld [vmem:[#allocation10 + $0x38] sm:$0xf]
    %v2265 = vld [vmem:[#allocation10 + $0x3c] sm:$0xff]
    %v2266 = vld [vmem:[#allocation10 + $0x44] sm:$0xf]
    %v2267 = vld [vmem:[#allocation10 + $0x48] sm:$0xff]
    %v2268 = vld [vmem:[#allocation10 + $0x50] sm:$0xf]
    %v2269 = vld [vmem:[#allocation10 + $0x54] sm:$0xff]
    %v2270 = vld [vmem:[#allocation10 + $0x5c] sm:$0xf]
    %v2271 = vld [vmem:[#allocation10 + $0x60] sm:$0xff]
    %v2272 = vld [vmem:[#allocation10 + $0x68] sm:$0xf]
    %v2273 = vld [vmem:[#allocation10 + $0x6c] sm:$0xff]
    %v2274 = vld [vmem:[#allocation10 + $0x74] sm:$0xf]
    %v2275 = vld [vmem:[#allocation10 + $0x78] sm:$0xff]
    %v2276 = vld [vmem:[#allocation10 + $0x80] sm:$0xf]
    %v2277 = vld [vmem:[#allocation10 + $0x84] sm:$0xff]
    %v2278 = vld [vmem:[#allocation10 + $0x8c] sm:$0xf]
    %v2279 = vld [vmem:[#allocation10 + $0x90] sm:$0xff]
    %v2280 = vld [vmem:[#allocation10 + $0x98] sm:$0xf]
    %v2281 = vld [vmem:[#allocation10 + $0x9c] sm:$0xff]
    %v2282 = vld [vmem:[#allocation10 + $0xa4] sm:$0xf]
    %v2283 = vld [vmem:[#allocation10 + $0xa8] sm:$0xff]
    %v2284 = vld [vmem:[#allocation10 + $0xb0] sm:$0xf]
    %v2285 = vld [vmem:[#allocation10 + $0xb4] sm:$0xff]
    %v2286 = vld [vmem:[#allocation10 + $0xbc] sm:$0xf]
    %v2319 = vunpack.c.l.b16 %v2255
    %v2320 = vunpack.c.h.b16 %v2255
    %v2321 = vunpack.c.l.b16 %v2256
    %v2322 = vunpack.c.l.b16 %v2257
    %v2323 = vunpack.c.h.b16 %v2257
    %v2324 = vunpack.c.l.b16 %v2258
    %v2325 = vunpack.c.l.b16 %v2259
    %v2326 = vunpack.c.h.b16 %v2259
    %v2327 = vunpack.c.l.b16 %v2260
    %v2328 = vunpack.c.l.b16 %v2261
    %v2329 = vunpack.c.h.b16 %v2261
    %v2330 = vunpack.c.l.b16 %v2262
    %v2331 = vunpack.c.l.b16 %v2263
    %v2332 = vunpack.c.h.b16 %v2263
    %v2333 = vunpack.c.l.b16 %v2264
    %v2334 = vunpack.c.l.b16 %v2265
    %v2335 = vunpack.c.h.b16 %v2265
    %v2336 = vunpack.c.l.b16 %v2266
    %v2337 = vunpack.c.l.b16 %v2267
    %v2338 = vunpack.c.h.b16 %v2267
    %v2339 = vunpack.c.l.b16 %v2268
    %v2340 = vunpack.c.l.b16 %v2269
    %v2341 = vunpack.c.h.b16 %v2269
    %v2342 = vunpack.c.l.b16 %v2270
    %v2343 = vunpack.c.l.b16 %v2271
    %v2344 = vunpack.c.h.b16 %v2271
    %v2345 = vunpack.c.l.b16 %v2272
    %v2346 = vunpack.c.l.b16 %v2273
    %v2347 = vunpack.c.h.b16 %v2273
    %v2348 = vunpack.c.l.b16 %v2274
    %v2349 = vunpack.c.l.b16 %v2275
    %v2350 = vunpack.c.h.b16 %v2275
    %v2351 = vunpack.c.l.b16 %v2276
    %v2352 = vunpack.c.l.b16 %v2277
    %v2353 = vunpack.c.h.b16 %v2277
    %v2354 = vunpack.c.l.b16 %v2278
    %v2355 = vunpack.c.l.b16 %v2279
    %v2356 = vunpack.c.h.b16 %v2279
    %v2357 = vunpack.c.l.b16 %v2280
    %v2358 = vunpack.c.l.b16 %v2281
    %v2359 = vunpack.c.h.b16 %v2281
    %v2360 = vunpack.c.l.b16 %v2282
    %v2361 = vunpack.c.l.b16 %v2283
    %v2362 = vunpack.c.h.b16 %v2283
    %v2363 = vunpack.c.l.b16 %v2284
    %v2364 = vunpack.c.l.b16 %v2285
    %v2365 = vunpack.c.h.b16 %v2285
    %v2366 = vunpack.c.l.b16 %v2286
    %v2367 = vpack.c.b16 %v2322, %v2319
    %v2368 = vpack.c.b16 %v2323, %v2320
    %v2369 = vpack.c.b16 %v2324, %v2321
    %v2370 = vpack.c.b16 %v2328, %v2325
    %v2371 = vpack.c.b16 %v2329, %v2326
    %v2372 = vpack.c.b16 %v2330, %v2327
    %v2373 = vpack.c.b16 %v2334, %v2331
    %v2374 = vpack.c.b16 %v2335, %v2332
    %v2375 = vpack.c.b16 %v2336, %v2333
    %v2376 = vpack.c.b16 %v2340, %v2337
    %v2377 = vpack.c.b16 %v2341, %v2338
    %v2378 = vpack.c.b16 %v2342, %v2339
    %v2379 = vpack.c.b16 %v2346, %v2343
    %v2380 = vpack.c.b16 %v2347, %v2344
    %v2381 = vpack.c.b16 %v2348, %v2345
    %v2382 = vpack.c.b16 %v2352, %v2349
    %v2383 = vpack.c.b16 %v2353, %v2350
    %v2384 = vpack.c.b16 %v2354, %v2351
    %v2385 = vpack.c.b16 %v2358, %v2355
    %v2386 = vpack.c.b16 %v2359, %v2356
    %v2387 = vpack.c.b16 %v2360, %v2357
    %v2388 = vpack.c.b16 %v2364, %v2361
    %v2389 = vpack.c.b16 %v2365, %v2362
    %v2390 = vpack.c.b16 %v2366, %v2363
    %2415 = vmatprep.subr.bf16.mxu0 %v2368
    %2416 = vmatpush1.bf16.msra.mxu0 %v2367
    %2417 = vmatprep.subr.bf16.mxu0 %v2371
    %2418 = vmatpush1.bf16.msra.mxu0 %v2370
    %2419 = vmatprep.subr.bf16.mxu0 %v2374
    %2420 = vmatpush1.bf16.msra.mxu0 %v2373
    %2421 = vmatprep.subr.bf16.mxu0 %v2377
    %2422 = vmatpush1.bf16.msra.mxu0 %v2376
    %2423 = vmatprep.subr.bf16.mxu0 %v2380
    %2424 = vmatpush1.bf16.msra.mxu0 %v2379
    %2425 = vmatprep.subr.bf16.mxu0 %v2383
    %2426 = vmatpush1.bf16.msra.mxu0 %v2382
    %2427 = vmatprep.subr.bf16.mxu0 %v2386
    %2428 = vmatpush1.bf16.msra.mxu0 %v2385
    %2429 = vmatprep.subr.bf16.mxu0 %v2389
    %2430 = vmatpush1.bf16.msra.mxu0 %v2388
    %2431 = vmatprep.subr.bf16.mxu0 0
    %2432 = vmatpush1.bf16.msra.mxu0 0
    %2433 = vmatprep.subr.bf16.mxu0 0
    %2434 = vmatpush1.bf16.msra.mxu0 0
    %2435 = vmatprep.subr.bf16.mxu0 0
    %2436 = vmatpush1.bf16.msra.mxu0 0
    %2437 = vmatprep.subr.bf16.mxu0 0
    %2438 = vmatpush1.bf16.msra.mxu0 0
    %2439 = vmatprep.subr.bf16.mxu0 0
    %2440 = vmatpush1.bf16.msra.mxu0 0
    %2441 = vmatprep.subr.bf16.mxu0 0
    %2442 = vmatpush1.bf16.msra.mxu0 0
    %2443 = vmatprep.subr.bf16.mxu0 0
    %2444 = vmatpush1.bf16.msra.mxu0 0
    %2445 = vmatprep.subr.bf16.mxu0 0
    %2446 = vmatpush1.bf16.msra.mxu0 0
    %2447 = vmatprep.mubr.bf16.mxu0 0
    %2448 = vmatmul.mubr.bf16.gmra.mrb[0].mxu0 %v2254
    %v2449 = vpop.f32.mrb[0].mxu0
    %v2450 = vadd.f32 0.0, %v2449
    %v2451 = vpop.f32.mrb[0].mxu0
    %v2452 = vadd.f32 0.0, %v2451
    %v2453 = vpop.f32.mrb[0].mxu0
    %v2454 = vpop.f32.mrb[0].mxu0
    %2455 = vdwg.mxu0
    %2456 = vmatprep.subr.bf16.mxu0 0
    %2457 = vmatpush1.bf16.msra.mxu0 %v2369
    %2458 = vmatprep.subr.bf16.mxu0 0
    %2459 = vmatpush1.bf16.msra.mxu0 %v2372
    %2460 = vmatprep.subr.bf16.mxu0 0
    %2461 = vmatpush1.bf16.msra.mxu0 %v2375
    %2462 = vmatprep.subr.bf16.mxu0 0
    %2463 = vmatpush1.bf16.msra.mxu0 %v2378
    %2464 = vmatprep.subr.bf16.mxu0 0
    %2465 = vmatpush1.bf16.msra.mxu0 %v2381
    %2466 = vmatprep.subr.bf16.mxu0 0
    %2467 = vmatpush1.bf16.msra.mxu0 %v2384
    %2468 = vmatprep.subr.bf16.mxu0 0
    %2469 = vmatpush1.bf16.msra.mxu0 %v2387
    %2470 = vmatprep.subr.bf16.mxu0 0
    %2471 = vmatpush1.bf16.msra.mxu0 %v2390
    %2472 = vmatprep.subr.bf16.mxu0 0
    %2473 = vmatpush1.bf16.msra.mxu0 0
    %2474 = vmatprep.subr.bf16.mxu0 0
    %2475 = vmatpush1.bf16.msra.mxu0 0
    %2476 = vmatprep.subr.bf16.mxu0 0
    %2477 = vmatpush1.bf16.msra.mxu0 0
    %2478 = vmatprep.subr.bf16.mxu0 0
    %2479 = vmatpush1.bf16.msra.mxu0 0
    %2480 = vmatprep.subr.bf16.mxu0 0
    %2481 = vmatpush1.bf16.msra.mxu0 0
    %2482 = vmatprep.subr.bf16.mxu0 0
    %2483 = vmatpush1.bf16.msra.mxu0 0
    %2484 = vmatprep.subr.bf16.mxu0 0
    %2485 = vmatpush1.bf16.msra.mxu0 0
    %2486 = vmatprep.subr.bf16.mxu0 0
    %2487 = vmatpush1.bf16.msra.mxu0 0
    %2488 = vmatprep.mubr.bf16.mxu0 0
    %2489 = vmatmul.mubr.bf16.gmra.mrb[0].mxu0 %v2254
    %v2490 = vpop.f32.mrb[0].mxu0
    %v2491 = vadd.f32 0.0, %v2490
    %v2492 = vpop.f32.mrb[0].mxu0
    %v2493 = vpop.f32.mrb[0].mxu0
    %v2494 = vpop.f32.mrb[0].mxu0
    %2495 = vdwg.mxu0
    %s2496 = scalar_lea.vmem [#allocation2], 168
    %v2497 = vld [vmem:[%s2496] sm:$0xff]
    %v2498 = vld [vmem:[%s2496 + $0x8] sm:$0xff]
    %v2499 = vld [vmem:[%s2496 + $0x10] sm:$0xff]
    %v2500 = vadd.f32 %v2497, %v2450
    %v2501 = vadd.f32 %v2498, %v2452
    %v2502 = vxor.u32 %v2500, 2147483648
    %v2503 = vxor.u32 %v2501, 2147483648
    %v2504 = vmul.f32 %v2502, 1.442695
    %v2505 = vpow.pop %v2504
    %v2506 = vmul.f32 %v2503, 1.442695
    %v2507 = vpow.pop %v2506
    %v2508 = vadd.f32 %v2505, 1.0
    %v2509 = vadd.f32 %v2507, 1.0
    %v2510 = vrcp.pop %v2508
    %v2511 = vmul.f32 1.0, %v2510
    %v2512 = vrcp.pop %v2509
    %v2513 = vmul.f32 1.0, %v2512
    %v2514 = vadd.f32 %v2491, %v630
    %v2515 = vmul.f32 %v2511, %v2514
    %v2516 = vadd.f32 %v2499, %v2515
    %v2517 = vtanh.pop %v2516
    %v2518 = vsub.f32 %v2251, %v2517
    %v2519 = vmul.f32 %v2513, %v2518
    %v2520 = vadd.f32 %v2517, %v2519
    %s2521 = scalar_lea.vmem [#allocation3], 56
    %2522 = vst [vmem:[%s2521] sm:$0xff] %v2520
    %v2523 = vld [vmem:[#allocation3] sm:$0xff]
    %v2524 = vld [vmem:[#allocation3 + $0x8] sm:$0xff]
    %v2525 = vld [vmem:[#allocation3 + $0x10] sm:$0xff]
    %v2526 = vld [vmem:[#allocation3 + $0x18] sm:$0xff]
    %v2527 = vld [vmem:[#allocation3 + $0x20] sm:$0xff]
    %v2528 = vld [vmem:[#allocation3 + $0x28] sm:$0xff]
    %v2529 = vld [vmem:[#allocation3 + $0x30] sm:$0xff]
    %v2530 = vld [vmem:[#allocation3 + $0x38] sm:$0xff]
    %v2531 = vpack.c.bf16 %v2524, %v2523
    %v2532 = vpack.c.bf16 %v2526, %v2525
    %v2533 = vpack.c.bf16 %v2528, %v2527
    %v2534 = vpack.c.bf16 %v2530, %v2529
    %v2535 = vld [vmem:[#allocation11] sm:$0xff]
    %v2536 = vld [vmem:[#allocation11 + $0x8] sm:$0xf]
    %v2537 = vld [vmem:[#allocation11 + $0xc] sm:$0xff]
    %v2538 = vld [vmem:[#allocation11 + $0x14] sm:$0xf]
    %v2539 = vld [vmem:[#allocation11 + $0x18] sm:$0xff]
    %v2540 = vld [vmem:[#allocation11 + $0x20] sm:$0xf]
    %v2541 = vld [vmem:[#allocation11 + $0x24] sm:$0xff]
    %v2542 = vld [vmem:[#allocation11 + $0x2c] sm:$0xf]
    %v2543 = vld [vmem:[#allocation11 + $0x30] sm:$0xff]
    %v2544 = vld [vmem:[#allocation11 + $0x38] sm:$0xf]
    %v2545 = vld [vmem:[#allocation11 + $0x3c] sm:$0xff]
    %v2546 = vld [vmem:[#allocation11 + $0x44] sm:$0xf]
    %v2547 = vld [vmem:[#allocation11 + $0x48] sm:$0xff]
    %v2548 = vld [vmem:[#allocation11 + $0x50] sm:$0xf]
    %v2549 = vld [vmem:[#allocation11 + $0x54] sm:$0xff]
    %v2550 = vld [vmem:[#allocation11 + $0x5c] sm:$0xf]
    %v2551 = vld [vmem:[#allocation11 + $0x60] sm:$0xff]
    %v2552 = vld [vmem:[#allocation11 + $0x68] sm:$0xf]
    %v2553 = vld [vmem:[#allocation11 + $0x6c] sm:$0xff]
    %v2554 = vld [vmem:[#allocation11 + $0x74] sm:$0xf]
    %v2555 = vld [vmem:[#allocation11 + $0x78] sm:$0xff]
    %v2556 = vld [vmem:[#allocation11 + $0x80] sm:$0xf]
    %v2557 = vld [vmem:[#allocation11 + $0x84] sm:$0xff]
    %v2558 = vld [vmem:[#allocation11 + $0x8c] sm:$0xf]
    %v2559 = vld [vmem:[#allocation11 + $0x90] sm:$0xff]
    %v2560 = vld [vmem:[#allocation11 + $0x98] sm:$0xf]
    %v2561 = vld [vmem:[#allocation11 + $0x9c] sm:$0xff]
    %v2562 = vld [vmem:[#allocation11 + $0xa4] sm:$0xf]
    %v2563 = vld [vmem:[#allocation11 + $0xa8] sm:$0xff]
    %v2564 = vld [vmem:[#allocation11 + $0xb0] sm:$0xf]
    %v2565 = vld [vmem:[#allocation11 + $0xb4] sm:$0xff]
    %v2566 = vld [vmem:[#allocation11 + $0xbc] sm:$0xf]
    %v2567 = vld [vmem:[%s7] sm:$0x7]
    %v2569 = vlaneseq
    %v2570 = vshrl.u32 %v2569, 7
    %v2571 = vsub.s32 0, %v2570
    %v2572 = vrot.slane %v2567, %v2571
    %v2573 = vlaneseq
    %v2574 = vshrl.u32 %v2573, 7
    %v2575 = vsub.s32 1, %v2574
    %v2576 = vrot.slane %v2567, %v2575
    %v2577 = vlaneseq
    %v2578 = vshrl.u32 %v2577, 7
    %v2579 = vsub.s32 2, %v2578
    %v2580 = vrot.slane %v2567, %v2579
    %v2616 = vunpack.c.l.b16 %v2535
    %v2617 = vunpack.c.h.b16 %v2535
    %v2618 = vunpack.c.l.b16 %v2536
    %v2619 = vunpack.c.l.b16 %v2537
    %v2620 = vunpack.c.h.b16 %v2537
    %v2621 = vunpack.c.l.b16 %v2538
    %v2622 = vunpack.c.l.b16 %v2539
    %v2623 = vunpack.c.h.b16 %v2539
    %v2624 = vunpack.c.l.b16 %v2540
    %v2625 = vunpack.c.l.b16 %v2541
    %v2626 = vunpack.c.h.b16 %v2541
    %v2627 = vunpack.c.l.b16 %v2542
    %v2628 = vunpack.c.l.b16 %v2543
    %v2629 = vunpack.c.h.b16 %v2543
    %v2630 = vunpack.c.l.b16 %v2544
    %v2631 = vunpack.c.l.b16 %v2545
    %v2632 = vunpack.c.h.b16 %v2545
    %v2633 = vunpack.c.l.b16 %v2546
    %v2634 = vunpack.c.l.b16 %v2547
    %v2635 = vunpack.c.h.b16 %v2547
    %v2636 = vunpack.c.l.b16 %v2548
    %v2637 = vunpack.c.l.b16 %v2549
    %v2638 = vunpack.c.h.b16 %v2549
    %v2639 = vunpack.c.l.b16 %v2550
    %v2640 = vunpack.c.l.b16 %v2551
    %v2641 = vunpack.c.h.b16 %v2551
    %v2642 = vunpack.c.l.b16 %v2552
    %v2643 = vunpack.c.l.b16 %v2553
    %v2644 = vunpack.c.h.b16 %v2553
    %v2645 = vunpack.c.l.b16 %v2554
    %v2646 = vunpack.c.l.b16 %v2555
    %v2647 = vunpack.c.h.b16 %v2555
    %v2648 = vunpack.c.l.b16 %v2556
    %v2649 = vunpack.c.l.b16 %v2557
    %v2650 = vunpack.c.h.b16 %v2557
    %v2651 = vunpack.c.l.b16 %v2558
    %v2652 = vunpack.c.l.b16 %v2559
    %v2653 = vunpack.c.h.b16 %v2559
    %v2654 = vunpack.c.l.b16 %v2560
    %v2655 = vunpack.c.l.b16 %v2561
    %v2656 = vunpack.c.h.b16 %v2561
    %v2657 = vunpack.c.l.b16 %v2562
    %v2658 = vunpack.c.l.b16 %v2563
    %v2659 = vunpack.c.h.b16 %v2563
    %v2660 = vunpack.c.l.b16 %v2564
    %v2661 = vunpack.c.l.b16 %v2565
    %v2662 = vunpack.c.h.b16 %v2565
    %v2663 = vunpack.c.l.b16 %v2566
    %v2664 = vpack.c.b16 %v2619, %v2616
    %v2665 = vpack.c.b16 %v2620, %v2617
    %v2666 = vpack.c.b16 %v2621, %v2618
    %v2667 = vpack.c.b16 %v2625, %v2622
    %v2668 = vpack.c.b16 %v2626, %v2623
    %v2669 = vpack.c.b16 %v2627, %v2624
    %v2670 = vpack.c.b16 %v2631, %v2628
    %v2671 = vpack.c.b16 %v2632, %v2629
    %v2672 = vpack.c.b16 %v2633, %v2630
    %v2673 = vpack.c.b16 %v2637, %v2634
    %v2674 = vpack.c.b16 %v2638, %v2635
    %v2675 = vpack.c.b16 %v2639, %v2636
    %v2676 = vpack.c.b16 %v2643, %v2640
    %v2677 = vpack.c.b16 %v2644, %v2641
    %v2678 = vpack.c.b16 %v2645, %v2642
    %v2679 = vpack.c.b16 %v2649, %v2646
    %v2680 = vpack.c.b16 %v2650, %v2647
    %v2681 = vpack.c.b16 %v2651, %v2648
    %v2682 = vpack.c.b16 %v2655, %v2652
    %v2683 = vpack.c.b16 %v2656, %v2653
    %v2684 = vpack.c.b16 %v2657, %v2654
    %v2685 = vpack.c.b16 %v2661, %v2658
    %v2686 = vpack.c.b16 %v2662, %v2659
    %v2687 = vpack.c.b16 %v2663, %v2660
    %2712 = vmatprep.subr.bf16.mxu0 %v2665
    %2713 = vmatpush1.bf16.msra.mxu0 %v2664
    %2714 = vmatprep.subr.bf16.mxu0 %v2668
    %2715 = vmatpush1.bf16.msra.mxu0 %v2667
    %2716 = vmatprep.subr.bf16.mxu0 %v2671
    %2717 = vmatpush1.bf16.msra.mxu0 %v2670
    %2718 = vmatprep.subr.bf16.mxu0 %v2674
    %2719 = vmatpush1.bf16.msra.mxu0 %v2673
    %2720 = vmatprep.subr.bf16.mxu0 %v2677
    %2721 = vmatpush1.bf16.msra.mxu0 %v2676
    %2722 = vmatprep.subr.bf16.mxu0 %v2680
    %2723 = vmatpush1.bf16.msra.mxu0 %v2679
    %2724 = vmatprep.subr.bf16.mxu0 %v2683
    %2725 = vmatpush1.bf16.msra.mxu0 %v2682
    %2726 = vmatprep.subr.bf16.mxu0 %v2686
    %2727 = vmatpush1.bf16.msra.mxu0 %v2685
    %2728 = vmatprep.subr.bf16.mxu0 0
    %2729 = vmatpush1.bf16.msra.mxu0 0
    %2730 = vmatprep.subr.bf16.mxu0 0
    %2731 = vmatpush1.bf16.msra.mxu0 0
    %2732 = vmatprep.subr.bf16.mxu0 0
    %2733 = vmatpush1.bf16.msra.mxu0 0
    %2734 = vmatprep.subr.bf16.mxu0 0
    %2735 = vmatpush1.bf16.msra.mxu0 0
    %2736 = vmatprep.subr.bf16.mxu0 0
    %2737 = vmatpush1.bf16.msra.mxu0 0
    %2738 = vmatprep.subr.bf16.mxu0 0
    %2739 = vmatpush1.bf16.msra.mxu0 0
    %2740 = vmatprep.subr.bf16.mxu0 0
    %2741 = vmatpush1.bf16.msra.mxu0 0
    %2742 = vmatprep.subr.bf16.mxu0 0
    %2743 = vmatpush1.bf16.msra.mxu0 0
    %2744 = vmatprep.mubr.bf16.mxu0 0
    %2745 = vmatmul.mubr.bf16.gmra.mrb[0].mxu0 %v2531
    %v2746 = vpop.f32.mrb[0].mxu0
    %v2747 = vadd.f32 %v2572, %v2746
    %v2748 = vpop.f32.mrb[0].mxu0
    %v2749 = vadd.f32 %v2576, %v2748
    %v2750 = vpop.f32.mrb[0].mxu0
    %v2751 = vadd.f32 %v2572, %v2750
    %v2752 = vpop.f32.mrb[0].mxu0
    %v2753 = vadd.f32 %v2576, %v2752
    %2754 = vmatprep.mubr.bf16.mxu0 0
    %2755 = vmatmul.mubr.bf16.gmra.mrb[0].mxu0 %v2532
    %v2756 = vpop.f32.mrb[0].mxu0
    %v2757 = vadd.f32 %v2572, %v2756
    %v2758 = vpop.f32.mrb[0].mxu0
    %v2759 = vadd.f32 %v2576, %v2758
    %v2760 = vpop.f32.mrb[0].mxu0
    %v2761 = vadd.f32 %v2572, %v2760
    %v2762 = vpop.f32.mrb[0].mxu0
    %v2763 = vadd.f32 %v2576, %v2762
    %2764 = vmatprep.mubr.bf16.mxu0 0
    %2765 = vmatmul.mubr.bf16.gmra.mrb[0].mxu0 %v2533
    %v2766 = vpop.f32.mrb[0].mxu0
    %v2767 = vadd.f32 %v2572, %v2766
    %v2768 = vpop.f32.mrb[0].mxu0
    %v2769 = vadd.f32 %v2576, %v2768
    %v2770 = vpop.f32.mrb[0].mxu0
    %v2771 = vadd.f32 %v2572, %v2770
    %v2772 = vpop.f32.mrb[0].mxu0
    %v2773 = vadd.f32 %v2576, %v2772
    %2774 = vmatprep.mubr.bf16.mxu0 0
    %2775 = vmatmul.mubr.bf16.gmra.mrb[0].mxu0 %v2534
    %v2776 = vpop.f32.mrb[0].mxu0
    %v2777 = vadd.f32 %v2572, %v2776
    %v2778 = vpop.f32.mrb[0].mxu0
    %v2779 = vadd.f32 %v2576, %v2778
    %v2780 = vpop.f32.mrb[0].mxu0
    %v2781 = vadd.f32 %v2572, %v2780
    %v2782 = vpop.f32.mrb[0].mxu0
    %v2783 = vadd.f32 %v2576, %v2782
    %2784 = vdwg.mxu0
    %2785 = vmatprep.subr.bf16.mxu0 0
    %2786 = vmatpush1.bf16.msra.mxu0 %v2666
    %2787 = vmatprep.subr.bf16.mxu0 0
    %2788 = vmatpush1.bf16.msra.mxu0 %v2669
    %2789 = vmatprep.subr.bf16.mxu0 0
    %2790 = vmatpush1.bf16.msra.mxu0 %v2672
    %2791 = vmatprep.subr.bf16.mxu0 0
    %2792 = vmatpush1.bf16.msra.mxu0 %v2675
    %2793 = vmatprep.subr.bf16.mxu0 0
    %2794 = vmatpush1.bf16.msra.mxu0 %v2678
    %2795 = vmatprep.subr.bf16.mxu0 0
    %2796 = vmatpush1.bf16.msra.mxu0 %v2681
    %2797 = vmatprep.subr.bf16.mxu0 0
    %2798 = vmatpush1.bf16.msra.mxu0 %v2684
    %2799 = vmatprep.subr.bf16.mxu0 0
    %2800 = vmatpush1.bf16.msra.mxu0 %v2687
    %2801 = vmatprep.subr.bf16.mxu0 0
    %2802 = vmatpush1.bf16.msra.mxu0 0
    %2803 = vmatprep.subr.bf16.mxu0 0
    %2804 = vmatpush1.bf16.msra.mxu0 0
    %2805 = vmatprep.subr.bf16.mxu0 0
    %2806 = vmatpush1.bf16.msra.mxu0 0
    %2807 = vmatprep.subr.bf16.mxu0 0
    %2808 = vmatpush1.bf16.msra.mxu0 0
    %2809 = vmatprep.subr.bf16.mxu0 0
    %2810 = vmatpush1.bf16.msra.mxu0 0
    %2811 = vmatprep.subr.bf16.mxu0 0
    %2812 = vmatpush1.bf16.msra.mxu0 0
    %2813 = vmatprep.subr.bf16.mxu0 0
    %2814 = vmatpush1.bf16.msra.mxu0 0
    %2815 = vmatprep.subr.bf16.mxu0 0
    %2816 = vmatpush1.bf16.msra.mxu0 0
    %2817 = vmatprep.mubr.bf16.mxu0 0
    %2818 = vmatmul.mubr.bf16.gmra.mrb[0].mxu0 %v2531
    %v2819 = vpop.f32.mrb[0].mxu0
    %v2820 = vadd.f32 %v2580, %v2819
    %v2821 = vpop.f32.mrb[0].mxu0
    %v2822 = vpop.f32.mrb[0].mxu0
    %v2823 = vadd.f32 %v2580, %v2822
    %v2824 = vpop.f32.mrb[0].mxu0
    %2825 = vmatprep.mubr.bf16.mxu0 0
    %2826 = vmatmul.mubr.bf16.gmra.mrb[0].mxu0 %v2532
    %v2827 = vpop.f32.mrb[0].mxu0
    %v2828 = vadd.f32 %v2580, %v2827
    %v2829 = vpop.f32.mrb[0].mxu0
    %v2830 = vpop.f32.mrb[0].mxu0
    %v2831 = vadd.f32 %v2580, %v2830
    %v2832 = vpop.f32.mrb[0].mxu0
    %2833 = vmatprep.mubr.bf16.mxu0 0
    %2834 = vmatmul.mubr.bf16.gmra.mrb[0].mxu0 %v2533
    %v2835 = vpop.f32.mrb[0].mxu0
    %v2836 = vadd.f32 %v2580, %v2835
    %v2837 = vpop.f32.mrb[0].mxu0
    %v2838 = vpop.f32.mrb[0].mxu0
    %v2839 = vadd.f32 %v2580, %v2838
    %v2840 = vpop.f32.mrb[0].mxu0
    %2841 = vmatprep.mubr.bf16.mxu0 0
    %2842 = vmatmul.mubr.bf16.gmra.mrb[0].mxu0 %v2534
    %v2843 = vpop.f32.mrb[0].mxu0
    %v2844 = vadd.f32 %v2580, %v2843
    %v2845 = vpop.f32.mrb[0].mxu0
    %v2846 = vpop.f32.mrb[0].mxu0
    %v2847 = vadd.f32 %v2580, %v2846
    %v2848 = vpop.f32.mrb[0].mxu0
    %2849 = vdwg.mxu0
    %2850 = vst [vmem:[#allocation4] sm:$0xff] %v2747
    %2851 = vst [vmem:[#allocation4 + $0x8] sm:$0xff] %v2749
    %2852 = vst [vmem:[#allocation4 + $0x10] sm:$0xff] %v2820
    %2853 = vst [vmem:[#allocation4 + $0x18] sm:$0xff] %v2751
    %2854 = vst [vmem:[#allocation4 + $0x20] sm:$0xff] %v2753
    %2855 = vst [vmem:[#allocation4 + $0x28] sm:$0xff] %v2823
    %2856 = vst [vmem:[#allocation4 + $0x30] sm:$0xff] %v2757
    %2857 = vst [vmem:[#allocation4 + $0x38] sm:$0xff] %v2759
    %2858 = vst [vmem:[#allocation4 + $0x40] sm:$0xff] %v2828
    %2859 = vst [vmem:[#allocation4 + $0x48] sm:$0xff] %v2761
    %2860 = vst [vmem:[#allocation4 + $0x50] sm:$0xff] %v2763
    %2861 = vst [vmem:[#allocation4 + $0x58] sm:$0xff] %v2831
    %2862 = vst [vmem:[#allocation4 + $0x60] sm:$0xff] %v2767
    %2863 = vst [vmem:[#allocation4 + $0x68] sm:$0xff] %v2769
    %2864 = vst [vmem:[#allocation4 + $0x70] sm:$0xff] %v2836
    %2865 = vst [vmem:[#allocation4 + $0x78] sm:$0xff] %v2771
    %2866 = vst [vmem:[#allocation4 + $0x80] sm:$0xff] %v2773
    %2867 = vst [vmem:[#allocation4 + $0x88] sm:$0xff] %v2839
    %2868 = vst [vmem:[#allocation4 + $0x90] sm:$0xff] %v2777
    %2869 = vst [vmem:[#allocation4 + $0x98] sm:$0xff] %v2779
    %2870 = vst [vmem:[#allocation4 + $0xa0] sm:$0xff] %v2844
    %2871 = vst [vmem:[#allocation4 + $0xa8] sm:$0xff] %v2781
    %2872 = vst [vmem:[#allocation4 + $0xb0] sm:$0xff] %v2783
    %2873 = vst [vmem:[#allocation4 + $0xb8] sm:$0xff] %v2847
    %v2874 = vld [vmem:[#allocation13] sm:$0xff]
    %v2875 = vld [vmem:[#allocation13 + $0x8] sm:$0xf]
    %v2876 = vld [vmem:[#allocation13 + $0xc] sm:$0xff]
    %v2877 = vld [vmem:[#allocation13 + $0x14] sm:$0xf]
    %v2878 = vld [vmem:[#allocation13 + $0x18] sm:$0xff]
    %v2879 = vld [vmem:[#allocation13 + $0x20] sm:$0xf]
    %v2880 = vld [vmem:[#allocation13 + $0x24] sm:$0xff]
    %v2881 = vld [vmem:[#allocation13 + $0x2c] sm:$0xf]
    %v2882 = vld [vmem:[#allocation13 + $0x30] sm:$0xff]
    %v2883 = vld [vmem:[#allocation13 + $0x38] sm:$0xf]
    %v2884 = vld [vmem:[#allocation13 + $0x3c] sm:$0xff]
    %v2885 = vld [vmem:[#allocation13 + $0x44] sm:$0xf]
    %v2886 = vld [vmem:[#allocation13 + $0x48] sm:$0xff]
    %v2887 = vld [vmem:[#allocation13 + $0x50] sm:$0xf]
    %v2888 = vld [vmem:[#allocation13 + $0x54] sm:$0xff]
    %v2889 = vld [vmem:[#allocation13 + $0x5c] sm:$0xf]
    %v2890 = vld [vmem:[#allocation13 + $0x60] sm:$0xff]
    %v2891 = vld [vmem:[#allocation13 + $0x68] sm:$0xf]
    %v2892 = vld [vmem:[#allocation13 + $0x6c] sm:$0xff]
    %v2893 = vld [vmem:[#allocation13 + $0x74] sm:$0xf]
    %v2894 = vld [vmem:[#allocation13 + $0x78] sm:$0xff]
    %v2895 = vld [vmem:[#allocation13 + $0x80] sm:$0xf]
    %v2896 = vld [vmem:[#allocation13 + $0x84] sm:$0xff]
    %v2897 = vld [vmem:[#allocation13 + $0x8c] sm:$0xf]
    %v2898 = vld [vmem:[#allocation13 + $0x90] sm:$0xff]
    %v2899 = vld [vmem:[#allocation13 + $0x98] sm:$0xf]
    %v2900 = vld [vmem:[#allocation13 + $0x9c] sm:$0xff]
    %v2901 = vld [vmem:[#allocation13 + $0xa4] sm:$0xf]
    %v2902 = vld [vmem:[#allocation13 + $0xa8] sm:$0xff]
    %v2903 = vld [vmem:[#allocation13 + $0xb0] sm:$0xf]
    %v2904 = vld [vmem:[#allocation13 + $0xb4] sm:$0xff]
    %v2905 = vld [vmem:[#allocation13 + $0xbc] sm:$0xf]
    %v2938 = vunpack.c.l.b16 %v2874
    %v2939 = vunpack.c.h.b16 %v2874
    %v2940 = vunpack.c.l.b16 %v2875
    %v2941 = vunpack.c.l.b16 %v2876
    %v2942 = vunpack.c.h.b16 %v2876
    %v2943 = vunpack.c.l.b16 %v2877
    %v2944 = vunpack.c.l.b16 %v2878
    %v2945 = vunpack.c.h.b16 %v2878
    %v2946 = vunpack.c.l.b16 %v2879
    %v2947 = vunpack.c.l.b16 %v2880
    %v2948 = vunpack.c.h.b16 %v2880
    %v2949 = vunpack.c.l.b16 %v2881
    %v2950 = vunpack.c.l.b16 %v2882
    %v2951 = vunpack.c.h.b16 %v2882
    %v2952 = vunpack.c.l.b16 %v2883
    %v2953 = vunpack.c.l.b16 %v2884
    %v2954 = vunpack.c.h.b16 %v2884
    %v2955 = vunpack.c.l.b16 %v2885
    %v2956 = vunpack.c.l.b16 %v2886
    %v2957 = vunpack.c.h.b16 %v2886
    %v2958 = vunpack.c.l.b16 %v2887
    %v2959 = vunpack.c.l.b16 %v2888
    %v2960 = vunpack.c.h.b16 %v2888
    %v2961 = vunpack.c.l.b16 %v2889
    %v2962 = vunpack.c.l.b16 %v2890
    %v2963 = vunpack.c.h.b16 %v2890
    %v2964 = vunpack.c.l.b16 %v2891
    %v2965 = vunpack.c.l.b16 %v2892
    %v2966 = vunpack.c.h.b16 %v2892
    %v2967 = vunpack.c.l.b16 %v2893
    %v2968 = vunpack.c.l.b16 %v2894
    %v2969 = vunpack.c.h.b16 %v2894
    %v2970 = vunpack.c.l.b16 %v2895
    %v2971 = vunpack.c.l.b16 %v2896
    %v2972 = vunpack.c.h.b16 %v2896
    %v2973 = vunpack.c.l.b16 %v2897
    %v2974 = vunpack.c.l.b16 %v2898
    %v2975 = vunpack.c.h.b16 %v2898
    %v2976 = vunpack.c.l.b16 %v2899
    %v2977 = vunpack.c.l.b16 %v2900
    %v2978 = vunpack.c.h.b16 %v2900
    %v2979 = vunpack.c.l.b16 %v2901
    %v2980 = vunpack.c.l.b16 %v2902
    %v2981 = vunpack.c.h.b16 %v2902
    %v2982 = vunpack.c.l.b16 %v2903
    %v2983 = vunpack.c.l.b16 %v2904
    %v2984 = vunpack.c.h.b16 %v2904
    %v2985 = vunpack.c.l.b16 %v2905
    %v2986 = vpack.c.b16 %v2941, %v2938
    %v2987 = vpack.c.b16 %v2942, %v2939
    %v2988 = vpack.c.b16 %v2943, %v2940
    %v2989 = vpack.c.b16 %v2947, %v2944
    %v2990 = vpack.c.b16 %v2948, %v2945
    %v2991 = vpack.c.b16 %v2949, %v2946
    %v2992 = vpack.c.b16 %v2953, %v2950
    %v2993 = vpack.c.b16 %v2954, %v2951
    %v2994 = vpack.c.b16 %v2955, %v2952
    %v2995 = vpack.c.b16 %v2959, %v2956
    %v2996 = vpack.c.b16 %v2960, %v2957
    %v2997 = vpack.c.b16 %v2961, %v2958
    %v2998 = vpack.c.b16 %v2965, %v2962
    %v2999 = vpack.c.b16 %v2966, %v2963
    %v3000 = vpack.c.b16 %v2967, %v2964
    %v3001 = vpack.c.b16 %v2971, %v2968
    %v3002 = vpack.c.b16 %v2972, %v2969
    %v3003 = vpack.c.b16 %v2973, %v2970
    %v3004 = vpack.c.b16 %v2977, %v2974
    %v3005 = vpack.c.b16 %v2978, %v2975
    %v3006 = vpack.c.b16 %v2979, %v2976
    %v3007 = vpack.c.b16 %v2983, %v2980
    %v3008 = vpack.c.b16 %v2984, %v2981
    %v3009 = vpack.c.b16 %v2985, %v2982
    %3034 = vmatprep.subr.bf16.mxu0 %v2987
    %3035 = vmatpush1.bf16.msra.mxu0 %v2986
    %3036 = vmatprep.subr.bf16.mxu0 %v2990
    %3037 = vmatpush1.bf16.msra.mxu0 %v2989
    %3038 = vmatprep.subr.bf16.mxu0 %v2993
    %3039 = vmatpush1.bf16.msra.mxu0 %v2992
    %3040 = vmatprep.subr.bf16.mxu0 %v2996
    %3041 = vmatpush1.bf16.msra.mxu0 %v2995
    %3042 = vmatprep.subr.bf16.mxu0 %v2999
    %3043 = vmatpush1.bf16.msra.mxu0 %v2998
    %3044 = vmatprep.subr.bf16.mxu0 %v3002
    %3045 = vmatpush1.bf16.msra.mxu0 %v3001
    %3046 = vmatprep.subr.bf16.mxu0 %v3005
    %3047 = vmatpush1.bf16.msra.mxu0 %v3004
    %3048 = vmatprep.subr.bf16.mxu0 %v3008
    %3049 = vmatpush1.bf16.msra.mxu0 %v3007
    %3050 = vmatprep.subr.bf16.mxu0 0
    %3051 = vmatpush1.bf16.msra.mxu0 0
    %3052 = vmatprep.subr.bf16.mxu0 0
    %3053 = vmatpush1.bf16.msra.mxu0 0
    %3054 = vmatprep.subr.bf16.mxu0 0
    %3055 = vmatpush1.bf16.msra.mxu0 0
    %3056 = vmatprep.subr.bf16.mxu0 0
    %3057 = vmatpush1.bf16.msra.mxu0 0
    %3058 = vmatprep.subr.bf16.mxu0 0
    %3059 = vmatpush1.bf16.msra.mxu0 0
    %3060 = vmatprep.subr.bf16.mxu0 0
    %3061 = vmatpush1.bf16.msra.mxu0 0
    %3062 = vmatprep.subr.bf16.mxu0 0
    %3063 = vmatpush1.bf16.msra.mxu0 0
    %3064 = vmatprep.subr.bf16.mxu0 0
    %3065 = vmatpush1.bf16.msra.mxu0 0
    %3066 = vmatprep.mubr.bf16.mxu0 0
    %3067 = vmatmul.mubr.bf16.gmra.mrb[0].mxu0 0
    %v3068 = vpop.f32.mrb[0].mxu0
    %v3069 = vadd.f32 0.0, %v3068
    %v3070 = vpop.f32.mrb[0].mxu0
    %v3071 = vadd.f32 0.0, %v3070
    %v3072 = vpop.f32.mrb[0].mxu0
    %v3073 = vpop.f32.mrb[0].mxu0
    %3074 = vdwg.mxu0
    %3075 = vmatprep.subr.bf16.mxu0 0
    %3076 = vmatpush1.bf16.msra.mxu0 %v2988
    %3077 = vmatprep.subr.bf16.mxu0 0
    %3078 = vmatpush1.bf16.msra.mxu0 %v2991
    %3079 = vmatprep.subr.bf16.mxu0 0
    %3080 = vmatpush1.bf16.msra.mxu0 %v2994
    %3081 = vmatprep.subr.bf16.mxu0 0
    %3082 = vmatpush1.bf16.msra.mxu0 %v2997
    %3083 = vmatprep.subr.bf16.mxu0 0
    %3084 = vmatpush1.bf16.msra.mxu0 %v3000
    %3085 = vmatprep.subr.bf16.mxu0 0
    %3086 = vmatpush1.bf16.msra.mxu0 %v3003
    %3087 = vmatprep.subr.bf16.mxu0 0
    %3088 = vmatpush1.bf16.msra.mxu0 %v3006
    %3089 = vmatprep.subr.bf16.mxu0 0
    %3090 = vmatpush1.bf16.msra.mxu0 %v3009
    %3091 = vmatprep.subr.bf16.mxu0 0
    %3092 = vmatpush1.bf16.msra.mxu0 0
    %3093 = vmatprep.subr.bf16.mxu0 0
    %3094 = vmatpush1.bf16.msra.mxu0 0
    %3095 = vmatprep.subr.bf16.mxu0 0
    %3096 = vmatpush1.bf16.msra.mxu0 0
    %3097 = vmatprep.subr.bf16.mxu0 0
    %3098 = vmatpush1.bf16.msra.mxu0 0
    %3099 = vmatprep.subr.bf16.mxu0 0
    %3100 = vmatpush1.bf16.msra.mxu0 0
    %3101 = vmatprep.subr.bf16.mxu0 0
    %3102 = vmatpush1.bf16.msra.mxu0 0
    %3103 = vmatprep.subr.bf16.mxu0 0
    %3104 = vmatpush1.bf16.msra.mxu0 0
    %3105 = vmatprep.subr.bf16.mxu0 0
    %3106 = vmatpush1.bf16.msra.mxu0 0
    %3107 = vmatprep.mubr.bf16.mxu0 0
    %3108 = vmatmul.mubr.bf16.gmra.mrb[0].mxu0 0
    %v3109 = vpop.f32.mrb[0].mxu0
    %v3110 = vadd.f32 0.0, %v3109
    %v3111 = vpop.f32.mrb[0].mxu0
    %v3112 = vpop.f32.mrb[0].mxu0
    %v3113 = vpop.f32.mrb[0].mxu0
    %3114 = vdwg.mxu0
    %v3115 = vld [vmem:[#allocation4] sm:$0xff]
    %v3116 = vld [vmem:[#allocation4 + $0x8] sm:$0xff]
    %v3117 = vld [vmem:[#allocation4 + $0x10] sm:$0xff]
    %v3118 = vadd.f32 %v3115, %v3069
    %v3119 = vadd.f32 %v3116, %v3071
    %v3120 = vxor.u32 %v3118, 2147483648
    %v3121 = vxor.u32 %v3119, 2147483648
    %v3122 = vmul.f32 %v3120, 1.442695
    %v3123 = vpow.pop %v3122
    %v3124 = vmul.f32 %v3121, 1.442695
    %v3125 = vpow.pop %v3124
    %v3126 = vadd.f32 %v3123, 1.0
    %v3127 = vadd.f32 %v3125, 1.0
    %v3128 = vrcp.pop %v3126
    %v3129 = vmul.f32 1.0, %v3128
    %v3130 = vrcp.pop %v3127
    %v3131 = vmul.f32 1.0, %v3130
    %v3133 = vlaneseq
    %v3134 = vshrl.u32 %v3133, 7
    %v3135 = vsub.s32 0, %v3134
    %v3136 = vrot.slane %v367, %v3135
    %v3138 = vadd.f32 %v3110, %v3136
    %v3139 = vmul.f32 %v3129, %v3138
    %v3140 = vadd.f32 %v3117, %v3139
    %v3141 = vtanh.pop %v3140
    %v3142 = vsub.f32 0.0, %v3141
    %v3143 = vmul.f32 %v3131, %v3142
    %v3144 = vadd.f32 %v3141, %v3143
    %v3145 = vpack.c.bf16 %v3144, %v3144
    %3146 = vmatprep.subr.bf16.mxu0 %v2987
    %3147 = vmatpush1.bf16.msra.mxu0 %v2986
    %3148 = vmatprep.subr.bf16.mxu0 %v2990
    %3149 = vmatpush1.bf16.msra.mxu0 %v2989
    %3150 = vmatprep.subr.bf16.mxu0 %v2993
    %3151 = vmatpush1.bf16.msra.mxu0 %v2992
    %3152 = vmatprep.subr.bf16.mxu0 %v2996
    %3153 = vmatpush1.bf16.msra.mxu0 %v2995
    %3154 = vmatprep.subr.bf16.mxu0 %v2999
    %3155 = vmatpush1.bf16.msra.mxu0 %v2998
    %3156 = vmatprep.subr.bf16.mxu0 %v3002
    %3157 = vmatpush1.bf16.msra.mxu0 %v3001
    %3158 = vmatprep.subr.bf16.mxu0 %v3005
    %3159 = vmatpush1.bf16.msra.mxu0 %v3004
    %3160 = vmatprep.subr.bf16.mxu0 %v3008
    %3161 = vmatpush1.bf16.msra.mxu0 %v3007
    %3162 = vmatprep.subr.bf16.mxu0 0
    %3163 = vmatpush1.bf16.msra.mxu0 0
    %3164 = vmatprep.subr.bf16.mxu0 0
    %3165 = vmatpush1.bf16.msra.mxu0 0
    %3166 = vmatprep.subr.bf16.mxu0 0
    %3167 = vmatpush1.bf16.msra.mxu0 0
    %3168 = vmatprep.subr.bf16.mxu0 0
    %3169 = vmatpush1.bf16.msra.mxu0 0
    %3170 = vmatprep.subr.bf16.mxu0 0
    %3171 = vmatpush1.bf16.msra.mxu0 0
    %3172 = vmatprep.subr.bf16.mxu0 0
    %3173 = vmatpush1.bf16.msra.mxu0 0
    %3174 = vmatprep.subr.bf16.mxu0 0
    %3175 = vmatpush1.bf16.msra.mxu0 0
    %3176 = vmatprep.subr.bf16.mxu0 0
    %3177 = vmatpush1.bf16.msra.mxu0 0
    %3178 = vmatprep.mubr.bf16.mxu0 0
    %3179 = vmatmul.mubr.bf16.gmra.mrb[0].mxu0 %v3145
    %v3180 = vpop.f32.mrb[0].mxu0
    %v3181 = vadd.f32 0.0, %v3180
    %v3182 = vpop.f32.mrb[0].mxu0
    %v3183 = vadd.f32 0.0, %v3182
    %v3184 = vpop.f32.mrb[0].mxu0
    %v3185 = vpop.f32.mrb[0].mxu0
    %3186 = vdwg.mxu0
    %3187 = vmatprep.subr.bf16.mxu0 0
    %3188 = vmatpush1.bf16.msra.mxu0 %v2988
    %3189 = vmatprep.subr.bf16.mxu0 0
    %3190 = vmatpush1.bf16.msra.mxu0 %v2991
    %3191 = vmatprep.subr.bf16.mxu0 0
    %3192 = vmatpush1.bf16.msra.mxu0 %v2994
    %3193 = vmatprep.subr.bf16.mxu0 0
    %3194 = vmatpush1.bf16.msra.mxu0 %v2997
    %3195 = vmatprep.subr.bf16.mxu0 0
    %3196 = vmatpush1.bf16.msra.mxu0 %v3000
    %3197 = vmatprep.subr.bf16.mxu0 0
    %3198 = vmatpush1.bf16.msra.mxu0 %v3003
    %3199 = vmatprep.subr.bf16.mxu0 0
    %3200 = vmatpush1.bf16.msra.mxu0 %v3006
    %3201 = vmatprep.subr.bf16.mxu0 0
    %3202 = vmatpush1.bf16.msra.mxu0 %v3009
    %3203 = vmatprep.subr.bf16.mxu0 0
    %3204 = vmatpush1.bf16.msra.mxu0 0
    %3205 = vmatprep.subr.bf16.mxu0 0
    %3206 = vmatpush1.bf16.msra.mxu0 0
    %3207 = vmatprep.subr.bf16.mxu0 0
    %3208 = vmatpush1.bf16.msra.mxu0 0
    %3209 = vmatprep.subr.bf16.mxu0 0
    %3210 = vmatpush1.bf16.msra.mxu0 0
    %3211 = vmatprep.subr.bf16.mxu0 0
    %3212 = vmatpush1.bf16.msra.mxu0 0
    %3213 = vmatprep.subr.bf16.mxu0 0
    %3214 = vmatpush1.bf16.msra.mxu0 0
    %3215 = vmatprep.subr.bf16.mxu0 0
    %3216 = vmatpush1.bf16.msra.mxu0 0
    %3217 = vmatprep.subr.bf16.mxu0 0
    %3218 = vmatpush1.bf16.msra.mxu0 0
    %3219 = vmatprep.mubr.bf16.mxu0 0
    %3220 = vmatmul.mubr.bf16.gmra.mrb[0].mxu0 %v3145
    %v3221 = vpop.f32.mrb[0].mxu0
    %v3222 = vadd.f32 0.0, %v3221
    %v3223 = vpop.f32.mrb[0].mxu0
    %v3224 = vpop.f32.mrb[0].mxu0
    %v3225 = vpop.f32.mrb[0].mxu0
    %3226 = vdwg.mxu0
    %s3227 = scalar_lea.vmem [#allocation4], 24
    %v3228 = vld [vmem:[%s3227] sm:$0xff]
    %v3229 = vld [vmem:[%s3227 + $0x8] sm:$0xff]
    %v3230 = vld [vmem:[%s3227 + $0x10] sm:$0xff]
    %v3231 = vadd.f32 %v3228, %v3181
    %v3232 = vadd.f32 %v3229, %v3183
    %v3233 = vxor.u32 %v3231, 2147483648
    %v3234 = vxor.u32 %v3232, 2147483648
    %v3235 = vmul.f32 %v3233, 1.442695
    %v3236 = vpow.pop %v3235
    %v3237 = vmul.f32 %v3234, 1.442695
    %v3238 = vpow.pop %v3237
    %v3239 = vadd.f32 %v3236, 1.0
    %v3240 = vadd.f32 %v3238, 1.0
    %v3241 = vrcp.pop %v3239
    %v3242 = vmul.f32 1.0, %v3241
    %v3243 = vrcp.pop %v3240
    %v3244 = vmul.f32 1.0, %v3243
    %v3245 = vadd.f32 %v3222, %v3136
    %v3246 = vmul.f32 %v3242, %v3245
    %v3247 = vadd.f32 %v3230, %v3246
    %v3248 = vtanh.pop %v3247
    %v3249 = vsub.f32 %v3144, %v3248
    %v3250 = vmul.f32 %v3244, %v3249
    %v3251 = vadd.f32 %v3248, %v3250
    %v3252 = vpack.c.bf16 %v3251, %v3251
    %3253 = vmatprep.subr.bf16.mxu0 %v2987
    %3254 = vmatpush1.bf16.msra.mxu0 %v2986
    %3255 = vmatprep.subr.bf16.mxu0 %v2990
    %3256 = vmatpush1.bf16.msra.mxu0 %v2989
    %3257 = vmatprep.subr.bf16.mxu0 %v2993
    %3258 = vmatpush1.bf16.msra.mxu0 %v2992
    %3259 = vmatprep.subr.bf16.mxu0 %v2996
    %3260 = vmatpush1.bf16.msra.mxu0 %v2995
    %3261 = vmatprep.subr.bf16.mxu0 %v2999
    %3262 = vmatpush1.bf16.msra.mxu0 %v2998
    %3263 = vmatprep.subr.bf16.mxu0 %v3002
    %3264 = vmatpush1.bf16.msra.mxu0 %v3001
    %3265 = vmatprep.subr.bf16.mxu0 %v3005
    %3266 = vmatpush1.bf16.msra.mxu0 %v3004
    %3267 = vmatprep.subr.bf16.mxu0 %v3008
    %3268 = vmatpush1.bf16.msra.mxu0 %v3007
    %3269 = vmatprep.subr.bf16.mxu0 0
    %3270 = vmatpush1.bf16.msra.mxu0 0
    %3271 = vmatprep.subr.bf16.mxu0 0
    %3272 = vmatpush1.bf16.msra.mxu0 0
    %3273 = vmatprep.subr.bf16.mxu0 0
    %3274 = vmatpush1.bf16.msra.mxu0 0
    %3275 = vmatprep.subr.bf16.mxu0 0
    %3276 = vmatpush1.bf16.msra.mxu0 0
    %3277 = vmatprep.subr.bf16.mxu0 0
    %3278 = vmatpush1.bf16.msra.mxu0 0
    %3279 = vmatprep.subr.bf16.mxu0 0
    %3280 = vmatpush1.bf16.msra.mxu0 0
    %3281 = vmatprep.subr.bf16.mxu0 0
    %3282 = vmatpush1.bf16.msra.mxu0 0
    %3283 = vmatprep.subr.bf16.mxu0 0
    %3284 = vmatpush1.bf16.msra.mxu0 0
    %3285 = vmatprep.mubr.bf16.mxu0 0
    %3286 = vmatmul.mubr.bf16.gmra.mrb[0].mxu0 %v3252
    %v3287 = vpop.f32.mrb[0].mxu0
    %v3288 = vadd.f32 0.0, %v3287
    %v3289 = vpop.f32.mrb[0].mxu0
    %v3290 = vadd.f32 0.0, %v3289
    %v3291 = vpop.f32.mrb[0].mxu0
    %v3292 = vpop.f32.mrb[0].mxu0
    %3293 = vdwg.mxu0
    %3294 = vmatprep.subr.bf16.mxu0 0
    %3295 = vmatpush1.bf16.msra.mxu0 %v2988
    %3296 = vmatprep.subr.bf16.mxu0 0
    %3297 = vmatpush1.bf16.msra.mxu0 %v2991
    %3298 = vmatprep.subr.bf16.mxu0 0
    %3299 = vmatpush1.bf16.msra.mxu0 %v2994
    %3300 = vmatprep.subr.bf16.mxu0 0
    %3301 = vmatpush1.bf16.msra.mxu0 %v2997
    %3302 = vmatprep.subr.bf16.mxu0 0
    %3303 = vmatpush1.bf16.msra.mxu0 %v3000
    %3304 = vmatprep.subr.bf16.mxu0 0
    %3305 = vmatpush1.bf16.msra.mxu0 %v3003
    %3306 = vmatprep.subr.bf16.mxu0 0
    %3307 = vmatpush1.bf16.msra.mxu0 %v3006
    %3308 = vmatprep.subr.bf16.mxu0 0
    %3309 = vmatpush1.bf16.msra.mxu0 %v3009
    %3310 = vmatprep.subr.bf16.mxu0 0
    %3311 = vmatpush1.bf16.msra.mxu0 0
    %3312 = vmatprep.subr.bf16.mxu0 0
    %3313 = vmatpush1.bf16.msra.mxu0 0
    %3314 = vmatprep.subr.bf16.mxu0 0
    %3315 = vmatpush1.bf16.msra.mxu0 0
    %3316 = vmatprep.subr.bf16.mxu0 0
    %3317 = vmatpush1.bf16.msra.mxu0 0
    %3318 = vmatprep.subr.bf16.mxu0 0
    %3319 = vmatpush1.bf16.msra.mxu0 0
    %3320 = vmatprep.subr.bf16.mxu0 0
    %3321 = vmatpush1.bf16.msra.mxu0 0
    %3322 = vmatprep.subr.bf16.mxu0 0
    %3323 = vmatpush1.bf16.msra.mxu0 0
    %3324 = vmatprep.subr.bf16.mxu0 0
    %3325 = vmatpush1.bf16.msra.mxu0 0
    %3326 = vmatprep.mubr.bf16.mxu0 0
    %3327 = vmatmul.mubr.bf16.gmra.mrb[0].mxu0 %v3252
    %v3328 = vpop.f32.mrb[0].mxu0
    %v3329 = vadd.f32 0.0, %v3328
    %v3330 = vpop.f32.mrb[0].mxu0
    %v3331 = vpop.f32.mrb[0].mxu0
    %v3332 = vpop.f32.mrb[0].mxu0
    %3333 = vdwg.mxu0
    %s3334 = scalar_lea.vmem [#allocation4], 48
    %v3335 = vld [vmem:[%s3334] sm:$0xff]
    %v3336 = vld [vmem:[%s3334 + $0x8] sm:$0xff]
    %v3337 = vld [vmem:[%s3334 + $0x10] sm:$0xff]
    %v3338 = vadd.f32 %v3335, %v3288
    %v3339 = vadd.f32 %v3336, %v3290
    %v3340 = vxor.u32 %v3338, 2147483648
    %v3341 = vxor.u32 %v3339, 2147483648
    %v3342 = vmul.f32 %v3340, 1.442695
    %v3343 = vpow.pop %v3342
    %v3344 = vmul.f32 %v3341, 1.442695
    %v3345 = vpow.pop %v3344
    %v3346 = vadd.f32 %v3343, 1.0
    %v3347 = vadd.f32 %v3345, 1.0
    %v3348 = vrcp.pop %v3346
    %v3349 = vmul.f32 1.0, %v3348
    %v3350 = vrcp.pop %v3347
    %v3351 = vmul.f32 1.0, %v3350
    %v3352 = vadd.f32 %v3329, %v3136
    %v3353 = vmul.f32 %v3349, %v3352
    %v3354 = vadd.f32 %v3337, %v3353
    %v3355 = vtanh.pop %v3354
    %v3356 = vsub.f32 %v3251, %v3355
    %v3357 = vmul.f32 %v3351, %v3356
    %v3358 = vadd.f32 %v3355, %v3357
    %v3359 = vpack.c.bf16 %v3358, %v3358
    %3360 = vmatprep.subr.bf16.mxu0 %v2987
    %3361 = vmatpush1.bf16.msra.mxu0 %v2986
    %3362 = vmatprep.subr.bf16.mxu0 %v2990
    %3363 = vmatpush1.bf16.msra.mxu0 %v2989
    %3364 = vmatprep.subr.bf16.mxu0 %v2993
    %3365 = vmatpush1.bf16.msra.mxu0 %v2992
    %3366 = vmatprep.subr.bf16.mxu0 %v2996
    %3367 = vmatpush1.bf16.msra.mxu0 %v2995
    %3368 = vmatprep.subr.bf16.mxu0 %v2999
    %3369 = vmatpush1.bf16.msra.mxu0 %v2998
    %3370 = vmatprep.subr.bf16.mxu0 %v3002
    %3371 = vmatpush1.bf16.msra.mxu0 %v3001
    %3372 = vmatprep.subr.bf16.mxu0 %v3005
    %3373 = vmatpush1.bf16.msra.mxu0 %v3004
    %3374 = vmatprep.subr.bf16.mxu0 %v3008
    %3375 = vmatpush1.bf16.msra.mxu0 %v3007
    %3376 = vmatprep.subr.bf16.mxu0 0
    %3377 = vmatpush1.bf16.msra.mxu0 0
    %3378 = vmatprep.subr.bf16.mxu0 0
    %3379 = vmatpush1.bf16.msra.mxu0 0
    %3380 = vmatprep.subr.bf16.mxu0 0
    %3381 = vmatpush1.bf16.msra.mxu0 0
    %3382 = vmatprep.subr.bf16.mxu0 0
    %3383 = vmatpush1.bf16.msra.mxu0 0
    %3384 = vmatprep.subr.bf16.mxu0 0
    %3385 = vmatpush1.bf16.msra.mxu0 0
    %3386 = vmatprep.subr.bf16.mxu0 0
    %3387 = vmatpush1.bf16.msra.mxu0 0
    %3388 = vmatprep.subr.bf16.mxu0 0
    %3389 = vmatpush1.bf16.msra.mxu0 0
    %3390 = vmatprep.subr.bf16.mxu0 0
    %3391 = vmatpush1.bf16.msra.mxu0 0
    %3392 = vmatprep.mubr.bf16.mxu0 0
    %3393 = vmatmul.mubr.bf16.gmra.mrb[0].mxu0 %v3359
    %v3394 = vpop.f32.mrb[0].mxu0
    %v3395 = vadd.f32 0.0, %v3394
    %v3396 = vpop.f32.mrb[0].mxu0
    %v3397 = vadd.f32 0.0, %v3396
    %v3398 = vpop.f32.mrb[0].mxu0
    %v3399 = vpop.f32.mrb[0].mxu0
    %3400 = vdwg.mxu0
    %3401 = vmatprep.subr.bf16.mxu0 0
    %3402 = vmatpush1.bf16.msra.mxu0 %v2988
    %3403 = vmatprep.subr.bf16.mxu0 0
    %3404 = vmatpush1.bf16.msra.mxu0 %v2991
    %3405 = vmatprep.subr.bf16.mxu0 0
    %3406 = vmatpush1.bf16.msra.mxu0 %v2994
    %3407 = vmatprep.subr.bf16.mxu0 0
    %3408 = vmatpush1.bf16.msra.mxu0 %v2997
    %3409 = vmatprep.subr.bf16.mxu0 0
    %3410 = vmatpush1.bf16.msra.mxu0 %v3000
    %3411 = vmatprep.subr.bf16.mxu0 0
    %3412 = vmatpush1.bf16.msra.mxu0 %v3003
    %3413 = vmatprep.subr.bf16.mxu0 0
    %3414 = vmatpush1.bf16.msra.mxu0 %v3006
    %3415 = vmatprep.subr.bf16.mxu0 0
    %3416 = vmatpush1.bf16.msra.mxu0 %v3009
    %3417 = vmatprep.subr.bf16.mxu0 0
    %3418 = vmatpush1.bf16.msra.mxu0 0
    %3419 = vmatprep.subr.bf16.mxu0 0
    %3420 = vmatpush1.bf16.msra.mxu0 0
    %3421 = vmatprep.subr.bf16.mxu0 0
    %3422 = vmatpush1.bf16.msra.mxu0 0
    %3423 = vmatprep.subr.bf16.mxu0 0
    %3424 = vmatpush1.bf16.msra.mxu0 0
    %3425 = vmatprep.subr.bf16.mxu0 0
    %3426 = vmatpush1.bf16.msra.mxu0 0
    %3427 = vmatprep.subr.bf16.mxu0 0
    %3428 = vmatpush1.bf16.msra.mxu0 0
    %3429 = vmatprep.subr.bf16.mxu0 0
    %3430 = vmatpush1.bf16.msra.mxu0 0
    %3431 = vmatprep.subr.bf16.mxu0 0
    %3432 = vmatpush1.bf16.msra.mxu0 0
    %3433 = vmatprep.mubr.bf16.mxu0 0
    %3434 = vmatmul.mubr.bf16.gmra.mrb[0].mxu0 %v3359
    %v3435 = vpop.f32.mrb[0].mxu0
    %v3436 = vadd.f32 0.0, %v3435
    %v3437 = vpop.f32.mrb[0].mxu0
    %v3438 = vpop.f32.mrb[0].mxu0
    %v3439 = vpop.f32.mrb[0].mxu0
    %3440 = vdwg.mxu0
    %s3441 = scalar_lea.vmem [#allocation4], 72
    %v3442 = vld [vmem:[%s3441] sm:$0xff]
    %v3443 = vld [vmem:[%s3441 + $0x8] sm:$0xff]
    %v3444 = vld [vmem:[%s3441 + $0x10] sm:$0xff]
    %v3445 = vadd.f32 %v3442, %v3395
    %v3446 = vadd.f32 %v3443, %v3397
    %v3447 = vxor.u32 %v3445, 2147483648
    %v3448 = vxor.u32 %v3446, 2147483648
    %v3449 = vmul.f32 %v3447, 1.442695
    %v3450 = vpow.pop %v3449
    %v3451 = vmul.f32 %v3448, 1.442695
    %v3452 = vpow.pop %v3451
    %v3453 = vadd.f32 %v3450, 1.0
    %v3454 = vadd.f32 %v3452, 1.0
    %v3455 = vrcp.pop %v3453
    %v3456 = vmul.f32 1.0, %v3455
    %v3457 = vrcp.pop %v3454
    %v3458 = vmul.f32 1.0, %v3457
    %v3459 = vadd.f32 %v3436, %v3136
    %v3460 = vmul.f32 %v3456, %v3459
    %v3461 = vadd.f32 %v3444, %v3460
    %v3462 = vtanh.pop %v3461
    %v3463 = vsub.f32 %v3358, %v3462
    %v3464 = vmul.f32 %v3458, %v3463
    %v3465 = vadd.f32 %v3462, %v3464
    %v3466 = vpack.c.bf16 %v3465, %v3465
    %3467 = vmatprep.subr.bf16.mxu0 %v2987
    %3468 = vmatpush1.bf16.msra.mxu0 %v2986
    %3469 = vmatprep.subr.bf16.mxu0 %v2990
    %3470 = vmatpush1.bf16.msra.mxu0 %v2989
    %3471 = vmatprep.subr.bf16.mxu0 %v2993
    %3472 = vmatpush1.bf16.msra.mxu0 %v2992
    %3473 = vmatprep.subr.bf16.mxu0 %v2996
    %3474 = vmatpush1.bf16.msra.mxu0 %v2995
    %3475 = vmatprep.subr.bf16.mxu0 %v2999
    %3476 = vmatpush1.bf16.msra.mxu0 %v2998
    %3477 = vmatprep.subr.bf16.mxu0 %v3002
    %3478 = vmatpush1.bf16.msra.mxu0 %v3001
    %3479 = vmatprep.subr.bf16.mxu0 %v3005
    %3480 = vmatpush1.bf16.msra.mxu0 %v3004
    %3481 = vmatprep.subr.bf16.mxu0 %v3008
    %3482 = vmatpush1.bf16.msra.mxu0 %v3007
    %3483 = vmatprep.subr.bf16.mxu0 0
    %3484 = vmatpush1.bf16.msra.mxu0 0
    %3485 = vmatprep.subr.bf16.mxu0 0
    %3486 = vmatpush1.bf16.msra.mxu0 0
    %3487 = vmatprep.subr.bf16.mxu0 0
    %3488 = vmatpush1.bf16.msra.mxu0 0
    %3489 = vmatprep.subr.bf16.mxu0 0
    %3490 = vmatpush1.bf16.msra.mxu0 0
    %3491 = vmatprep.subr.bf16.mxu0 0
    %3492 = vmatpush1.bf16.msra.mxu0 0
    %3493 = vmatprep.subr.bf16.mxu0 0
    %3494 = vmatpush1.bf16.msra.mxu0 0
    %3495 = vmatprep.subr.bf16.mxu0 0
    %3496 = vmatpush1.bf16.msra.mxu0 0
    %3497 = vmatprep.subr.bf16.mxu0 0
    %3498 = vmatpush1.bf16.msra.mxu0 0
    %3499 = vmatprep.mubr.bf16.mxu0 0
    %3500 = vmatmul.mubr.bf16.gmra.mrb[0].mxu0 %v3466
    %v3501 = vpop.f32.mrb[0].mxu0
    %v3502 = vadd.f32 0.0, %v3501
    %v3503 = vpop.f32.mrb[0].mxu0
    %v3504 = vadd.f32 0.0, %v3503
    %v3505 = vpop.f32.mrb[0].mxu0
    %v3506 = vpop.f32.mrb[0].mxu0
    %3507 = vdwg.mxu0
    %3508 = vmatprep.subr.bf16.mxu0 0
    %3509 = vmatpush1.bf16.msra.mxu0 %v2988
    %3510 = vmatprep.subr.bf16.mxu0 0
    %3511 = vmatpush1.bf16.msra.mxu0 %v2991
    %3512 = vmatprep.subr.bf16.mxu0 0
    %3513 = vmatpush1.bf16.msra.mxu0 %v2994
    %3514 = vmatprep.subr.bf16.mxu0 0
    %3515 = vmatpush1.bf16.msra.mxu0 %v2997
    %3516 = vmatprep.subr.bf16.mxu0 0
    %3517 = vmatpush1.bf16.msra.mxu0 %v3000
    %3518 = vmatprep.subr.bf16.mxu0 0
    %3519 = vmatpush1.bf16.msra.mxu0 %v3003
    %3520 = vmatprep.subr.bf16.mxu0 0
    %3521 = vmatpush1.bf16.msra.mxu0 %v3006
    %3522 = vmatprep.subr.bf16.mxu0 0
    %3523 = vmatpush1.bf16.msra.mxu0 %v3009
    %3524 = vmatprep.subr.bf16.mxu0 0
    %3525 = vmatpush1.bf16.msra.mxu0 0
    %3526 = vmatprep.subr.bf16.mxu0 0
    %3527 = vmatpush1.bf16.msra.mxu0 0
    %3528 = vmatprep.subr.bf16.mxu0 0
    %3529 = vmatpush1.bf16.msra.mxu0 0
    %3530 = vmatprep.subr.bf16.mxu0 0
    %3531 = vmatpush1.bf16.msra.mxu0 0
    %3532 = vmatprep.subr.bf16.mxu0 0
    %3533 = vmatpush1.bf16.msra.mxu0 0
    %3534 = vmatprep.subr.bf16.mxu0 0
    %3535 = vmatpush1.bf16.msra.mxu0 0
    %3536 = vmatprep.subr.bf16.mxu0 0
    %3537 = vmatpush1.bf16.msra.mxu0 0
    %3538 = vmatprep.subr.bf16.mxu0 0
    %3539 = vmatpush1.bf16.msra.mxu0 0
    %3540 = vmatprep.mubr.bf16.mxu0 0
    %3541 = vmatmul.mubr.bf16.gmra.mrb[0].mxu0 %v3466
    %v3542 = vpop.f32.mrb[0].mxu0
    %v3543 = vadd.f32 0.0, %v3542
    %v3544 = vpop.f32.mrb[0].mxu0
    %v3545 = vpop.f32.mrb[0].mxu0
    %v3546 = vpop.f32.mrb[0].mxu0
    %3547 = vdwg.mxu0
    %s3548 = scalar_lea.vmem [#allocation4], 96
    %v3549 = vld [vmem:[%s3548] sm:$0xff]
    %v3550 = vld [vmem:[%s3548 + $0x8] sm:$0xff]
    %v3551 = vld [vmem:[%s3548 + $0x10] sm:$0xff]
    %v3552 = vadd.f32 %v3549, %v3502
    %v3553 = vadd.f32 %v3550, %v3504
    %v3554 = vxor.u32 %v3552, 2147483648
    %v3555 = vxor.u32 %v3553, 2147483648
    %v3556 = vmul.f32 %v3554, 1.442695
    %v3557 = vpow.pop %v3556
    %v3558 = vmul.f32 %v3555, 1.442695
    %v3559 = vpow.pop %v3558
    %v3560 = vadd.f32 %v3557, 1.0
    %v3561 = vadd.f32 %v3559, 1.0
    %v3562 = vrcp.pop %v3560
    %v3563 = vmul.f32 1.0, %v3562
    %v3564 = vrcp.pop %v3561
    %v3565 = vmul.f32 1.0, %v3564
    %v3566 = vadd.f32 %v3543, %v3136
    %v3567 = vmul.f32 %v3563, %v3566
    %v3568 = vadd.f32 %v3551, %v3567
    %v3569 = vtanh.pop %v3568
    %v3570 = vsub.f32 %v3465, %v3569
    %v3571 = vmul.f32 %v3565, %v3570
    %v3572 = vadd.f32 %v3569, %v3571
    %v3573 = vpack.c.bf16 %v3572, %v3572
    %3574 = vmatprep.subr.bf16.mxu0 %v2987
    %3575 = vmatpush1.bf16.msra.mxu0 %v2986
    %3576 = vmatprep.subr.bf16.mxu0 %v2990
    %3577 = vmatpush1.bf16.msra.mxu0 %v2989
    %3578 = vmatprep.subr.bf16.mxu0 %v2993
    %3579 = vmatpush1.bf16.msra.mxu0 %v2992
    %3580 = vmatprep.subr.bf16.mxu0 %v2996
    %3581 = vmatpush1.bf16.msra.mxu0 %v2995
    %3582 = vmatprep.subr.bf16.mxu0 %v2999
    %3583 = vmatpush1.bf16.msra.mxu0 %v2998
    %3584 = vmatprep.subr.bf16.mxu0 %v3002
    %3585 = vmatpush1.bf16.msra.mxu0 %v3001
    %3586 = vmatprep.subr.bf16.mxu0 %v3005
    %3587 = vmatpush1.bf16.msra.mxu0 %v3004
    %3588 = vmatprep.subr.bf16.mxu0 %v3008
    %3589 = vmatpush1.bf16.msra.mxu0 %v3007
    %3590 = vmatprep.subr.bf16.mxu0 0
    %3591 = vmatpush1.bf16.msra.mxu0 0
    %3592 = vmatprep.subr.bf16.mxu0 0
    %3593 = vmatpush1.bf16.msra.mxu0 0
    %3594 = vmatprep.subr.bf16.mxu0 0
    %3595 = vmatpush1.bf16.msra.mxu0 0
    %3596 = vmatprep.subr.bf16.mxu0 0
    %3597 = vmatpush1.bf16.msra.mxu0 0
    %3598 = vmatprep.subr.bf16.mxu0 0
    %3599 = vmatpush1.bf16.msra.mxu0 0
    %3600 = vmatprep.subr.bf16.mxu0 0
    %3601 = vmatpush1.bf16.msra.mxu0 0
    %3602 = vmatprep.subr.bf16.mxu0 0
    %3603 = vmatpush1.bf16.msra.mxu0 0
    %3604 = vmatprep.subr.bf16.mxu0 0
    %3605 = vmatpush1.bf16.msra.mxu0 0
    %3606 = vmatprep.mubr.bf16.mxu0 0
    %3607 = vmatmul.mubr.bf16.gmra.mrb[0].mxu0 %v3573
    %v3608 = vpop.f32.mrb[0].mxu0
    %v3609 = vadd.f32 0.0, %v3608
    %v3610 = vpop.f32.mrb[0].mxu0
    %v3611 = vadd.f32 0.0, %v3610
    %v3612 = vpop.f32.mrb[0].mxu0
    %v3613 = vpop.f32.mrb[0].mxu0
    %3614 = vdwg.mxu0
    %3615 = vmatprep.subr.bf16.mxu0 0
    %3616 = vmatpush1.bf16.msra.mxu0 %v2988
    %3617 = vmatprep.subr.bf16.mxu0 0
    %3618 = vmatpush1.bf16.msra.mxu0 %v2991
    %3619 = vmatprep.subr.bf16.mxu0 0
    %3620 = vmatpush1.bf16.msra.mxu0 %v2994
    %3621 = vmatprep.subr.bf16.mxu0 0
    %3622 = vmatpush1.bf16.msra.mxu0 %v2997
    %3623 = vmatprep.subr.bf16.mxu0 0
    %3624 = vmatpush1.bf16.msra.mxu0 %v3000
    %3625 = vmatprep.subr.bf16.mxu0 0
    %3626 = vmatpush1.bf16.msra.mxu0 %v3003
    %3627 = vmatprep.subr.bf16.mxu0 0
    %3628 = vmatpush1.bf16.msra.mxu0 %v3006
    %3629 = vmatprep.subr.bf16.mxu0 0
    %3630 = vmatpush1.bf16.msra.mxu0 %v3009
    %3631 = vmatprep.subr.bf16.mxu0 0
    %3632 = vmatpush1.bf16.msra.mxu0 0
    %3633 = vmatprep.subr.bf16.mxu0 0
    %3634 = vmatpush1.bf16.msra.mxu0 0
    %3635 = vmatprep.subr.bf16.mxu0 0
    %3636 = vmatpush1.bf16.msra.mxu0 0
    %3637 = vmatprep.subr.bf16.mxu0 0
    %3638 = vmatpush1.bf16.msra.mxu0 0
    %3639 = vmatprep.subr.bf16.mxu0 0
    %3640 = vmatpush1.bf16.msra.mxu0 0
    %3641 = vmatprep.subr.bf16.mxu0 0
    %3642 = vmatpush1.bf16.msra.mxu0 0
    %3643 = vmatprep.subr.bf16.mxu0 0
    %3644 = vmatpush1.bf16.msra.mxu0 0
    %3645 = vmatprep.subr.bf16.mxu0 0
    %3646 = vmatpush1.bf16.msra.mxu0 0
    %3647 = vmatprep.mubr.bf16.mxu0 0
    %3648 = vmatmul.mubr.bf16.gmra.mrb[0].mxu0 %v3573
    %v3649 = vpop.f32.mrb[0].mxu0
    %v3650 = vadd.f32 0.0, %v3649
    %v3651 = vpop.f32.mrb[0].mxu0
    %v3652 = vpop.f32.mrb[0].mxu0
    %v3653 = vpop.f32.mrb[0].mxu0
    %3654 = vdwg.mxu0
    %s3655 = scalar_lea.vmem [#allocation4], 120
    %v3656 = vld [vmem:[%s3655] sm:$0xff]
    %v3657 = vld [vmem:[%s3655 + $0x8] sm:$0xff]
    %v3658 = vld [vmem:[%s3655 + $0x10] sm:$0xff]
    %v3659 = vadd.f32 %v3656, %v3609
    %v3660 = vadd.f32 %v3657, %v3611
    %v3661 = vxor.u32 %v3659, 2147483648
    %v3662 = vxor.u32 %v3660, 2147483648
    %v3663 = vmul.f32 %v3661, 1.442695
    %v3664 = vpow.pop %v3663
    %v3665 = vmul.f32 %v3662, 1.442695
    %v3666 = vpow.pop %v3665
    %v3667 = vadd.f32 %v3664, 1.0
    %v3668 = vadd.f32 %v3666, 1.0
    %v3669 = vrcp.pop %v3667
    %v3670 = vmul.f32 1.0, %v3669
    %v3671 = vrcp.pop %v3668
    %v3672 = vmul.f32 1.0, %v3671
    %v3673 = vadd.f32 %v3650, %v3136
    %v3674 = vmul.f32 %v3670, %v3673
    %v3675 = vadd.f32 %v3658, %v3674
    %v3676 = vtanh.pop %v3675
    %v3677 = vsub.f32 %v3572, %v3676
    %v3678 = vmul.f32 %v3672, %v3677
    %v3679 = vadd.f32 %v3676, %v3678
    %v3680 = vpack.c.bf16 %v3679, %v3679
    %3681 = vmatprep.subr.bf16.mxu0 %v2987
    %3682 = vmatpush1.bf16.msra.mxu0 %v2986
    %3683 = vmatprep.subr.bf16.mxu0 %v2990
    %3684 = vmatpush1.bf16.msra.mxu0 %v2989
    %3685 = vmatprep.subr.bf16.mxu0 %v2993
    %3686 = vmatpush1.bf16.msra.mxu0 %v2992
    %3687 = vmatprep.subr.bf16.mxu0 %v2996
    %3688 = vmatpush1.bf16.msra.mxu0 %v2995
    %3689 = vmatprep.subr.bf16.mxu0 %v2999
    %3690 = vmatpush1.bf16.msra.mxu0 %v2998
    %3691 = vmatprep.subr.bf16.mxu0 %v3002
    %3692 = vmatpush1.bf16.msra.mxu0 %v3001
    %3693 = vmatprep.subr.bf16.mxu0 %v3005
    %3694 = vmatpush1.bf16.msra.mxu0 %v3004
    %3695 = vmatprep.subr.bf16.mxu0 %v3008
    %3696 = vmatpush1.bf16.msra.mxu0 %v3007
    %3697 = vmatprep.subr.bf16.mxu0 0
    %3698 = vmatpush1.bf16.msra.mxu0 0
    %3699 = vmatprep.subr.bf16.mxu0 0
    %3700 = vmatpush1.bf16.msra.mxu0 0
    %3701 = vmatprep.subr.bf16.mxu0 0
    %3702 = vmatpush1.bf16.msra.mxu0 0
    %3703 = vmatprep.subr.bf16.mxu0 0
    %3704 = vmatpush1.bf16.msra.mxu0 0
    %3705 = vmatprep.subr.bf16.mxu0 0
    %3706 = vmatpush1.bf16.msra.mxu0 0
    %3707 = vmatprep.subr.bf16.mxu0 0
    %3708 = vmatpush1.bf16.msra.mxu0 0
    %3709 = vmatprep.subr.bf16.mxu0 0
    %3710 = vmatpush1.bf16.msra.mxu0 0
    %3711 = vmatprep.subr.bf16.mxu0 0
    %3712 = vmatpush1.bf16.msra.mxu0 0
    %3713 = vmatprep.mubr.bf16.mxu0 0
    %3714 = vmatmul.mubr.bf16.gmra.mrb[0].mxu0 %v3680
    %v3715 = vpop.f32.mrb[0].mxu0
    %v3716 = vadd.f32 0.0, %v3715
    %v3717 = vpop.f32.mrb[0].mxu0
    %v3718 = vadd.f32 0.0, %v3717
    %v3719 = vpop.f32.mrb[0].mxu0
    %v3720 = vpop.f32.mrb[0].mxu0
    %3721 = vdwg.mxu0
    %3722 = vmatprep.subr.bf16.mxu0 0
    %3723 = vmatpush1.bf16.msra.mxu0 %v2988
    %3724 = vmatprep.subr.bf16.mxu0 0
    %3725 = vmatpush1.bf16.msra.mxu0 %v2991
    %3726 = vmatprep.subr.bf16.mxu0 0
    %3727 = vmatpush1.bf16.msra.mxu0 %v2994
    %3728 = vmatprep.subr.bf16.mxu0 0
    %3729 = vmatpush1.bf16.msra.mxu0 %v2997
    %3730 = vmatprep.subr.bf16.mxu0 0
    %3731 = vmatpush1.bf16.msra.mxu0 %v3000
    %3732 = vmatprep.subr.bf16.mxu0 0
    %3733 = vmatpush1.bf16.msra.mxu0 %v3003
    %3734 = vmatprep.subr.bf16.mxu0 0
    %3735 = vmatpush1.bf16.msra.mxu0 %v3006
    %3736 = vmatprep.subr.bf16.mxu0 0
    %3737 = vmatpush1.bf16.msra.mxu0 %v3009
    %3738 = vmatprep.subr.bf16.mxu0 0
    %3739 = vmatpush1.bf16.msra.mxu0 0
    %3740 = vmatprep.subr.bf16.mxu0 0
    %3741 = vmatpush1.bf16.msra.mxu0 0
    %3742 = vmatprep.subr.bf16.mxu0 0
    %3743 = vmatpush1.bf16.msra.mxu0 0
    %3744 = vmatprep.subr.bf16.mxu0 0
    %3745 = vmatpush1.bf16.msra.mxu0 0
    %3746 = vmatprep.subr.bf16.mxu0 0
    %3747 = vmatpush1.bf16.msra.mxu0 0
    %3748 = vmatprep.subr.bf16.mxu0 0
    %3749 = vmatpush1.bf16.msra.mxu0 0
    %3750 = vmatprep.subr.bf16.mxu0 0
    %3751 = vmatpush1.bf16.msra.mxu0 0
    %3752 = vmatprep.subr.bf16.mxu0 0
    %3753 = vmatpush1.bf16.msra.mxu0 0
    %3754 = vmatprep.mubr.bf16.mxu0 0
    %3755 = vmatmul.mubr.bf16.gmra.mrb[0].mxu0 %v3680
    %v3756 = vpop.f32.mrb[0].mxu0
    %v3757 = vadd.f32 0.0, %v3756
    %v3758 = vpop.f32.mrb[0].mxu0
    %v3759 = vpop.f32.mrb[0].mxu0
    %v3760 = vpop.f32.mrb[0].mxu0
    %3761 = vdwg.mxu0
    %s3762 = scalar_lea.vmem [#allocation4], 144
    %v3763 = vld [vmem:[%s3762] sm:$0xff]
    %v3764 = vld [vmem:[%s3762 + $0x8] sm:$0xff]
    %v3765 = vld [vmem:[%s3762 + $0x10] sm:$0xff]
    %v3766 = vadd.f32 %v3763, %v3716
    %v3767 = vadd.f32 %v3764, %v3718
    %v3768 = vxor.u32 %v3766, 2147483648
    %v3769 = vxor.u32 %v3767, 2147483648
    %v3770 = vmul.f32 %v3768, 1.442695
    %v3771 = vpow.pop %v3770
    %v3772 = vmul.f32 %v3769, 1.442695
    %v3773 = vpow.pop %v3772
    %v3774 = vadd.f32 %v3771, 1.0
    %v3775 = vadd.f32 %v3773, 1.0
    %v3776 = vrcp.pop %v3774
    %v3777 = vmul.f32 1.0, %v3776
    %v3778 = vrcp.pop %v3775
    %v3779 = vmul.f32 1.0, %v3778
    %v3780 = vadd.f32 %v3757, %v3136
    %v3781 = vmul.f32 %v3777, %v3780
    %v3782 = vadd.f32 %v3765, %v3781
    %v3783 = vtanh.pop %v3782
    %v3784 = vsub.f32 %v3679, %v3783
    %v3785 = vmul.f32 %v3779, %v3784
    %v3786 = vadd.f32 %v3783, %v3785
    %v3787 = vpack.c.bf16 %v3786, %v3786
    %3788 = vmatprep.subr.bf16.mxu0 %v2987
    %3789 = vmatpush1.bf16.msra.mxu0 %v2986
    %3790 = vmatprep.subr.bf16.mxu0 %v2990
    %3791 = vmatpush1.bf16.msra.mxu0 %v2989
    %3792 = vmatprep.subr.bf16.mxu0 %v2993
    %3793 = vmatpush1.bf16.msra.mxu0 %v2992
    %3794 = vmatprep.subr.bf16.mxu0 %v2996
    %3795 = vmatpush1.bf16.msra.mxu0 %v2995
    %3796 = vmatprep.subr.bf16.mxu0 %v2999
    %3797 = vmatpush1.bf16.msra.mxu0 %v2998
    %3798 = vmatprep.subr.bf16.mxu0 %v3002
    %3799 = vmatpush1.bf16.msra.mxu0 %v3001
    %3800 = vmatprep.subr.bf16.mxu0 %v3005
    %3801 = vmatpush1.bf16.msra.mxu0 %v3004
    %3802 = vmatprep.subr.bf16.mxu0 %v3008
    %3803 = vmatpush1.bf16.msra.mxu0 %v3007
    %3804 = vmatprep.subr.bf16.mxu0 0
    %3805 = vmatpush1.bf16.msra.mxu0 0
    %3806 = vmatprep.subr.bf16.mxu0 0
    %3807 = vmatpush1.bf16.msra.mxu0 0
    %3808 = vmatprep.subr.bf16.mxu0 0
    %3809 = vmatpush1.bf16.msra.mxu0 0
    %3810 = vmatprep.subr.bf16.mxu0 0
    %3811 = vmatpush1.bf16.msra.mxu0 0
    %3812 = vmatprep.subr.bf16.mxu0 0
    %3813 = vmatpush1.bf16.msra.mxu0 0
    %3814 = vmatprep.subr.bf16.mxu0 0
    %3815 = vmatpush1.bf16.msra.mxu0 0
    %3816 = vmatprep.subr.bf16.mxu0 0
    %3817 = vmatpush1.bf16.msra.mxu0 0
    %3818 = vmatprep.subr.bf16.mxu0 0
    %3819 = vmatpush1.bf16.msra.mxu0 0
    %3820 = vmatprep.mubr.bf16.mxu0 0
    %3821 = vmatmul.mubr.bf16.gmra.mrb[0].mxu0 %v3787
    %v3822 = vpop.f32.mrb[0].mxu0
    %v3823 = vadd.f32 0.0, %v3822
    %v3824 = vpop.f32.mrb[0].mxu0
    %v3825 = vadd.f32 0.0, %v3824
    %v3826 = vpop.f32.mrb[0].mxu0
    %v3827 = vpop.f32.mrb[0].mxu0
    %3828 = vdwg.mxu0
    %3829 = vmatprep.subr.bf16.mxu0 0
    %3830 = vmatpush1.bf16.msra.mxu0 %v2988
    %3831 = vmatprep.subr.bf16.mxu0 0
    %3832 = vmatpush1.bf16.msra.mxu0 %v2991
    %3833 = vmatprep.subr.bf16.mxu0 0
    %3834 = vmatpush1.bf16.msra.mxu0 %v2994
    %3835 = vmatprep.subr.bf16.mxu0 0
    %3836 = vmatpush1.bf16.msra.mxu0 %v2997
    %3837 = vmatprep.subr.bf16.mxu0 0
    %3838 = vmatpush1.bf16.msra.mxu0 %v3000
    %3839 = vmatprep.subr.bf16.mxu0 0
    %3840 = vmatpush1.bf16.msra.mxu0 %v3003
    %3841 = vmatprep.subr.bf16.mxu0 0
    %3842 = vmatpush1.bf16.msra.mxu0 %v3006
    %3843 = vmatprep.subr.bf16.mxu0 0
    %3844 = vmatpush1.bf16.msra.mxu0 %v3009
    %3845 = vmatprep.subr.bf16.mxu0 0
    %3846 = vmatpush1.bf16.msra.mxu0 0
    %3847 = vmatprep.subr.bf16.mxu0 0
    %3848 = vmatpush1.bf16.msra.mxu0 0
    %3849 = vmatprep.subr.bf16.mxu0 0
    %3850 = vmatpush1.bf16.msra.mxu0 0
    %3851 = vmatprep.subr.bf16.mxu0 0
    %3852 = vmatpush1.bf16.msra.mxu0 0
    %3853 = vmatprep.subr.bf16.mxu0 0
    %3854 = vmatpush1.bf16.msra.mxu0 0
    %3855 = vmatprep.subr.bf16.mxu0 0
    %3856 = vmatpush1.bf16.msra.mxu0 0
    %3857 = vmatprep.subr.bf16.mxu0 0
    %3858 = vmatpush1.bf16.msra.mxu0 0
    %3859 = vmatprep.subr.bf16.mxu0 0
    %3860 = vmatpush1.bf16.msra.mxu0 0
    %3861 = vmatprep.mubr.bf16.mxu0 0
    %3862 = vmatmul.mubr.bf16.gmra.mrb[0].mxu0 %v3787
    %v3863 = vpop.f32.mrb[0].mxu0
    %v3864 = vadd.f32 0.0, %v3863
    %v3865 = vpop.f32.mrb[0].mxu0
    %v3866 = vpop.f32.mrb[0].mxu0
    %v3867 = vpop.f32.mrb[0].mxu0
    %3868 = vdwg.mxu0
    %s3869 = scalar_lea.vmem [#allocation4], 168
    %v3870 = vld [vmem:[%s3869] sm:$0xff]
    %v3871 = vld [vmem:[%s3869 + $0x8] sm:$0xff]
    %v3872 = vld [vmem:[%s3869 + $0x10] sm:$0xff]
    %v3873 = vadd.f32 %v3870, %v3823
    %v3874 = vadd.f32 %v3871, %v3825
    %v3875 = vxor.u32 %v3873, 2147483648
    %v3876 = vxor.u32 %v3874, 2147483648
    %v3877 = vmul.f32 %v3875, 1.442695
    %v3878 = vpow.pop %v3877
    %v3879 = vmul.f32 %v3876, 1.442695
    %v3880 = vpow.pop %v3879
    %v3881 = vadd.f32 %v3878, 1.0
    %v3882 = vadd.f32 %v3880, 1.0
    %v3883 = vrcp.pop %v3881
    %v3884 = vmul.f32 1.0, %v3883
    %v3885 = vrcp.pop %v3882
    %v3886 = vmul.f32 1.0, %v3885
    %v3887 = vadd.f32 %v3864, %v3136
    %v3888 = vmul.f32 %v3884, %v3887
    %v3889 = vadd.f32 %v3872, %v3888
    %v3890 = vtanh.pop %v3889
    %v3891 = vsub.f32 %v3786, %v3890
    %v3892 = vmul.f32 %v3886, %v3891
    %v3893 = vadd.f32 %v3890, %v3892
    %v3894 = vpack.c.bf16 %v3893, %v3893
    %v3895 = vld [vmem:[#allocation14] sm:$0xf]
    %v3896 = vld [vmem:[#allocation14 + $0x4] sm:$0xf]
    %v3897 = vld [vmem:[#allocation14 + $0x8] sm:$0xf]
    %v3898 = vld [vmem:[#allocation14 + $0xc] sm:$0xf]
    %v3899 = vld [vmem:[#allocation14 + $0x10] sm:$0xf]
    %v3900 = vld [vmem:[#allocation14 + $0x14] sm:$0xf]
    %v3901 = vld [vmem:[#allocation14 + $0x18] sm:$0xf]
    %v3902 = vld [vmem:[#allocation14 + $0x1c] sm:$0xf]
    %v3903 = vld [vmem:[#allocation14 + $0x20] sm:$0xf]
    %v3904 = vld [vmem:[#allocation14 + $0x24] sm:$0xf]
    %v3905 = vld [vmem:[#allocation14 + $0x28] sm:$0xf]
    %v3906 = vld [vmem:[#allocation14 + $0x2c] sm:$0xf]
    %v3907 = vld [vmem:[#allocation14 + $0x30] sm:$0xf]
    %v3908 = vld [vmem:[#allocation14 + $0x34] sm:$0xf]
    %v3909 = vld [vmem:[#allocation14 + $0x38] sm:$0xf]
    %v3910 = vld [vmem:[#allocation14 + $0x3c] sm:$0xf]
    %v3911 = vld [vmem:[%s10] sm:$0x1]
    %v3913 = vlaneseq
    %v3914 = vshrl.u32 %v3913, 7
    %v3915 = vsub.s32 0, %v3914
    %v3916 = vrot.slane %v3911, %v3915
    %v3934 = vunpack.c.l.b16 %v3895
    %v3935 = vunpack.c.l.b16 %v3896
    %v3936 = vunpack.c.l.b16 %v3897
    %v3937 = vunpack.c.l.b16 %v3898
    %v3938 = vunpack.c.l.b16 %v3899
    %v3939 = vunpack.c.l.b16 %v3900
    %v3940 = vunpack.c.l.b16 %v3901
    %v3941 = vunpack.c.l.b16 %v3902
    %v3942 = vunpack.c.l.b16 %v3903
    %v3943 = vunpack.c.l.b16 %v3904
    %v3944 = vunpack.c.l.b16 %v3905
    %v3945 = vunpack.c.l.b16 %v3906
    %v3946 = vunpack.c.l.b16 %v3907
    %v3947 = vunpack.c.l.b16 %v3908
    %v3948 = vunpack.c.l.b16 %v3909
    %v3949 = vunpack.c.l.b16 %v3910
    %v3950 = vpack.c.b16 %v3935, %v3934
    %v3951 = vpack.c.b16 %v3937, %v3936
    %v3952 = vpack.c.b16 %v3939, %v3938
    %v3953 = vpack.c.b16 %v3941, %v3940
    %v3954 = vpack.c.b16 %v3943, %v3942
    %v3955 = vpack.c.b16 %v3945, %v3944
    %v3956 = vpack.c.b16 %v3947, %v3946
    %v3957 = vpack.c.b16 %v3949, %v3948
    %3966 = vmatprep.subr.bf16.mxu0 0
    %3967 = vmatpush1.bf16.msra.mxu0 %v3950
    %3968 = vmatprep.subr.bf16.mxu0 0
    %3969 = vmatpush1.bf16.msra.mxu0 %v3951
    %3970 = vmatprep.subr.bf16.mxu0 0
    %3971 = vmatpush1.bf16.msra.mxu0 %v3952
    %3972 = vmatprep.subr.bf16.mxu0 0
    %3973 = vmatpush1.bf16.msra.mxu0 %v3953
    %3974 = vmatprep.subr.bf16.mxu0 0
    %3975 = vmatpush1.bf16.msra.mxu0 %v3954
    %3976 = vmatprep.subr.bf16.mxu0 0
    %3977 = vmatpush1.bf16.msra.mxu0 %v3955
    %3978 = vmatprep.subr.bf16.mxu0 0
    %3979 = vmatpush1.bf16.msra.mxu0 %v3956
    %3980 = vmatprep.subr.bf16.mxu0 0
    %3981 = vmatpush1.bf16.msra.mxu0 %v3957
    %3982 = vmatprep.subr.bf16.mxu0 0
    %3983 = vmatpush1.bf16.msra.mxu0 0
    %3984 = vmatprep.subr.bf16.mxu0 0
    %3985 = vmatpush1.bf16.msra.mxu0 0
    %3986 = vmatprep.subr.bf16.mxu0 0
    %3987 = vmatpush1.bf16.msra.mxu0 0
    %3988 = vmatprep.subr.bf16.mxu0 0
    %3989 = vmatpush1.bf16.msra.mxu0 0
    %3990 = vmatprep.subr.bf16.mxu0 0
    %3991 = vmatpush1.bf16.msra.mxu0 0
    %3992 = vmatprep.subr.bf16.mxu0 0
    %3993 = vmatpush1.bf16.msra.mxu0 0
    %3994 = vmatprep.subr.bf16.mxu0 0
    %3995 = vmatpush1.bf16.msra.mxu0 0
    %3996 = vmatprep.subr.bf16.mxu0 0
    %3997 = vmatpush1.bf16.msra.mxu0 0
    %3998 = vmatprep.mubr.bf16.mxu0 0
    %3999 = vmatmul.mubr.bf16.gmra.mrb[0].mxu0 %v3894
    %v4000 = vpop.f32.mrb[0].mxu0
    %v4001 = vadd.f32 %v3916, %v4000
    %v4002 = vpop.f32.mrb[0].mxu0
    %v4003 = vpop.f32.mrb[0].mxu0
    %v4004 = vpop.f32.mrb[0].mxu0
    %4005 = vdwg.mxu0
    %4006 = vst [vmem:[#allocation16] sm:$0xff] %v4001
    // Predicated region
    $region70: #{tpu_custom_call.1} parent=1 // pred_check
      _
    $region71: #{tpu_custom_call.1} parent=1 // pred_check_branch
      %4008 = sbr.rel (0) target = $region73
    $region72: #{tpu_custom_call.1} parent=1 // pred_region
      %s4010 = ssub.s32 128, 128
      %4011 = vsyncadd [#allocation7], %s4010
      %s4013 = sshll.u32 [#allocation16], 4
      %s4014 = int_to_ptr.vmem [resolvable:$true] %s4013
      %4016 = dma.vmem_to_hbm [thread:$0]  %s4014, 128, %s11, [#allocation7]
    $region73: #{tpu_custom_call.1} parent=1 // pred_fallthru
      _
    // Predicated region
    $region74: #{tpu_custom_call.1} parent=1 // pred_check
      _
    $region75: #{tpu_custom_call.1} parent=1 // pred_check_branch
      %4018 = sbr.rel (0) target = $region77
    $region76: #{tpu_custom_call.1} parent=1 // pred_region
      %4019 = dma.done [#allocation7], 128
    $region77: #{tpu_custom_call.1} parent=1 // pred_fallthru
      _
    %4020 = vsyncpa [#allocation6], 1
    %4021 = vsyncpa [#allocation9], 1
    %4022 = vsyncpa [#allocation12], 1
    %4023 = vsyncpa [#allocation15], 1
    %4024 = vsyncpa [#allocation7], 1

</llo_original>
